<compile_context>
chip_gen: v7x
topology: tpu7x:2x2x1
jax: 0.10.0
libtpu: 0.0.40
codegen_flags: <defaults>
</compile_context>

<pallas_src>
import functools

import jax
import jax.numpy as jnp
from jax import lax
from jax.experimental import pallas as pl
from jax.experimental.pallas import tpu as pltpu

# ----- model hyper-parameters (small shapes consistent with the module's __init__) -----
IMAGE_SIZE = 16
PATCH_SIZE = 4
NUM_CLASSES = 5          # stands in for df['class_label'].nunique()
DIM = 32
DEPTH = 2
HEADS = 4
MLP_DIM = 64
BATCH = 2

NUM_PATCHES = (IMAGE_SIZE // PATCH_SIZE) ** 2          # 16
T_SEQ = NUM_PATCHES + 1                                # 17 tokens (cls + patches)
HEAD_DIM = DIM // HEADS                                # 8
PATCH_FEATS = 3 * PATCH_SIZE * PATCH_SIZE              # 48
HEAD_PAD = 128                                         # lane-dense fused class+bbox head width


def _pad8(r):
    return ((r + 7) // 8) * 8


T_PAD = _pad8(T_SEQ)                                   # 24: per-image token block, sublane-aligned


# --------------------------------------------------------------------------------------
# Packed-weight layout: 8-row-aligned static offsets into three VMEM buffers
# (lane widths 32 / 64 / 128).  Collapses the 19 tiny prologue DMAs into 3.
# --------------------------------------------------------------------------------------
def _build_layout(entries):
    offs, cur = {}, 0
    for name, rows in entries:
        offs[name] = cur
        cur += _pad8(rows)
    return offs, cur


def _layer32_entries(l):
    return [
        (f"w_q_{l}", DIM), (f"w_k_{l}", DIM), (f"w_v_{l}", DIM), (f"w_out_{l}", DIM),
        (f"w_ff2_{l}", MLP_DIM),
        (f"b_q_{l}", 1), (f"b_k_{l}", 1), (f"b_v_{l}", 1), (f"b_out_{l}", 1), (f"b_ff2_{l}", 1),
        (f"ln1_g_{l}", 1), (f"ln1_b_{l}", 1), (f"ln2_g_{l}", 1), (f"ln2_b_{l}", 1),
    ]


_W32_ENTRIES = (
    [("patch_w", PATCH_FEATS), ("patch_b", 1), ("cls_row", 1), ("pos_patch", NUM_PATCHES),
     ("attn_reduce", DIM), ("attn_expand", DIM)]
    + [e for l in range(DEPTH) for e in _layer32_entries(l)]
)
_W64_ENTRIES = [e for l in range(DEPTH) for e in [(f"w_ff1_{l}", DIM), (f"b_ff1_{l}", 1)]]
_W128_ENTRIES = [("head_w", DIM), ("head_b", 1)]

W32_OFF, W32_ROWS = _build_layout(_W32_ENTRIES)        # (672, 32)
W64_OFF, W64_ROWS = _build_layout(_W64_ENTRIES)        # (80, 64)
W128_OFF, W128_ROWS = _build_layout(_W128_ENTRIES)     # (40, 128)


# --------------------------------------------------------------------------------------
# Fused Pallas kernel: entire ViT forward pass (patch embed -> 2 encoder layers -> heads)
# --------------------------------------------------------------------------------------
def _vit_kernel(patches_ref, w32_ref, w64_ref, w128_ref, out_ref, h_ref, *, batch, n_patches):
    f32 = jnp.float32
    d = DIM

    def w32(name, rows=1):
        return w32_ref[pl.ds(W32_OFF[name], rows), :]

    def w64(name, rows=1):
        return w64_ref[pl.ds(W64_OFF[name], rows), :]

    def w128(name, rows=1):
        return w128_ref[pl.ds(W128_OFF[name], rows), :]

    def layernorm(x, g, b):
        mean = jnp.mean(x, axis=-1, keepdims=True)
        var = jnp.mean((x - mean) ** 2, axis=-1, keepdims=True)
        return (x - mean) * lax.rsqrt(var + 1e-5) * g + b

    # one-hot per-head reduce / expand matrices (precomputed; softmax scale folded into reduce)
    reduce_mat = w32("attn_reduce", d)     # (d, d): column h sums head h's lanes, * 1/sqrt(dh)
    expand_mat = w32("attn_expand", d)     # (d, d): broadcasts per-head weights back to their lanes

    # --- patch embedding (Conv2d k=stride=p == per-patch matmul) + token assembly into the
    #     sublane-aligned scratch: each image owns a T_PAD-row block, patches in rows 0..n-1,
    #     cls token at row n, remaining rows zero padding (row-local ops never mix it back). ---
    h_ref[...] = jnp.zeros_like(h_ref)
    pe = jnp.dot(patches_ref[...], w32("patch_w", PATCH_FEATS),
                 preferred_element_type=f32) + w32("patch_b")
    pos_patch = w32("pos_patch", n_patches)
    cls_row = w32("cls_row")               # cls_token + pos[0], precomputed at pack time
    for b in range(batch):
        h_ref[pl.ds(b * T_PAD, n_patches), :] = pe[b * n_patches:(b + 1) * n_patches, :] + pos_patch
        h_ref[pl.ds(b * T_PAD + n_patches, 1), :] = cls_row

    h = h_ref[...]                          # (batch*T_PAD, d); carried in vregs from here on

    # --- transformer encoder (post-norm, ReLU FFN) ---
    # TODO(synk): nn.TransformerEncoderLayer's dropout(p=0.1) is implemented as identity
    # (eval-mode semantics); no deterministic Pallas equivalent of train-time dropout here.
    for l in range(DEPTH):
        # separate q/k/v matmuls keep each result lane-0 aligned (no lane-offset column slices)
        q = jnp.dot(h, w32(f"w_q_{l}", d), preferred_element_type=f32) + w32(f"b_q_{l}")
        k = jnp.dot(h, w32(f"w_k_{l}", d), preferred_element_type=f32) + w32(f"b_k_{l}")
        v = jnp.dot(h, w32(f"w_v_{l}", d), preferred_element_type=f32) + w32(f"b_v_{l}")

        # per-image 24-row blocks: sublane-aligned value slices
        qb = [q[i * T_PAD:(i + 1) * T_PAD, :] for i in range(batch)]
        kb = [k[i * T_PAD:(i + 1) * T_PAD, :] for i in range(batch)]
        vb = [v[i * T_PAD:(i + 1) * T_PAD, :] for i in range(batch)]

        # Attention mixes over the image-batch axis per token position (batch_first=False misuse).
        # Lane-packed per-head scores: (T_PAD, d) values with head h's score in column h
        # (columns >= HEADS carry exact zeros and are nulled by expand_mat).
        out_blocks = []
        for i in range(batch):
            s = [jnp.dot(qb[i] * kb[j], reduce_mat, preferred_element_type=f32)
                 for j in range(batch)]
            m = s[0]
            for j in range(1, batch):
                m = jnp.maximum(m, s[j])
            e = [jnp.exp(sj - m) for sj in s]
            denom = e[0]
            for j in range(1, batch):
                denom = denom + e[j]
            inv = pl.reciprocal(denom, approx=True)       # EUP slot, ~free (not bit-exact)
            acc = jnp.dot(e[0] * inv, expand_mat, preferred_element_type=f32) * vb[0]
            for j in range(1, batch):
                acc = acc + jnp.dot(e[j] * inv, expand_mat, preferred_element_type=f32) * vb[j]
            out_blocks.append(acc)                        # (T_PAD, d), heads already merged in-lane
        ao = jnp.concatenate(out_blocks, axis=0)          # aligned 24-row blocks -> cheap assembly

        ao = jnp.dot(ao, w32(f"w_out_{l}", d), preferred_element_type=f32) + w32(f"b_out_{l}")
        h = layernorm(h + ao, w32(f"ln1_g_{l}"), w32(f"ln1_b_{l}"))

        ff = jnp.dot(h, w64(f"w_ff1_{l}", d), preferred_element_type=f32) + w64(f"b_ff1_{l}")
        ff = jnp.maximum(ff, 0.0)
        ff = jnp.dot(ff, w32(f"w_ff2_{l}", MLP_DIM), preferred_element_type=f32) + w32(f"b_ff2_{l}")
        h = layernorm(h + ff, w32(f"ln2_g_{l}"), w32(f"ln2_b_{l}"))

    # --- fused class + bbox head on the cls rows (row n_patches of each image block; both
    #     rows land on sublane boundaries because n_patches and T_PAD are multiples of 8) ---
    cls_out = jnp.concatenate(
        [h[b * T_PAD + n_patches:b * T_PAD + n_patches + 1, :] for b in range(batch)], axis=0)
    out_ref[...] = (jnp.dot(cls_out, w128("head_w", d), preferred_element_type=f32)
                    + w128("head_b")).astype(out_ref.dtype)


# --------------------------------------------------------------------------------------
# Host wrapper: patch extraction + single pallas_call (4 VMEM inputs, 1 lane-dense output)
# --------------------------------------------------------------------------------------
def vit_forward(x, packed):
    B, C, H, W = x.shape                   # NCHW, same as PyTorch
    p = PATCH_SIZE
    gh, gw = H // p, W // p
    n = gh * gw
    assert n == NUM_PATCHES and C * p * p == PATCH_FEATS

    # patch extraction (host glue): (B,C,H,W) -> (B*n, C*p*p) in (C, ph, pw) flatten order,
    # matching patch_w's (C*p*p, DIM) layout (real Conv2d weights need a permute/reshape).
    patches = (x.reshape(B, C, gh, p, gw, p)
                .transpose(0, 2, 4, 1, 3, 5)
                .reshape(B * n, C * p * p))

    vmem_specs = [pl.BlockSpec(memory_space=pltpu.MemorySpace.VMEM)] * 4
    out = pl.pallas_call(
        functools.partial(_vit_kernel, batch=B, n_patches=n),
        out_shape=jax.ShapeDtypeStruct((B, HEAD_PAD), jnp.float32),
        in_specs=vmem_specs,
        out_specs=pl.BlockSpec(memory_space=pltpu.MemorySpace.VMEM),
        scratch_shapes=[pltpu.VMEM((B * T_PAD, DIM), jnp.float32)],
    )(patches, packed["w32"], packed["w64"], packed["w128"])

    class_out = out[:, :NUM_CLASSES]
    bbox_out = out[:, NUM_CLASSES:NUM_CLASSES + 4]
    return class_out, bbox_out


# --------------------------------------------------------------------------------------
# Deterministic parameter initialization + one-time packing into the three VMEM buffers
# --------------------------------------------------------------------------------------
def init_params(key):
    """Raw parameters with shapes mirroring the PyTorch module (per-layer stacked on axis 0)."""
    def nrm(k, shape, scale=0.02):
        return scale * jax.random.normal(k, shape, dtype=jnp.float32)

    keys = iter(jax.random.split(key, 24))
    return {
        # Conv2d(3, DIM, k=p, stride=p) weight reshaped/transposed to (3*p*p, DIM)
        "patch_w": nrm(next(keys), (PATCH_FEATS, DIM)),
        "patch_b": nrm(next(keys), (DIM,)),
        "cls_token": jax.random.normal(next(keys), (1, 1, DIM), dtype=jnp.float32),
        "pos_embedding": jax.random.normal(next(keys), (1, NUM_PATCHES + 1, DIM), dtype=jnp.float32),
        "cls_head_w": nrm(next(keys), (DIM, NUM_CLASSES)),
        "cls_head_b": nrm(next(keys), (NUM_CLASSES,)),
        "bbox_w": nrm(next(keys), (DIM, 4)),
        "bbox_b": nrm(next(keys), (4,)),
        # attention in_proj split into q/k/v (each (DIM, DIM) per layer) and out_proj
        "w_q": nrm(next(keys), (DEPTH, DIM, DIM)),
        "w_k": nrm(next(keys), (DEPTH, DIM, DIM)),
        "w_v": nrm(next(keys), (DEPTH, DIM, DIM)),
        "b_q": nrm(next(keys), (DEPTH, DIM)),
        "b_k": nrm(next(keys), (DEPTH, DIM)),
        "b_v": nrm(next(keys), (DEPTH, DIM)),
        "w_out": nrm(next(keys), (DEPTH, DIM, DIM)),
        "b_out": nrm(next(keys), (DEPTH, DIM)),
        "ln1_g": jnp.ones((DEPTH, DIM), jnp.float32),
        "ln1_b": jnp.zeros((DEPTH, DIM), jnp.float32),
        "w_ff1": nrm(next(keys), (DEPTH, DIM, MLP_DIM)),
        "b_ff1": nrm(next(keys), (DEPTH, MLP_DIM)),
        "w_ff2": nrm(next(keys), (DEPTH, MLP_DIM, DIM)),
        "b_ff2": nrm(next(keys), (DEPTH, DIM)),
        "ln2_g": jnp.ones((DEPTH, DIM), jnp.float32),
        "ln2_b": jnp.zeros((DEPTH, DIM), jnp.float32),
    }


def pack_params(params):
    """One-time host-side packing of all weights into three 8-row-aligned VMEM buffers."""
    def as2d(a):
        a = jnp.asarray(a, jnp.float32)
        return a.reshape(1, -1) if a.ndim == 1 else a

    def pack(width, offs, total_rows, items):
        buf = jnp.zeros((total_rows, width), jnp.float32)
        for name, arr in items:
            arr = as2d(arr)
            r, c = arr.shape
            buf = buf.at[offs[name]:offs[name] + r, :c].set(arr)
        return buf

    pos = params["pos_embedding"][0]                              # (n+1, DIM)
    head_of_lane = jnp.arange(DIM) // HEAD_DIM                    # lane -> head index
    one_hot = (head_of_lane[:, None] == jnp.arange(DIM)[None, :]).astype(jnp.float32)  # (DIM, DIM)

    items32 = [
        ("patch_w", params["patch_w"]),
        ("patch_b", params["patch_b"]),
        ("cls_row", params["cls_token"][0, 0] + pos[0]),          # cls token + pos[0], fused
        ("pos_patch", pos[1:]),
        ("attn_reduce", one_hot / (HEAD_DIM ** 0.5)),             # per-head score reduce, scale folded
        ("attn_expand", one_hot.T),                               # per-head weight expansion
    ]
    for l in range(DEPTH):
        items32 += [
            (f"w_q_{l}", params["w_q"][l]), (f"w_k_{l}", params["w_k"][l]),
            (f"w_v_{l}", params["w_v"][l]), (f"w_out_{l}", params["w_out"][l]),
            (f"w_ff2_{l}", params["w_ff2"][l]),
            (f"b_q_{l}", params["b_q"][l]), (f"b_k_{l}", params["b_k"][l]),
            (f"b_v_{l}", params["b_v"][l]), (f"b_out_{l}", params["b_out"][l]),
            (f"b_ff2_{l}", params["b_ff2"][l]),
            (f"ln1_g_{l}", params["ln1_g"][l]), (f"ln1_b_{l}", params["ln1_b"][l]),
            (f"ln2_g_{l}", params["ln2_g"][l]), (f"ln2_b_{l}", params["ln2_b"][l]),
        ]

    items64 = []
    for l in range(DEPTH):
        items64 += [(f"w_ff1_{l}", params["w_ff1"][l]), (f"b_ff1_{l}", params["b_ff1"][l])]

    # fused (class | bbox) head, padded to a lane-dense 128-wide output
    head_w = jnp.concatenate([params["cls_head_w"], params["bbox_w"]], axis=1)   # (DIM, 9)
    head_b = jnp.concatenate([params["cls_head_b"], params["bbox_b"]], axis=0)   # (9,)
    items128 = [("head_w", head_w), ("head_b", head_b)]

    return {
        "w32": pack(DIM, W32_OFF, W32_ROWS, items32),
        "w64": pack(MLP_DIM, W64_OFF, W64_ROWS, items64),
        "w128": pack(HEAD_PAD, W128_OFF, W128_ROWS, items128),
    }


if __name__ == "__main__":
    key = jax.random.PRNGKey(0)
    pkey, xkey = jax.random.split(key)
    packed = pack_params(init_params(pkey))
    x = jax.random.normal(xkey, (BATCH, 3, IMAGE_SIZE, IMAGE_SIZE), dtype=jnp.float32)

    class_out, bbox_out = jax.jit(vit_forward)(x, packed)
    jax.block_until_ready((class_out, bbox_out))

    assert class_out.shape == (BATCH, NUM_CLASSES)
    assert bbox_out.shape == (BATCH, 4)
    assert bool(jnp.all(jnp.isfinite(class_out))) and bool(jnp.all(jnp.isfinite(bbox_out)))
    print("KERNEL_OK")
</pallas_src>

<mosaic_0001>
module attributes {stable_mosaic.version = 11 : i64} {
  func.func @_vit_kernel(%arg0: memref<32x48xf32, #tpu.memory_space<vmem>>, %arg1: memref<672x32xf32, #tpu.memory_space<vmem>>, %arg2: memref<80x64xf32, #tpu.memory_space<vmem>>, %arg3: memref<40x128xf32, #tpu.memory_space<vmem>>, %arg4: memref<2x128xf32, #tpu.memory_space<vmem>>, %arg5: memref<48x32xf32, #tpu.memory_space<vmem>>) attributes {dimension_semantics = [], scalar_prefetch = 0 : i64, scratch_operands = 1 : i64, tpu.core_type = #tpu.core_type<tc>} {
    %c80 = arith.constant 80 : index
    %c0 = arith.constant 0 : index
    %0 = vector.load %arg1[%c80, %c0] : memref<672x32xf32, #tpu.memory_space<vmem>>, vector<32x32xf32>
    %c112 = arith.constant 112 : index
    %c0_0 = arith.constant 0 : index
    %1 = vector.load %arg1[%c112, %c0_0] : memref<672x32xf32, #tpu.memory_space<vmem>>, vector<32x32xf32>
    %cst = arith.constant 0.000000e+00 : f32
    %2 = vector.broadcast %cst : f32 to vector<48x32xf32>
    %c0_1 = arith.constant 0 : index
    %c0_2 = arith.constant 0 : index
    %3 = vector.load %arg5[%c0_1, %c0_2] : memref<48x32xf32, #tpu.memory_space<vmem>>, vector<48x32xf32>
    tpu.vector_store %arg5[%c0_1, %c0_2], %2 {strides = array<i32>} : memref<48x32xf32, #tpu.memory_space<vmem>>, vector<48x32xf32>,
    %c0_3 = arith.constant 0 : index
    %c0_4 = arith.constant 0 : index
    %4 = vector.load %arg0[%c0_3, %c0_4] : memref<32x48xf32, #tpu.memory_space<vmem>>, vector<32x48xf32>
    %c0_5 = arith.constant 0 : index
    %c0_6 = arith.constant 0 : index
    %5 = vector.load %arg1[%c0_5, %c0_6] : memref<672x32xf32, #tpu.memory_space<vmem>>, vector<48x32xf32>
    %cst_7 = arith.constant dense<0.000000e+00> : vector<32x32xf32>
    %6 = tpu.matmul %4, %5, %cst_7 {dimension_numbers = #tpu.dot_dimension_numbers<[1], [0], [0], [1], [0, 0, 1, 1], [], []>} : vector<32x48xf32>, vector<48x32xf32>, vector<32x32xf32> -> vector<32x32xf32>
    %c48 = arith.constant 48 : index
    %c0_8 = arith.constant 0 : index
    %7 = vector.load %arg1[%c48, %c0_8] : memref<672x32xf32, #tpu.memory_space<vmem>>, vector<1x32xf32>
    %8 = vector.broadcast %7 : vector<1x32xf32> to vector<32x32xf32>
    %9 = arith.addf %6, %8 : vector<32x32xf32>
    %c64 = arith.constant 64 : index
    %c0_9 = arith.constant 0 : index
    %10 = vector.load %arg1[%c64, %c0_9] : memref<672x32xf32, #tpu.memory_space<vmem>>, vector<16x32xf32>
    %c56 = arith.constant 56 : index
    %c0_10 = arith.constant 0 : index
    %11 = vector.load %arg1[%c56, %c0_10] : memref<672x32xf32, #tpu.memory_space<vmem>>, vector<1x32xf32>
    %12 = vector.extract_strided_slice %9 {offsets = [0, 0], sizes = [16, 32], strides = [1, 1]} : vector<32x32xf32> to vector<16x32xf32>
    %13 = arith.addf %12, %10 : vector<16x32xf32>
    %c0_11 = arith.constant 0 : index
    %c0_12 = arith.constant 0 : index
    %14 = vector.load %arg5[%c0_11, %c0_12] : memref<48x32xf32, #tpu.memory_space<vmem>>, vector<16x32xf32>
    tpu.vector_store %arg5[%c0_11, %c0_12], %13 {strides = array<i32>} : memref<48x32xf32, #tpu.memory_space<vmem>>, vector<16x32xf32>,
    %c16 = arith.constant 16 : index
    %c0_13 = arith.constant 0 : index
    %15 = vector.load %arg5[%c16, %c0_13] : memref<48x32xf32, #tpu.memory_space<vmem>>, vector<1x32xf32>
    tpu.vector_store %arg5[%c16, %c0_13], %11 {strides = array<i32>} : memref<48x32xf32, #tpu.memory_space<vmem>>, vector<1x32xf32>,
    %16 = vector.extract_strided_slice %9 {offsets = [16, 0], sizes = [16, 32], strides = [1, 1]} : vector<32x32xf32> to vector<16x32xf32>
    %17 = arith.addf %16, %10 : vector<16x32xf32>
    %c24 = arith.constant 24 : index
    %c0_14 = arith.constant 0 : index
    %18 = vector.load %arg5[%c24, %c0_14] : memref<48x32xf32, #tpu.memory_space<vmem>>, vector<16x32xf32>
    tpu.vector_store %arg5[%c24, %c0_14], %17 {strides = array<i32>} : memref<48x32xf32, #tpu.memory_space<vmem>>, vector<16x32xf32>,
    %c40 = arith.constant 40 : index
    %c0_15 = arith.constant 0 : index
    %19 = vector.load %arg5[%c40, %c0_15] : memref<48x32xf32, #tpu.memory_space<vmem>>, vector<1x32xf32>
    tpu.vector_store %arg5[%c40, %c0_15], %11 {strides = array<i32>} : memref<48x32xf32, #tpu.memory_space<vmem>>, vector<1x32xf32>,
    %c0_16 = arith.constant 0 : index
    %c0_17 = arith.constant 0 : index
    %20 = vector.load %arg5[%c0_16, %c0_17] : memref<48x32xf32, #tpu.memory_space<vmem>>, vector<48x32xf32>
    %c144 = arith.constant 144 : index
    %c0_18 = arith.constant 0 : index
    %21 = vector.load %arg1[%c144, %c0_18] : memref<672x32xf32, #tpu.memory_space<vmem>>, vector<32x32xf32>
    %cst_19 = arith.constant dense<0.000000e+00> : vector<48x32xf32>
    %22 = tpu.matmul %20, %21, %cst_19 {dimension_numbers = #tpu.dot_dimension_numbers<[1], [0], [0], [1], [0, 0, 1, 1], [], []>} : vector<48x32xf32>, vector<32x32xf32>, vector<48x32xf32> -> vector<48x32xf32>
    %c336 = arith.constant 336 : index
    %c0_20 = arith.constant 0 : index
    %23 = vector.load %arg1[%c336, %c0_20] : memref<672x32xf32, #tpu.memory_space<vmem>>, vector<1x32xf32>
    %24 = vector.broadcast %23 : vector<1x32xf32> to vector<48x32xf32>
    %25 = arith.addf %22, %24 : vector<48x32xf32>
    %c176 = arith.constant 176 : index
    %c0_21 = arith.constant 0 : index
    %26 = vector.load %arg1[%c176, %c0_21] : memref<672x32xf32, #tpu.memory_space<vmem>>, vector<32x32xf32>
    %cst_22 = arith.constant dense<0.000000e+00> : vector<48x32xf32>
    %27 = tpu.matmul %20, %26, %cst_22 {dimension_numbers = #tpu.dot_dimension_numbers<[1], [0], [0], [1], [0, 0, 1, 1], [], []>} : vector<48x32xf32>, vector<32x32xf32>, vector<48x32xf32> -> vector<48x32xf32>
    %c344 = arith.constant 344 : index
    %c0_23 = arith.constant 0 : index
    %28 = vector.load %arg1[%c344, %c0_23] : memref<672x32xf32, #tpu.memory_space<vmem>>, vector<1x32xf32>
    %29 = vector.broadcast %28 : vector<1x32xf32> to vector<48x32xf32>
    %30 = arith.addf %27, %29 : vector<48x32xf32>
    %c208 = arith.constant 208 : index
    %c0_24 = arith.constant 0 : index
    %31 = vector.load %arg1[%c208, %c0_24] : memref<672x32xf32, #tpu.memory_space<vmem>>, vector<32x32xf32>
    %cst_25 = arith.constant dense<0.000000e+00> : vector<48x32xf32>
    %32 = tpu.matmul %20, %31, %cst_25 {dimension_numbers = #tpu.dot_dimension_numbers<[1], [0], [0], [1], [0, 0, 1, 1], [], []>} : vector<48x32xf32>, vector<32x32xf32>, vector<48x32xf32> -> vector<48x32xf32>
    %c352 = arith.constant 352 : index
    %c0_26 = arith.constant 0 : index
    %33 = vector.load %arg1[%c352, %c0_26] : memref<672x32xf32, #tpu.memory_space<vmem>>, vector<1x32xf32>
    %34 = vector.broadcast %33 : vector<1x32xf32> to vector<48x32xf32>
    %35 = arith.addf %32, %34 : vector<48x32xf32>
    %36 = vector.extract_strided_slice %25 {offsets = [0, 0], sizes = [24, 32], strides = [1, 1]} : vector<48x32xf32> to vector<24x32xf32>
    %37 = vector.extract_strided_slice %25 {offsets = [24, 0], sizes = [24, 32], strides = [1, 1]} : vector<48x32xf32> to vector<24x32xf32>
    %38 = vector.extract_strided_slice %30 {offsets = [0, 0], sizes = [24, 32], strides = [1, 1]} : vector<48x32xf32> to vector<24x32xf32>
    %39 = vector.extract_strided_slice %30 {offsets = [24, 0], sizes = [24, 32], strides = [1, 1]} : vector<48x32xf32> to vector<24x32xf32>
    %40 = vector.extract_strided_slice %35 {offsets = [0, 0], sizes = [24, 32], strides = [1, 1]} : vector<48x32xf32> to vector<24x32xf32>
    %41 = vector.extract_strided_slice %35 {offsets = [24, 0], sizes = [24, 32], strides = [1, 1]} : vector<48x32xf32> to vector<24x32xf32>
    %42 = arith.mulf %36, %38 : vector<24x32xf32>
    %cst_27 = arith.constant dense<0.000000e+00> : vector<24x32xf32>
    %43 = tpu.matmul %42, %0, %cst_27 {dimension_numbers = #tpu.dot_dimension_numbers<[1], [0], [0], [1], [0, 0, 1, 1], [], []>} : vector<24x32xf32>, vector<32x32xf32>, vector<24x32xf32> -> vector<24x32xf32>
    %44 = arith.mulf %36, %39 : vector<24x32xf32>
    %cst_28 = arith.constant dense<0.000000e+00> : vector<24x32xf32>
    %45 = tpu.matmul %44, %0, %cst_28 {dimension_numbers = #tpu.dot_dimension_numbers<[1], [0], [0], [1], [0, 0, 1, 1], [], []>} : vector<24x32xf32>, vector<32x32xf32>, vector<24x32xf32> -> vector<24x32xf32>
    %46 = arith.maximumf %43, %45 : vector<24x32xf32>
    %47 = arith.subf %43, %46 : vector<24x32xf32>
    %48 = math.exp %47 : vector<24x32xf32>
    %49 = arith.subf %45, %46 : vector<24x32xf32>
    %50 = math.exp %49 : vector<24x32xf32>
    %51 = arith.addf %48, %50 : vector<24x32xf32>
    %52 = tpu.reciprocal %51 {approx = true} : vector<24x32xf32> -> vector<24x32xf32>
    %53 = arith.mulf %48, %52 : vector<24x32xf32>
    %cst_29 = arith.constant dense<0.000000e+00> : vector<24x32xf32>
    %54 = tpu.matmul %53, %1, %cst_29 {dimension_numbers = #tpu.dot_dimension_numbers<[1], [0], [0], [1], [0, 0, 1, 1], [], []>} : vector<24x32xf32>, vector<32x32xf32>, vector<24x32xf32> -> vector<24x32xf32>
    %55 = arith.mulf %54, %40 : vector<24x32xf32>
    %56 = arith.mulf %50, %52 : vector<24x32xf32>
    %cst_30 = arith.constant dense<0.000000e+00> : vector<24x32xf32>
    %57 = tpu.matmul %56, %1, %cst_30 {dimension_numbers = #tpu.dot_dimension_numbers<[1], [0], [0], [1], [0, 0, 1, 1], [], []>} : vector<24x32xf32>, vector<32x32xf32>, vector<24x32xf32> -> vector<24x32xf32>
    %58 = arith.mulf %57, %41 : vector<24x32xf32>
    %59 = arith.addf %55, %58 : vector<24x32xf32>
    %60 = arith.mulf %37, %38 : vector<24x32xf32>
    %cst_31 = arith.constant dense<0.000000e+00> : vector<24x32xf32>
    %61 = tpu.matmul %60, %0, %cst_31 {dimension_numbers = #tpu.dot_dimension_numbers<[1], [0], [0], [1], [0, 0, 1, 1], [], []>} : vector<24x32xf32>, vector<32x32xf32>, vector<24x32xf32> -> vector<24x32xf32>
    %62 = arith.mulf %37, %39 : vector<24x32xf32>
    %cst_32 = arith.constant dense<0.000000e+00> : vector<24x32xf32>
    %63 = tpu.matmul %62, %0, %cst_32 {dimension_numbers = #tpu.dot_dimension_numbers<[1], [0], [0], [1], [0, 0, 1, 1], [], []>} : vector<24x32xf32>, vector<32x32xf32>, vector<24x32xf32> -> vector<24x32xf32>
    %64 = arith.maximumf %61, %63 : vector<24x32xf32>
    %65 = arith.subf %61, %64 : vector<24x32xf32>
    %66 = math.exp %65 : vector<24x32xf32>
    %67 = arith.subf %63, %64 : vector<24x32xf32>
    %68 = math.exp %67 : vector<24x32xf32>
    %69 = arith.addf %66, %68 : vector<24x32xf32>
    %70 = tpu.reciprocal %69 {approx = true} : vector<24x32xf32> -> vector<24x32xf32>
    %71 = arith.mulf %66, %70 : vector<24x32xf32>
    %cst_33 = arith.constant dense<0.000000e+00> : vector<24x32xf32>
    %72 = tpu.matmul %71, %1, %cst_33 {dimension_numbers = #tpu.dot_dimension_numbers<[1], [0], [0], [1], [0, 0, 1, 1], [], []>} : vector<24x32xf32>, vector<32x32xf32>, vector<24x32xf32> -> vector<24x32xf32>
    %73 = arith.mulf %72, %40 : vector<24x32xf32>
    %74 = arith.mulf %68, %70 : vector<24x32xf32>
    %cst_34 = arith.constant dense<0.000000e+00> : vector<24x32xf32>
    %75 = tpu.matmul %74, %1, %cst_34 {dimension_numbers = #tpu.dot_dimension_numbers<[1], [0], [0], [1], [0, 0, 1, 1], [], []>} : vector<24x32xf32>, vector<32x32xf32>, vector<24x32xf32> -> vector<24x32xf32>
    %76 = arith.mulf %75, %41 : vector<24x32xf32>
    %77 = arith.addf %73, %76 : vector<24x32xf32>
    %78 = tpu.concatenate %59, %77 in 0 : vector<24x32xf32>, vector<24x32xf32> -> vector<48x32xf32>
    %c240 = arith.constant 240 : index
    %c0_35 = arith.constant 0 : index
    %79 = vector.load %arg1[%c240, %c0_35] : memref<672x32xf32, #tpu.memory_space<vmem>>, vector<32x32xf32>
    %cst_36 = arith.constant dense<0.000000e+00> : vector<48x32xf32>
    %80 = tpu.matmul %78, %79, %cst_36 {dimension_numbers = #tpu.dot_dimension_numbers<[1], [0], [0], [1], [0, 0, 1, 1], [], []>} : vector<48x32xf32>, vector<32x32xf32>, vector<48x32xf32> -> vector<48x32xf32>
    %c360 = arith.constant 360 : index
    %c0_37 = arith.constant 0 : index
    %81 = vector.load %arg1[%c360, %c0_37] : memref<672x32xf32, #tpu.memory_space<vmem>>, vector<1x32xf32>
    %82 = vector.broadcast %81 : vector<1x32xf32> to vector<48x32xf32>
    %83 = arith.addf %80, %82 : vector<48x32xf32>
    %84 = arith.addf %20, %83 : vector<48x32xf32>
    %c376 = arith.constant 376 : index
    %c0_38 = arith.constant 0 : index
    %85 = vector.load %arg1[%c376, %c0_38] : memref<672x32xf32, #tpu.memory_space<vmem>>, vector<1x32xf32>
    %c384 = arith.constant 384 : index
    %c0_39 = arith.constant 0 : index
    %86 = vector.load %arg1[%c384, %c0_39] : memref<672x32xf32, #tpu.memory_space<vmem>>, vector<1x32xf32>
    %cst_40 = arith.constant dense<0.000000e+00> : vector<48xf32>
    %87 = vector.multi_reduction <add>, %84, %cst_40 [1] : vector<48x32xf32> to vector<48xf32>
    %88 = vector.shape_cast %87 : vector<48xf32> to vector<48x1xf32>
    %cst_41 = arith.constant 3.200000e+01 : f32
    %89 = vector.broadcast %cst_41 : f32 to vector<48x1xf32>
    %90 = arith.divf %88, %89 : vector<48x1xf32>
    %91 = vector.broadcast %90 : vector<48x1xf32> to vector<48x32xf32>
    %92 = arith.subf %84, %91 : vector<48x32xf32>
    %93 = arith.mulf %92, %92 : vector<48x32xf32>
    %cst_42 = arith.constant dense<0.000000e+00> : vector<48xf32>
    %94 = vector.multi_reduction <add>, %93, %cst_42 [1] : vector<48x32xf32> to vector<48xf32>
    %95 = vector.shape_cast %94 : vector<48xf32> to vector<48x1xf32>
    %cst_43 = arith.constant 3.200000e+01 : f32
    %96 = vector.broadcast %cst_43 : f32 to vector<48x1xf32>
    %97 = arith.divf %95, %96 : vector<48x1xf32>
    %98 = vector.broadcast %90 : vector<48x1xf32> to vector<48x32xf32>
    %99 = arith.subf %84, %98 : vector<48x32xf32>
    %cst_44 = arith.constant 9.99999974E-6 : f32
    %100 = vector.broadcast %cst_44 : f32 to vector<48x1xf32>
    %101 = arith.addf %97, %100 : vector<48x1xf32>
    %102 = math.rsqrt %101 : vector<48x1xf32>
    %103 = vector.broadcast %102 : vector<48x1xf32> to vector<48x32xf32>
    %104 = arith.mulf %99, %103 : vector<48x32xf32>
    %105 = vector.broadcast %85 : vector<1x32xf32> to vector<48x32xf32>
    %106 = arith.mulf %104, %105 : vector<48x32xf32>
    %107 = vector.broadcast %86 : vector<1x32xf32> to vector<48x32xf32>
    %108 = arith.addf %106, %107 : vector<48x32xf32>
    %c0_45 = arith.constant 0 : index
    %c0_46 = arith.constant 0 : index
    %109 = vector.load %arg2[%c0_45, %c0_46] : memref<80x64xf32, #tpu.memory_space<vmem>>, vector<32x64xf32>
    %cst_47 = arith.constant dense<0.000000e+00> : vector<48x64xf32>
    %110 = tpu.matmul %108, %109, %cst_47 {dimension_numbers = #tpu.dot_dimension_numbers<[1], [0], [0], [1], [0, 0, 1, 1], [], []>} : vector<48x32xf32>, vector<32x64xf32>, vector<48x64xf32> -> vector<48x64xf32>
    %c32 = arith.constant 32 : index
    %c0_48 = arith.constant 0 : index
    %111 = vector.load %arg2[%c32, %c0_48] : memref<80x64xf32, #tpu.memory_space<vmem>>, vector<1x64xf32>
    %112 = vector.broadcast %111 : vector<1x64xf32> to vector<48x64xf32>
    %113 = arith.addf %110, %112 : vector<48x64xf32>
    %cst_49 = arith.constant 0.000000e+00 : f32
    %114 = vector.broadcast %cst_49 : f32 to vector<48x64xf32>
    %115 = arith.maximumf %113, %114 : vector<48x64xf32>
    %c272 = arith.constant 272 : index
    %c0_50 = arith.constant 0 : index
    %116 = vector.load %arg1[%c272, %c0_50] : memref<672x32xf32, #tpu.memory_space<vmem>>, vector<64x32xf32>
    %cst_51 = arith.constant dense<0.000000e+00> : vector<48x32xf32>
    %117 = tpu.matmul %115, %116, %cst_51 {dimension_numbers = #tpu.dot_dimension_numbers<[1], [0], [0], [1], [0, 0, 1, 1], [], []>} : vector<48x64xf32>, vector<64x32xf32>, vector<48x32xf32> -> vector<48x32xf32>
    %c368 = arith.constant 368 : index
    %c0_52 = arith.constant 0 : index
    %118 = vector.load %arg1[%c368, %c0_52] : memref<672x32xf32, #tpu.memory_space<vmem>>, vector<1x32xf32>
    %119 = vector.broadcast %118 : vector<1x32xf32> to vector<48x32xf32>
    %120 = arith.addf %117, %119 : vector<48x32xf32>
    %121 = arith.addf %108, %120 : vector<48x32xf32>
    %c392 = arith.constant 392 : index
    %c0_53 = arith.constant 0 : index
    %122 = vector.load %arg1[%c392, %c0_53] : memref<672x32xf32, #tpu.memory_space<vmem>>, vector<1x32xf32>
    %c400 = arith.constant 400 : index
    %c0_54 = arith.constant 0 : index
    %123 = vector.load %arg1[%c400, %c0_54] : memref<672x32xf32, #tpu.memory_space<vmem>>, vector<1x32xf32>
    %cst_55 = arith.constant dense<0.000000e+00> : vector<48xf32>
    %124 = vector.multi_reduction <add>, %121, %cst_55 [1] : vector<48x32xf32> to vector<48xf32>
    %125 = vector.shape_cast %124 : vector<48xf32> to vector<48x1xf32>
    %cst_56 = arith.constant 3.200000e+01 : f32
    %126 = vector.broadcast %cst_56 : f32 to vector<48x1xf32>
    %127 = arith.divf %125, %126 : vector<48x1xf32>
    %128 = vector.broadcast %127 : vector<48x1xf32> to vector<48x32xf32>
    %129 = arith.subf %121, %128 : vector<48x32xf32>
    %130 = arith.mulf %129, %129 : vector<48x32xf32>
    %cst_57 = arith.constant dense<0.000000e+00> : vector<48xf32>
    %131 = vector.multi_reduction <add>, %130, %cst_57 [1] : vector<48x32xf32> to vector<48xf32>
    %132 = vector.shape_cast %131 : vector<48xf32> to vector<48x1xf32>
    %cst_58 = arith.constant 3.200000e+01 : f32
    %133 = vector.broadcast %cst_58 : f32 to vector<48x1xf32>
    %134 = arith.divf %132, %133 : vector<48x1xf32>
    %135 = vector.broadcast %127 : vector<48x1xf32> to vector<48x32xf32>
    %136 = arith.subf %121, %135 : vector<48x32xf32>
    %cst_59 = arith.constant 9.99999974E-6 : f32
    %137 = vector.broadcast %cst_59 : f32 to vector<48x1xf32>
    %138 = arith.addf %134, %137 : vector<48x1xf32>
    %139 = math.rsqrt %138 : vector<48x1xf32>
    %140 = vector.broadcast %139 : vector<48x1xf32> to vector<48x32xf32>
    %141 = arith.mulf %136, %140 : vector<48x32xf32>
    %142 = vector.broadcast %122 : vector<1x32xf32> to vector<48x32xf32>
    %143 = arith.mulf %141, %142 : vector<48x32xf32>
    %144 = vector.broadcast %123 : vector<1x32xf32> to vector<48x32xf32>
    %145 = arith.addf %143, %144 : vector<48x32xf32>
    %c408 = arith.constant 408 : index
    %c0_60 = arith.constant 0 : index
    %146 = vector.load %arg1[%c408, %c0_60] : memref<672x32xf32, #tpu.memory_space<vmem>>, vector<32x32xf32>
    %cst_61 = arith.constant dense<0.000000e+00> : vector<48x32xf32>
    %147 = tpu.matmul %145, %146, %cst_61 {dimension_numbers = #tpu.dot_dimension_numbers<[1], [0], [0], [1], [0, 0, 1, 1], [], []>} : vector<48x32xf32>, vector<32x32xf32>, vector<48x32xf32> -> vector<48x32xf32>
    %c600 = arith.constant 600 : index
    %c0_62 = arith.constant 0 : index
    %148 = vector.load %arg1[%c600, %c0_62] : memref<672x32xf32, #tpu.memory_space<vmem>>, vector<1x32xf32>
    %149 = vector.broadcast %148 : vector<1x32xf32> to vector<48x32xf32>
    %150 = arith.addf %147, %149 : vector<48x32xf32>
    %c440 = arith.constant 440 : index
    %c0_63 = arith.constant 0 : index
    %151 = vector.load %arg1[%c440, %c0_63] : memref<672x32xf32, #tpu.memory_space<vmem>>, vector<32x32xf32>
    %cst_64 = arith.constant dense<0.000000e+00> : vector<48x32xf32>
    %152 = tpu.matmul %145, %151, %cst_64 {dimension_numbers = #tpu.dot_dimension_numbers<[1], [0], [0], [1], [0, 0, 1, 1], [], []>} : vector<48x32xf32>, vector<32x32xf32>, vector<48x32xf32> -> vector<48x32xf32>
    %c608 = arith.constant 608 : index
    %c0_65 = arith.constant 0 : index
    %153 = vector.load %arg1[%c608, %c0_65] : memref<672x32xf32, #tpu.memory_space<vmem>>, vector<1x32xf32>
    %154 = vector.broadcast %153 : vector<1x32xf32> to vector<48x32xf32>
    %155 = arith.addf %152, %154 : vector<48x32xf32>
    %c472 = arith.constant 472 : index
    %c0_66 = arith.constant 0 : index
    %156 = vector.load %arg1[%c472, %c0_66] : memref<672x32xf32, #tpu.memory_space<vmem>>, vector<32x32xf32>
    %cst_67 = arith.constant dense<0.000000e+00> : vector<48x32xf32>
    %157 = tpu.matmul %145, %156, %cst_67 {dimension_numbers = #tpu.dot_dimension_numbers<[1], [0], [0], [1], [0, 0, 1, 1], [], []>} : vector<48x32xf32>, vector<32x32xf32>, vector<48x32xf32> -> vector<48x32xf32>
    %c616 = arith.constant 616 : index
    %c0_68 = arith.constant 0 : index
    %158 = vector.load %arg1[%c616, %c0_68] : memref<672x32xf32, #tpu.memory_space<vmem>>, vector<1x32xf32>
    %159 = vector.broadcast %158 : vector<1x32xf32> to vector<48x32xf32>
    %160 = arith.addf %157, %159 : vector<48x32xf32>
    %161 = vector.extract_strided_slice %150 {offsets = [0, 0], sizes = [24, 32], strides = [1, 1]} : vector<48x32xf32> to vector<24x32xf32>
    %162 = vector.extract_strided_slice %150 {offsets = [24, 0], sizes = [24, 32], strides = [1, 1]} : vector<48x32xf32> to vector<24x32xf32>
    %163 = vector.extract_strided_slice %155 {offsets = [0, 0], sizes = [24, 32], strides = [1, 1]} : vector<48x32xf32> to vector<24x32xf32>
    %164 = vector.extract_strided_slice %155 {offsets = [24, 0], sizes = [24, 32], strides = [1, 1]} : vector<48x32xf32> to vector<24x32xf32>
    %165 = vector.extract_strided_slice %160 {offsets = [0, 0], sizes = [24, 32], strides = [1, 1]} : vector<48x32xf32> to vector<24x32xf32>
    %166 = vector.extract_strided_slice %160 {offsets = [24, 0], sizes = [24, 32], strides = [1, 1]} : vector<48x32xf32> to vector<24x32xf32>
    %167 = arith.mulf %161, %163 : vector<24x32xf32>
    %cst_69 = arith.constant dense<0.000000e+00> : vector<24x32xf32>
    %168 = tpu.matmul %167, %0, %cst_69 {dimension_numbers = #tpu.dot_dimension_numbers<[1], [0], [0], [1], [0, 0, 1, 1], [], []>} : vector<24x32xf32>, vector<32x32xf32>, vector<24x32xf32> -> vector<24x32xf32>
    %169 = arith.mulf %161, %164 : vector<24x32xf32>
    %cst_70 = arith.constant dense<0.000000e+00> : vector<24x32xf32>
    %170 = tpu.matmul %169, %0, %cst_70 {dimension_numbers = #tpu.dot_dimension_numbers<[1], [0], [0], [1], [0, 0, 1, 1], [], []>} : vector<24x32xf32>, vector<32x32xf32>, vector<24x32xf32> -> vector<24x32xf32>
    %171 = arith.maximumf %168, %170 : vector<24x32xf32>
    %172 = arith.subf %168, %171 : vector<24x32xf32>
    %173 = math.exp %172 : vector<24x32xf32>
    %174 = arith.subf %170, %171 : vector<24x32xf32>
    %175 = math.exp %174 : vector<24x32xf32>
    %176 = arith.addf %173, %175 : vector<24x32xf32>
    %177 = tpu.reciprocal %176 {approx = true} : vector<24x32xf32> -> vector<24x32xf32>
    %178 = arith.mulf %173, %177 : vector<24x32xf32>
    %cst_71 = arith.constant dense<0.000000e+00> : vector<24x32xf32>
    %179 = tpu.matmul %178, %1, %cst_71 {dimension_numbers = #tpu.dot_dimension_numbers<[1], [0], [0], [1], [0, 0, 1, 1], [], []>} : vector<24x32xf32>, vector<32x32xf32>, vector<24x32xf32> -> vector<24x32xf32>
    %180 = arith.mulf %179, %165 : vector<24x32xf32>
    %181 = arith.mulf %175, %177 : vector<24x32xf32>
    %cst_72 = arith.constant dense<0.000000e+00> : vector<24x32xf32>
    %182 = tpu.matmul %181, %1, %cst_72 {dimension_numbers = #tpu.dot_dimension_numbers<[1], [0], [0], [1], [0, 0, 1, 1], [], []>} : vector<24x32xf32>, vector<32x32xf32>, vector<24x32xf32> -> vector<24x32xf32>
    %183 = arith.mulf %182, %166 : vector<24x32xf32>
    %184 = arith.addf %180, %183 : vector<24x32xf32>
    %185 = arith.mulf %162, %163 : vector<24x32xf32>
    %cst_73 = arith.constant dense<0.000000e+00> : vector<24x32xf32>
    %186 = tpu.matmul %185, %0, %cst_73 {dimension_numbers = #tpu.dot_dimension_numbers<[1], [0], [0], [1], [0, 0, 1, 1], [], []>} : vector<24x32xf32>, vector<32x32xf32>, vector<24x32xf32> -> vector<24x32xf32>
    %187 = arith.mulf %162, %164 : vector<24x32xf32>
    %cst_74 = arith.constant dense<0.000000e+00> : vector<24x32xf32>
    %188 = tpu.matmul %187, %0, %cst_74 {dimension_numbers = #tpu.dot_dimension_numbers<[1], [0], [0], [1], [0, 0, 1, 1], [], []>} : vector<24x32xf32>, vector<32x32xf32>, vector<24x32xf32> -> vector<24x32xf32>
    %189 = arith.maximumf %186, %188 : vector<24x32xf32>
    %190 = arith.subf %186, %189 : vector<24x32xf32>
    %191 = math.exp %190 : vector<24x32xf32>
    %192 = arith.subf %188, %189 : vector<24x32xf32>
    %193 = math.exp %192 : vector<24x32xf32>
    %194 = arith.addf %191, %193 : vector<24x32xf32>
    %195 = tpu.reciprocal %194 {approx = true} : vector<24x32xf32> -> vector<24x32xf32>
    %196 = arith.mulf %191, %195 : vector<24x32xf32>
    %cst_75 = arith.constant dense<0.000000e+00> : vector<24x32xf32>
    %197 = tpu.matmul %196, %1, %cst_75 {dimension_numbers = #tpu.dot_dimension_numbers<[1], [0], [0], [1], [0, 0, 1, 1], [], []>} : vector<24x32xf32>, vector<32x32xf32>, vector<24x32xf32> -> vector<24x32xf32>
    %198 = arith.mulf %197, %165 : vector<24x32xf32>
    %199 = arith.mulf %193, %195 : vector<24x32xf32>
    %cst_76 = arith.constant dense<0.000000e+00> : vector<24x32xf32>
    %200 = tpu.matmul %199, %1, %cst_76 {dimension_numbers = #tpu.dot_dimension_numbers<[1], [0], [0], [1], [0, 0, 1, 1], [], []>} : vector<24x32xf32>, vector<32x32xf32>, vector<24x32xf32> -> vector<24x32xf32>
    %201 = arith.mulf %200, %166 : vector<24x32xf32>
    %202 = arith.addf %198, %201 : vector<24x32xf32>
    %203 = tpu.concatenate %184, %202 in 0 : vector<24x32xf32>, vector<24x32xf32> -> vector<48x32xf32>
    %c504 = arith.constant 504 : index
    %c0_77 = arith.constant 0 : index
    %204 = vector.load %arg1[%c504, %c0_77] : memref<672x32xf32, #tpu.memory_space<vmem>>, vector<32x32xf32>
    %cst_78 = arith.constant dense<0.000000e+00> : vector<48x32xf32>
    %205 = tpu.matmul %203, %204, %cst_78 {dimension_numbers = #tpu.dot_dimension_numbers<[1], [0], [0], [1], [0, 0, 1, 1], [], []>} : vector<48x32xf32>, vector<32x32xf32>, vector<48x32xf32> -> vector<48x32xf32>
    %c624 = arith.constant 624 : index
    %c0_79 = arith.constant 0 : index
    %206 = vector.load %arg1[%c624, %c0_79] : memref<672x32xf32, #tpu.memory_space<vmem>>, vector<1x32xf32>
    %207 = vector.broadcast %206 : vector<1x32xf32> to vector<48x32xf32>
    %208 = arith.addf %205, %207 : vector<48x32xf32>
    %209 = arith.addf %145, %208 : vector<48x32xf32>
    %c640 = arith.constant 640 : index
    %c0_80 = arith.constant 0 : index
    %210 = vector.load %arg1[%c640, %c0_80] : memref<672x32xf32, #tpu.memory_space<vmem>>, vector<1x32xf32>
    %c648 = arith.constant 648 : index
    %c0_81 = arith.constant 0 : index
    %211 = vector.load %arg1[%c648, %c0_81] : memref<672x32xf32, #tpu.memory_space<vmem>>, vector<1x32xf32>
    %cst_82 = arith.constant dense<0.000000e+00> : vector<48xf32>
    %212 = vector.multi_reduction <add>, %209, %cst_82 [1] : vector<48x32xf32> to vector<48xf32>
    %213 = vector.shape_cast %212 : vector<48xf32> to vector<48x1xf32>
    %cst_83 = arith.constant 3.200000e+01 : f32
    %214 = vector.broadcast %cst_83 : f32 to vector<48x1xf32>
    %215 = arith.divf %213, %214 : vector<48x1xf32>
    %216 = vector.broadcast %215 : vector<48x1xf32> to vector<48x32xf32>
    %217 = arith.subf %209, %216 : vector<48x32xf32>
    %218 = arith.mulf %217, %217 : vector<48x32xf32>
    %cst_84 = arith.constant dense<0.000000e+00> : vector<48xf32>
    %219 = vector.multi_reduction <add>, %218, %cst_84 [1] : vector<48x32xf32> to vector<48xf32>
    %220 = vector.shape_cast %219 : vector<48xf32> to vector<48x1xf32>
    %cst_85 = arith.constant 3.200000e+01 : f32
    %221 = vector.broadcast %cst_85 : f32 to vector<48x1xf32>
    %222 = arith.divf %220, %221 : vector<48x1xf32>
    %223 = vector.broadcast %215 : vector<48x1xf32> to vector<48x32xf32>
    %224 = arith.subf %209, %223 : vector<48x32xf32>
    %cst_86 = arith.constant 9.99999974E-6 : f32
    %225 = vector.broadcast %cst_86 : f32 to vector<48x1xf32>
    %226 = arith.addf %222, %225 : vector<48x1xf32>
    %227 = math.rsqrt %226 : vector<48x1xf32>
    %228 = vector.broadcast %227 : vector<48x1xf32> to vector<48x32xf32>
    %229 = arith.mulf %224, %228 : vector<48x32xf32>
    %230 = vector.broadcast %210 : vector<1x32xf32> to vector<48x32xf32>
    %231 = arith.mulf %229, %230 : vector<48x32xf32>
    %232 = vector.broadcast %211 : vector<1x32xf32> to vector<48x32xf32>
    %233 = arith.addf %231, %232 : vector<48x32xf32>
    %c40_87 = arith.constant 40 : index
    %c0_88 = arith.constant 0 : index
    %234 = vector.load %arg2[%c40_87, %c0_88] : memref<80x64xf32, #tpu.memory_space<vmem>>, vector<32x64xf32>
    %cst_89 = arith.constant dense<0.000000e+00> : vector<48x64xf32>
    %235 = tpu.matmul %233, %234, %cst_89 {dimension_numbers = #tpu.dot_dimension_numbers<[1], [0], [0], [1], [0, 0, 1, 1], [], []>} : vector<48x32xf32>, vector<32x64xf32>, vector<48x64xf32> -> vector<48x64xf32>
    %c72 = arith.constant 72 : index
    %c0_90 = arith.constant 0 : index
    %236 = vector.load %arg2[%c72, %c0_90] : memref<80x64xf32, #tpu.memory_space<vmem>>, vector<1x64xf32>
    %237 = vector.broadcast %236 : vector<1x64xf32> to vector<48x64xf32>
    %238 = arith.addf %235, %237 : vector<48x64xf32>
    %cst_91 = arith.constant 0.000000e+00 : f32
    %239 = vector.broadcast %cst_91 : f32 to vector<48x64xf32>
    %240 = arith.maximumf %238, %239 : vector<48x64xf32>
    %c536 = arith.constant 536 : index
    %c0_92 = arith.constant 0 : index
    %241 = vector.load %arg1[%c536, %c0_92] : memref<672x32xf32, #tpu.memory_space<vmem>>, vector<64x32xf32>
    %cst_93 = arith.constant dense<0.000000e+00> : vector<48x32xf32>
    %242 = tpu.matmul %240, %241, %cst_93 {dimension_numbers = #tpu.dot_dimension_numbers<[1], [0], [0], [1], [0, 0, 1, 1], [], []>} : vector<48x64xf32>, vector<64x32xf32>, vector<48x32xf32> -> vector<48x32xf32>
    %c632 = arith.constant 632 : index
    %c0_94 = arith.constant 0 : index
    %243 = vector.load %arg1[%c632, %c0_94] : memref<672x32xf32, #tpu.memory_space<vmem>>, vector<1x32xf32>
    %244 = vector.broadcast %243 : vector<1x32xf32> to vector<48x32xf32>
    %245 = arith.addf %242, %244 : vector<48x32xf32>
    %246 = arith.addf %233, %245 : vector<48x32xf32>
    %c656 = arith.constant 656 : index
    %c0_95 = arith.constant 0 : index
    %247 = vector.load %arg1[%c656, %c0_95] : memref<672x32xf32, #tpu.memory_space<vmem>>, vector<1x32xf32>
    %c664 = arith.constant 664 : index
    %c0_96 = arith.constant 0 : index
    %248 = vector.load %arg1[%c664, %c0_96] : memref<672x32xf32, #tpu.memory_space<vmem>>, vector<1x32xf32>
    %cst_97 = arith.constant dense<0.000000e+00> : vector<48xf32>
    %249 = vector.multi_reduction <add>, %246, %cst_97 [1] : vector<48x32xf32> to vector<48xf32>
    %250 = vector.shape_cast %249 : vector<48xf32> to vector<48x1xf32>
    %cst_98 = arith.constant 3.200000e+01 : f32
    %251 = vector.broadcast %cst_98 : f32 to vector<48x1xf32>
    %252 = arith.divf %250, %251 : vector<48x1xf32>
    %253 = vector.broadcast %252 : vector<48x1xf32> to vector<48x32xf32>
    %254 = arith.subf %246, %253 : vector<48x32xf32>
    %255 = arith.mulf %254, %254 : vector<48x32xf32>
    %cst_99 = arith.constant dense<0.000000e+00> : vector<48xf32>
    %256 = vector.multi_reduction <add>, %255, %cst_99 [1] : vector<48x32xf32> to vector<48xf32>
    %257 = vector.shape_cast %256 : vector<48xf32> to vector<48x1xf32>
    %cst_100 = arith.constant 3.200000e+01 : f32
    %258 = vector.broadcast %cst_100 : f32 to vector<48x1xf32>
    %259 = arith.divf %257, %258 : vector<48x1xf32>
    %260 = vector.broadcast %252 : vector<48x1xf32> to vector<48x32xf32>
    %261 = arith.subf %246, %260 : vector<48x32xf32>
    %cst_101 = arith.constant 9.99999974E-6 : f32
    %262 = vector.broadcast %cst_101 : f32 to vector<48x1xf32>
    %263 = arith.addf %259, %262 : vector<48x1xf32>
    %264 = math.rsqrt %263 : vector<48x1xf32>
    %265 = vector.broadcast %264 : vector<48x1xf32> to vector<48x32xf32>
    %266 = arith.mulf %261, %265 : vector<48x32xf32>
    %267 = vector.broadcast %247 : vector<1x32xf32> to vector<48x32xf32>
    %268 = arith.mulf %266, %267 : vector<48x32xf32>
    %269 = vector.broadcast %248 : vector<1x32xf32> to vector<48x32xf32>
    %270 = arith.addf %268, %269 : vector<48x32xf32>
    %271 = vector.extract_strided_slice %270 {offsets = [16, 0], sizes = [1, 32], strides = [1, 1]} : vector<48x32xf32> to vector<1x32xf32>
    %272 = vector.extract_strided_slice %270 {offsets = [40, 0], sizes = [1, 32], strides = [1, 1]} : vector<48x32xf32> to vector<1x32xf32>
    %273 = tpu.concatenate %271, %272 in 0 : vector<1x32xf32>, vector<1x32xf32> -> vector<2x32xf32>
    %c0_102 = arith.constant 0 : index
    %c0_103 = arith.constant 0 : index
    %274 = vector.load %arg3[%c0_102, %c0_103] : memref<40x128xf32, #tpu.memory_space<vmem>>, vector<32x128xf32>
    %cst_104 = arith.constant dense<0.000000e+00> : vector<2x128xf32>
    %275 = tpu.matmul %273, %274, %cst_104 {dimension_numbers = #tpu.dot_dimension_numbers<[1], [0], [0], [1], [0, 0, 1, 1], [], []>} : vector<2x32xf32>, vector<32x128xf32>, vector<2x128xf32> -> vector<2x128xf32>
    %c32_105 = arith.constant 32 : index
    %c0_106 = arith.constant 0 : index
    %276 = vector.load %arg3[%c32_105, %c0_106] : memref<40x128xf32, #tpu.memory_space<vmem>>, vector<1x128xf32>
    %277 = vector.broadcast %276 : vector<1x128xf32> to vector<2x128xf32>
    %278 = arith.addf %275, %277 : vector<2x128xf32>
    %c0_107 = arith.constant 0 : index
    %c0_108 = arith.constant 0 : index
    %279 = vector.load %arg4[%c0_107, %c0_108] : memref<2x128xf32, #tpu.memory_space<vmem>>, vector<2x128xf32>
    tpu.vector_store %arg4[%c0_107, %c0_108], %278 {strides = array<i32>} : memref<2x128xf32, #tpu.memory_space<vmem>>, vector<2x128xf32>,
    return
  }
}

</mosaic_0001>

<llo_original>
// kernel: vit_forward.1
$region0: #{vit_forward.1}
  #allocation0 [shape = 'u32[]', space=smem, size = 0x4, offset = 0x4, fixed_abs, tag = 'smem constant byte address 0x4 - core index']
  #allocation1 [shape = 'u32[144,128]{1,0:T(1,128)}', space=vmem, size = 0x12000, scoped, tag = 'internal scratch']
  #allocation2 [shape = 'f32[48,32]{1,0:T(8,128)}', space=vmem, size = 0x6000, scoped, tag = 'scratch operand']
  %s0 = inlined_call_operand.vmem [shape: f32[32,48], index: 0, kind: input, shape index: {}]
  %s1 = inlined_call_operand.vmem [shape: f32[672,32], index: 1, kind: input, shape index: {}]
  %s2 = inlined_call_operand.vmem [shape: f32[80,64], index: 2, kind: input, shape index: {}]
  %s3 = inlined_call_operand.vmem [shape: f32[40,128], index: 3, kind: input, shape index: {}]
  %s4 = inlined_call_operand.vmem [shape: f32[2,128], index: 4, kind: output, shape index: {}]
  %s5 = sld [smem:[#allocation0]]
  $region26: #{vit_forward.1} parent=0
    _
  %s7 = ssub.s32 1, %s5
  %s8 = scalar_select 0, %s7, %s5
  // Predicated region
  $region2: #{vit_forward.1} parent=0 // pred_check
    _
  $region3: #{vit_forward.1} parent=0 // pred_check_branch
    %10 = sbr.rel (0) target = $region5
  $region4: #{vit_forward.1} parent=0 // pred_region
    _
  $region5: #{vit_forward.1} parent=0 // pred_fallthru
    _
  // Predicated region
  $region6: #{vit_forward.1} parent=0 // pred_check
    _
  $region7: #{vit_forward.1} parent=0 // pred_check_branch
    %12 = sbr.rel (0) target = $region9
  $region8: #{vit_forward.1} parent=0 // pred_region
    _
  $region9: #{vit_forward.1} parent=0 // pred_fallthru
    _
  // Predicated region
  $region10: #{vit_forward.1} parent=0 // pred_check
    _
  $region11: #{vit_forward.1} parent=0 // pred_check_branch
    %14 = sbr.rel (0) target = $region13
  $region12: #{vit_forward.1} parent=0 // pred_region
    _
  $region13: #{vit_forward.1} parent=0 // pred_fallthru
    _
  // Predicated region
  $region14: #{vit_forward.1} parent=0 // pred_check
    _
  $region15: #{vit_forward.1} parent=0 // pred_check_branch
    %16 = sbr.rel (0) target = $region17
  $region16: #{vit_forward.1} parent=0 // pred_region
    _
  $region17: #{vit_forward.1} parent=0 // pred_fallthru
    _
  %v17 = vld [vmem:[%s1 + $0x50] sm:$0xff]
  %v18 = vld [vmem:[%s1 + $0x58] sm:$0xff]
  %v19 = vld [vmem:[%s1 + $0x60] sm:$0xff]
  %v20 = vld [vmem:[%s1 + $0x68] sm:$0xff]
  %v21 = vld [vmem:[%s1 + $0x70] sm:$0xff]
  %v22 = vld [vmem:[%s1 + $0x78] sm:$0xff]
  %v23 = vld [vmem:[%s1 + $0x80] sm:$0xff]
  %v24 = vld [vmem:[%s1 + $0x88] sm:$0xff]
  %vm25 = vcmask 261120
  %26 = vst.msk [vmem:[#allocation2] sm:$0xff] %vm25, 0.0
  %27 = vst.msk [vmem:[#allocation2 + $0x8] sm:$0xff] %vm25, 0.0
  %28 = vst.msk [vmem:[#allocation2 + $0x10] sm:$0xff] %vm25, 0.0
  %29 = vst.msk [vmem:[#allocation2 + $0x18] sm:$0xff] %vm25, 0.0
  %30 = vst.msk [vmem:[#allocation2 + $0x20] sm:$0xff] %vm25, 0.0
  %31 = vst.msk [vmem:[#allocation2 + $0x28] sm:$0xff] %vm25, 0.0
  %v32 = vld [vmem:[%s0] sm:$0xff]
  %v33 = vld [vmem:[%s0 + $0x8] sm:$0xff]
  %v34 = vld [vmem:[%s0 + $0x10] sm:$0xff]
  %v35 = vld [vmem:[%s0 + $0x18] sm:$0xff]
  %v36 = vld [vmem:[%s1] sm:$0xff]
  %v37 = vld [vmem:[%s1 + $0x8] sm:$0xff]
  %v38 = vld [vmem:[%s1 + $0x10] sm:$0xff]
  %v39 = vld [vmem:[%s1 + $0x18] sm:$0xff]
  %v40 = vld [vmem:[%s1 + $0x20] sm:$0xff]
  %v41 = vld [vmem:[%s1 + $0x28] sm:$0xff]
  %v42 = vld [vmem:[%s1 + $0x30] sm:$0x1]
  %v43 = vlaneseq
  %v44 = vshrl.u32 %v43, 7
  %v45 = vsub.s32 0, %v44
  %v46 = vrot.slane %v42, %v45
  %vm47 = vcmask 392192
  %v49 = vsel %vm47, %v32, 0
  %v52 = vsel %vm47, %v33, 0
  %v55 = vsel %vm47, %v34, 0
  %v58 = vsel %vm47, %v35, 0
  %60 = vmatprep.subr.mxu0 0.0
  %61 = vmatpush1.msra.mxu0 %v36
  %62 = vmatprep.subr.mxu0 0.0
  %63 = vmatpush1.msra.mxu0 %v37
  %64 = vmatprep.subr.mxu0 0.0
  %65 = vmatpush1.msra.mxu0 %v38
  %66 = vmatprep.subr.mxu0 0.0
  %67 = vmatpush1.msra.mxu0 %v39
  %68 = vmatprep.subr.mxu0 0.0
  %69 = vmatpush1.msra.mxu0 %v40
  %70 = vmatprep.subr.mxu0 0.0
  %71 = vmatpush1.msra.mxu0 %v41
  %72 = vmatprep.subr.mxu0 0.0
  %73 = vmatpush1.msra.mxu0 0.0
  %74 = vmatprep.subr.mxu0 0.0
  %75 = vmatpush1.msra.mxu0 0.0
  %76 = vmatprep.subr.mxu0 0.0
  %77 = vmatpush1.msra.mxu0 0.0
  %78 = vmatprep.subr.mxu0 0.0
  %79 = vmatpush1.msra.mxu0 0.0
  %80 = vmatprep.subr.mxu0 0.0
  %81 = vmatpush1.msra.mxu0 0.0
  %82 = vmatprep.subr.mxu0 0.0
  %83 = vmatpush1.msra.mxu0 0.0
  %84 = vmatprep.subr.mxu0 0.0
  %85 = vmatpush1.msra.mxu0 0.0
  %86 = vmatprep.subr.mxu0 0.0
  %87 = vmatpush1.msra.mxu0 0.0
  %88 = vmatprep.subr.mxu0 0.0
  %89 = vmatpush1.msra.mxu0 0.0
  %90 = vmatprep.subr.mxu0 0.0
  %91 = vmatpush1.msra.mxu0 0.0
  %92 = vmatprep.subr.mxu0 0.0
  %93 = vmatpush1.msra.mxu0 0.0
  %94 = vmatprep.subr.mxu0 0.0
  %95 = vmatpush1.msra.mxu0 0.0
  %96 = vmatprep.subr.mxu0 0.0
  %97 = vmatpush1.msra.mxu0 0.0
  %98 = vmatprep.subr.mxu0 0.0
  %99 = vmatpush1.msra.mxu0 0.0
  %100 = vmatprep.subr.mxu0 0.0
  %101 = vmatpush1.msra.mxu0 0.0
  %102 = vmatprep.subr.mxu0 0.0
  %103 = vmatpush1.msra.mxu0 0.0
  %104 = vmatprep.subr.mxu0 0.0
  %105 = vmatpush1.msra.mxu0 0.0
  %106 = vmatprep.subr.mxu0 0.0
  %107 = vmatpush1.msra.mxu0 0.0
  %108 = vmatprep.subr.mxu0 0.0
  %109 = vmatpush1.msra.mxu0 0.0
  %110 = vmatprep.subr.mxu0 0.0
  %111 = vmatpush1.msra.mxu0 0.0
  %112 = vmatprep.subr.mxu0 0.0
  %113 = vmatpush1.msra.mxu0 0.0
  %114 = vmatprep.subr.mxu0 0.0
  %115 = vmatpush1.msra.mxu0 0.0
  %116 = vmatprep.subr.mxu0 0.0
  %117 = vmatpush1.msra.mxu0 0.0
  %118 = vmatprep.subr.mxu0 0.0
  %119 = vmatpush1.msra.mxu0 0.0
  %120 = vmatprep.subr.mxu0 0.0
  %121 = vmatpush1.msra.mxu0 0.0
  %122 = vmatprep.subr.mxu0 0.0
  %123 = vmatpush1.msra.mxu0 0.0
  %124 = vmatprep.mubr.f32.mxu0 0.0
  %125 = vmatmul.mubr.f32.gmra.mrb[0].mxu0 %v49
  %v126 = vpop.f32.mrb[0].mxu0
  %v127 = vadd.f32 %v46, %v126
  %v128 = vpop.f32.mrb[0].mxu0
  %129 = vmatprep.mubr.f32.mxu0 0.0
  %130 = vmatmul.mubr.f32.gmra.mrb[0].mxu0 %v52
  %v131 = vpop.f32.mrb[0].mxu0
  %v132 = vadd.f32 %v46, %v131
  %v133 = vpop.f32.mrb[0].mxu0
  %134 = vmatprep.mubr.f32.mxu0 0.0
  %135 = vmatmul.mubr.f32.gmra.mrb[0].mxu0 %v55
  %v136 = vpop.f32.mrb[0].mxu0
  %v137 = vadd.f32 %v46, %v136
  %v138 = vpop.f32.mrb[0].mxu0
  %139 = vmatprep.mubr.f32.mxu0 0.0
  %140 = vmatmul.mubr.f32.gmra.mrb[0].mxu0 %v58
  %v141 = vpop.f32.mrb[0].mxu0
  %v142 = vadd.f32 %v46, %v141
  %v143 = vpop.f32.mrb[0].mxu0
  %144 = vdwg.mxu0
  %v145 = vld [vmem:[%s1 + $0x40] sm:$0xff]
  %v146 = vld [vmem:[%s1 + $0x48] sm:$0xff]
  %v147 = vld [vmem:[%s1 + $0x38] sm:$0x1]
  %v148 = vadd.f32 %v127, %v145
  %v149 = vadd.f32 %v132, %v146
  %150 = vst.msk [vmem:[#allocation2] sm:$0xff] %vm25, %v148
  %151 = vst.msk [vmem:[#allocation2 + $0x8] sm:$0xff] %vm25, %v149
  %vm152 = vcmask 253952
  %153 = vst.msk [vmem:[#allocation2 + $0x10] sm:$0x1] %vm152, %v147
  %v154 = vadd.f32 %v137, %v145
  %v155 = vadd.f32 %v142, %v146
  %156 = vst.msk [vmem:[#allocation2 + $0x18] sm:$0xff] %vm25, %v154
  %157 = vst.msk [vmem:[#allocation2 + $0x20] sm:$0xff] %vm25, %v155
  %158 = vst.msk [vmem:[#allocation2 + $0x28] sm:$0x1] %vm152, %v147
  %v159 = vld [vmem:[#allocation2] sm:$0xff]
  %v160 = vld [vmem:[#allocation2 + $0x8] sm:$0xff]
  %v161 = vld [vmem:[#allocation2 + $0x10] sm:$0xff]
  %v162 = vld [vmem:[#allocation2 + $0x18] sm:$0xff]
  %v163 = vld [vmem:[#allocation2 + $0x20] sm:$0xff]
  %v164 = vld [vmem:[#allocation2 + $0x28] sm:$0xff]
  %v165 = vld [vmem:[%s1 + $0x90] sm:$0xff]
  %v166 = vld [vmem:[%s1 + $0x98] sm:$0xff]
  %v167 = vld [vmem:[%s1 + $0xa0] sm:$0xff]
  %v168 = vld [vmem:[%s1 + $0xa8] sm:$0xff]
  %v169 = vld [vmem:[%s1 + $0x150] sm:$0x1]
  %v170 = vlaneseq
  %v171 = vshrl.u32 %v170, 7
  %v172 = vsub.s32 0, %v171
  %v173 = vrot.slane %v169, %v172
  %v175 = vsel %vm25, %v159, 0
  %v178 = vsel %vm25, %v160, 0
  %v181 = vsel %vm25, %v161, 0
  %v184 = vsel %vm25, %v162, 0
  %v187 = vsel %vm25, %v163, 0
  %v190 = vsel %vm25, %v164, 0
  %192 = vmatprep.subr.mxu0 0.0
  %193 = vmatpush1.msra.mxu0 %v165
  %194 = vmatprep.subr.mxu0 0.0
  %195 = vmatpush1.msra.mxu0 %v166
  %196 = vmatprep.subr.mxu0 0.0
  %197 = vmatpush1.msra.mxu0 %v167
  %198 = vmatprep.subr.mxu0 0.0
  %199 = vmatpush1.msra.mxu0 %v168
  %200 = vmatprep.subr.mxu0 0.0
  %201 = vmatpush1.msra.mxu0 0.0
  %202 = vmatprep.subr.mxu0 0.0
  %203 = vmatpush1.msra.mxu0 0.0
  %204 = vmatprep.subr.mxu0 0.0
  %205 = vmatpush1.msra.mxu0 0.0
  %206 = vmatprep.subr.mxu0 0.0
  %207 = vmatpush1.msra.mxu0 0.0
  %208 = vmatprep.subr.mxu0 0.0
  %209 = vmatpush1.msra.mxu0 0.0
  %210 = vmatprep.subr.mxu0 0.0
  %211 = vmatpush1.msra.mxu0 0.0
  %212 = vmatprep.subr.mxu0 0.0
  %213 = vmatpush1.msra.mxu0 0.0
  %214 = vmatprep.subr.mxu0 0.0
  %215 = vmatpush1.msra.mxu0 0.0
  %216 = vmatprep.subr.mxu0 0.0
  %217 = vmatpush1.msra.mxu0 0.0
  %218 = vmatprep.subr.mxu0 0.0
  %219 = vmatpush1.msra.mxu0 0.0
  %220 = vmatprep.subr.mxu0 0.0
  %221 = vmatpush1.msra.mxu0 0.0
  %222 = vmatprep.subr.mxu0 0.0
  %223 = vmatpush1.msra.mxu0 0.0
  %224 = vmatprep.subr.mxu0 0.0
  %225 = vmatpush1.msra.mxu0 0.0
  %226 = vmatprep.subr.mxu0 0.0
  %227 = vmatpush1.msra.mxu0 0.0
  %228 = vmatprep.subr.mxu0 0.0
  %229 = vmatpush1.msra.mxu0 0.0
  %230 = vmatprep.subr.mxu0 0.0
  %231 = vmatpush1.msra.mxu0 0.0
  %232 = vmatprep.subr.mxu0 0.0
  %233 = vmatpush1.msra.mxu0 0.0
  %234 = vmatprep.subr.mxu0 0.0
  %235 = vmatpush1.msra.mxu0 0.0
  %236 = vmatprep.subr.mxu0 0.0
  %237 = vmatpush1.msra.mxu0 0.0
  %238 = vmatprep.subr.mxu0 0.0
  %239 = vmatpush1.msra.mxu0 0.0
  %240 = vmatprep.subr.mxu0 0.0
  %241 = vmatpush1.msra.mxu0 0.0
  %242 = vmatprep.subr.mxu0 0.0
  %243 = vmatpush1.msra.mxu0 0.0
  %244 = vmatprep.subr.mxu0 0.0
  %245 = vmatpush1.msra.mxu0 0.0
  %246 = vmatprep.subr.mxu0 0.0
  %247 = vmatpush1.msra.mxu0 0.0
  %248 = vmatprep.subr.mxu0 0.0
  %249 = vmatpush1.msra.mxu0 0.0
  %250 = vmatprep.subr.mxu0 0.0
  %251 = vmatpush1.msra.mxu0 0.0
  %252 = vmatprep.subr.mxu0 0.0
  %253 = vmatpush1.msra.mxu0 0.0
  %254 = vmatprep.subr.mxu0 0.0
  %255 = vmatpush1.msra.mxu0 0.0
  %256 = vmatprep.mubr.f32.mxu0 0.0
  %257 = vmatmul.mubr.f32.gmra.mrb[0].mxu0 %v175
  %v258 = vpop.f32.mrb[0].mxu0
  %v259 = vadd.f32 %v173, %v258
  %v260 = vpop.f32.mrb[0].mxu0
  %261 = vmatprep.mubr.f32.mxu0 0.0
  %262 = vmatmul.mubr.f32.gmra.mrb[0].mxu0 %v178
  %v263 = vpop.f32.mrb[0].mxu0
  %v264 = vadd.f32 %v173, %v263
  %v265 = vpop.f32.mrb[0].mxu0
  %266 = vmatprep.mubr.f32.mxu0 0.0
  %267 = vmatmul.mubr.f32.gmra.mrb[0].mxu0 %v181
  %v268 = vpop.f32.mrb[0].mxu0
  %v269 = vadd.f32 %v173, %v268
  %v270 = vpop.f32.mrb[0].mxu0
  %271 = vmatprep.mubr.f32.mxu0 0.0
  %272 = vmatmul.mubr.f32.gmra.mrb[0].mxu0 %v184
  %v273 = vpop.f32.mrb[0].mxu0
  %v274 = vadd.f32 %v173, %v273
  %v275 = vpop.f32.mrb[0].mxu0
  %276 = vmatprep.mubr.f32.mxu0 0.0
  %277 = vmatmul.mubr.f32.gmra.mrb[0].mxu0 %v187
  %v278 = vpop.f32.mrb[0].mxu0
  %v279 = vadd.f32 %v173, %v278
  %v280 = vpop.f32.mrb[0].mxu0
  %281 = vmatprep.mubr.f32.mxu0 0.0
  %282 = vmatmul.mubr.f32.gmra.mrb[0].mxu0 %v190
  %v283 = vpop.f32.mrb[0].mxu0
  %v284 = vadd.f32 %v173, %v283
  %v285 = vpop.f32.mrb[0].mxu0
  %286 = vdwg.mxu0
  %v287 = vld [vmem:[%s1 + $0xb0] sm:$0xff]
  %v288 = vld [vmem:[%s1 + $0xb8] sm:$0xff]
  %v289 = vld [vmem:[%s1 + $0xc0] sm:$0xff]
  %v290 = vld [vmem:[%s1 + $0xc8] sm:$0xff]
  %v291 = vld [vmem:[%s1 + $0x158] sm:$0x1]
  %v292 = vlaneseq
  %v293 = vshrl.u32 %v292, 7
  %v294 = vsub.s32 0, %v293
  %v295 = vrot.slane %v291, %v294
  %296 = vmatprep.subr.mxu0 0.0
  %297 = vmatpush1.msra.mxu0 %v287
  %298 = vmatprep.subr.mxu0 0.0
  %299 = vmatpush1.msra.mxu0 %v288
  %300 = vmatprep.subr.mxu0 0.0
  %301 = vmatpush1.msra.mxu0 %v289
  %302 = vmatprep.subr.mxu0 0.0
  %303 = vmatpush1.msra.mxu0 %v290
  %304 = vmatprep.subr.mxu0 0.0
  %305 = vmatpush1.msra.mxu0 0.0
  %306 = vmatprep.subr.mxu0 0.0
  %307 = vmatpush1.msra.mxu0 0.0
  %308 = vmatprep.subr.mxu0 0.0
  %309 = vmatpush1.msra.mxu0 0.0
  %310 = vmatprep.subr.mxu0 0.0
  %311 = vmatpush1.msra.mxu0 0.0
  %312 = vmatprep.subr.mxu0 0.0
  %313 = vmatpush1.msra.mxu0 0.0
  %314 = vmatprep.subr.mxu0 0.0
  %315 = vmatpush1.msra.mxu0 0.0
  %316 = vmatprep.subr.mxu0 0.0
  %317 = vmatpush1.msra.mxu0 0.0
  %318 = vmatprep.subr.mxu0 0.0
  %319 = vmatpush1.msra.mxu0 0.0
  %320 = vmatprep.subr.mxu0 0.0
  %321 = vmatpush1.msra.mxu0 0.0
  %322 = vmatprep.subr.mxu0 0.0
  %323 = vmatpush1.msra.mxu0 0.0
  %324 = vmatprep.subr.mxu0 0.0
  %325 = vmatpush1.msra.mxu0 0.0
  %326 = vmatprep.subr.mxu0 0.0
  %327 = vmatpush1.msra.mxu0 0.0
  %328 = vmatprep.subr.mxu0 0.0
  %329 = vmatpush1.msra.mxu0 0.0
  %330 = vmatprep.subr.mxu0 0.0
  %331 = vmatpush1.msra.mxu0 0.0
  %332 = vmatprep.subr.mxu0 0.0
  %333 = vmatpush1.msra.mxu0 0.0
  %334 = vmatprep.subr.mxu0 0.0
  %335 = vmatpush1.msra.mxu0 0.0
  %336 = vmatprep.subr.mxu0 0.0
  %337 = vmatpush1.msra.mxu0 0.0
  %338 = vmatprep.subr.mxu0 0.0
  %339 = vmatpush1.msra.mxu0 0.0
  %340 = vmatprep.subr.mxu0 0.0
  %341 = vmatpush1.msra.mxu0 0.0
  %342 = vmatprep.subr.mxu0 0.0
  %343 = vmatpush1.msra.mxu0 0.0
  %344 = vmatprep.subr.mxu0 0.0
  %345 = vmatpush1.msra.mxu0 0.0
  %346 = vmatprep.subr.mxu0 0.0
  %347 = vmatpush1.msra.mxu0 0.0
  %348 = vmatprep.subr.mxu0 0.0
  %349 = vmatpush1.msra.mxu0 0.0
  %350 = vmatprep.subr.mxu0 0.0
  %351 = vmatpush1.msra.mxu0 0.0
  %352 = vmatprep.subr.mxu0 0.0
  %353 = vmatpush1.msra.mxu0 0.0
  %354 = vmatprep.subr.mxu0 0.0
  %355 = vmatpush1.msra.mxu0 0.0
  %356 = vmatprep.subr.mxu0 0.0
  %357 = vmatpush1.msra.mxu0 0.0
  %358 = vmatprep.subr.mxu0 0.0
  %359 = vmatpush1.msra.mxu0 0.0
  %360 = vmatprep.mubr.f32.mxu0 0.0
  %361 = vmatmul.mubr.f32.gmra.mrb[0].mxu0 %v175
  %v362 = vpop.f32.mrb[0].mxu0
  %v363 = vadd.f32 %v295, %v362
  %v364 = vpop.f32.mrb[0].mxu0
  %365 = vmatprep.mubr.f32.mxu0 0.0
  %366 = vmatmul.mubr.f32.gmra.mrb[0].mxu0 %v178
  %v367 = vpop.f32.mrb[0].mxu0
  %v368 = vadd.f32 %v295, %v367
  %v369 = vpop.f32.mrb[0].mxu0
  %370 = vmatprep.mubr.f32.mxu0 0.0
  %371 = vmatmul.mubr.f32.gmra.mrb[0].mxu0 %v181
  %v372 = vpop.f32.mrb[0].mxu0
  %v373 = vadd.f32 %v295, %v372
  %v374 = vpop.f32.mrb[0].mxu0
  %375 = vmatprep.mubr.f32.mxu0 0.0
  %376 = vmatmul.mubr.f32.gmra.mrb[0].mxu0 %v184
  %v377 = vpop.f32.mrb[0].mxu0
  %v378 = vadd.f32 %v295, %v377
  %v379 = vpop.f32.mrb[0].mxu0
  %380 = vmatprep.mubr.f32.mxu0 0.0
  %381 = vmatmul.mubr.f32.gmra.mrb[0].mxu0 %v187
  %v382 = vpop.f32.mrb[0].mxu0
  %v383 = vadd.f32 %v295, %v382
  %v384 = vpop.f32.mrb[0].mxu0
  %385 = vmatprep.mubr.f32.mxu0 0.0
  %386 = vmatmul.mubr.f32.gmra.mrb[0].mxu0 %v190
  %v387 = vpop.f32.mrb[0].mxu0
  %v388 = vadd.f32 %v295, %v387
  %v389 = vpop.f32.mrb[0].mxu0
  %390 = vdwg.mxu0
  %v391 = vld [vmem:[%s1 + $0xd0] sm:$0xff]
  %v392 = vld [vmem:[%s1 + $0xd8] sm:$0xff]
  %v393 = vld [vmem:[%s1 + $0xe0] sm:$0xff]
  %v394 = vld [vmem:[%s1 + $0xe8] sm:$0xff]
  %v395 = vld [vmem:[%s1 + $0x160] sm:$0x1]
  %v396 = vlaneseq
  %v397 = vshrl.u32 %v396, 7
  %v398 = vsub.s32 0, %v397
  %v399 = vrot.slane %v395, %v398
  %400 = vmatprep.subr.mxu0 0.0
  %401 = vmatpush1.msra.mxu0 %v391
  %402 = vmatprep.subr.mxu0 0.0
  %403 = vmatpush1.msra.mxu0 %v392
  %404 = vmatprep.subr.mxu0 0.0
  %405 = vmatpush1.msra.mxu0 %v393
  %406 = vmatprep.subr.mxu0 0.0
  %407 = vmatpush1.msra.mxu0 %v394
  %408 = vmatprep.subr.mxu0 0.0
  %409 = vmatpush1.msra.mxu0 0.0
  %410 = vmatprep.subr.mxu0 0.0
  %411 = vmatpush1.msra.mxu0 0.0
  %412 = vmatprep.subr.mxu0 0.0
  %413 = vmatpush1.msra.mxu0 0.0
  %414 = vmatprep.subr.mxu0 0.0
  %415 = vmatpush1.msra.mxu0 0.0
  %416 = vmatprep.subr.mxu0 0.0
  %417 = vmatpush1.msra.mxu0 0.0
  %418 = vmatprep.subr.mxu0 0.0
  %419 = vmatpush1.msra.mxu0 0.0
  %420 = vmatprep.subr.mxu0 0.0
  %421 = vmatpush1.msra.mxu0 0.0
  %422 = vmatprep.subr.mxu0 0.0
  %423 = vmatpush1.msra.mxu0 0.0
  %424 = vmatprep.subr.mxu0 0.0
  %425 = vmatpush1.msra.mxu0 0.0
  %426 = vmatprep.subr.mxu0 0.0
  %427 = vmatpush1.msra.mxu0 0.0
  %428 = vmatprep.subr.mxu0 0.0
  %429 = vmatpush1.msra.mxu0 0.0
  %430 = vmatprep.subr.mxu0 0.0
  %431 = vmatpush1.msra.mxu0 0.0
  %432 = vmatprep.subr.mxu0 0.0
  %433 = vmatpush1.msra.mxu0 0.0
  %434 = vmatprep.subr.mxu0 0.0
  %435 = vmatpush1.msra.mxu0 0.0
  %436 = vmatprep.subr.mxu0 0.0
  %437 = vmatpush1.msra.mxu0 0.0
  %438 = vmatprep.subr.mxu0 0.0
  %439 = vmatpush1.msra.mxu0 0.0
  %440 = vmatprep.subr.mxu0 0.0
  %441 = vmatpush1.msra.mxu0 0.0
  %442 = vmatprep.subr.mxu0 0.0
  %443 = vmatpush1.msra.mxu0 0.0
  %444 = vmatprep.subr.mxu0 0.0
  %445 = vmatpush1.msra.mxu0 0.0
  %446 = vmatprep.subr.mxu0 0.0
  %447 = vmatpush1.msra.mxu0 0.0
  %448 = vmatprep.subr.mxu0 0.0
  %449 = vmatpush1.msra.mxu0 0.0
  %450 = vmatprep.subr.mxu0 0.0
  %451 = vmatpush1.msra.mxu0 0.0
  %452 = vmatprep.subr.mxu0 0.0
  %453 = vmatpush1.msra.mxu0 0.0
  %454 = vmatprep.subr.mxu0 0.0
  %455 = vmatpush1.msra.mxu0 0.0
  %456 = vmatprep.subr.mxu0 0.0
  %457 = vmatpush1.msra.mxu0 0.0
  %458 = vmatprep.subr.mxu0 0.0
  %459 = vmatpush1.msra.mxu0 0.0
  %460 = vmatprep.subr.mxu0 0.0
  %461 = vmatpush1.msra.mxu0 0.0
  %462 = vmatprep.subr.mxu0 0.0
  %463 = vmatpush1.msra.mxu0 0.0
  %464 = vmatprep.mubr.f32.mxu0 0.0
  %465 = vmatmul.mubr.f32.gmra.mrb[0].mxu0 %v175
  %v466 = vpop.f32.mrb[0].mxu0
  %v467 = vadd.f32 %v399, %v466
  %v468 = vpop.f32.mrb[0].mxu0
  %469 = vmatprep.mubr.f32.mxu0 0.0
  %470 = vmatmul.mubr.f32.gmra.mrb[0].mxu0 %v178
  %v471 = vpop.f32.mrb[0].mxu0
  %v472 = vadd.f32 %v399, %v471
  %v473 = vpop.f32.mrb[0].mxu0
  %474 = vmatprep.mubr.f32.mxu0 0.0
  %475 = vmatmul.mubr.f32.gmra.mrb[0].mxu0 %v181
  %v476 = vpop.f32.mrb[0].mxu0
  %v477 = vadd.f32 %v399, %v476
  %v478 = vpop.f32.mrb[0].mxu0
  %479 = vmatprep.mubr.f32.mxu0 0.0
  %480 = vmatmul.mubr.f32.gmra.mrb[0].mxu0 %v184
  %v481 = vpop.f32.mrb[0].mxu0
  %v482 = vadd.f32 %v399, %v481
  %v483 = vpop.f32.mrb[0].mxu0
  %484 = vmatprep.mubr.f32.mxu0 0.0
  %485 = vmatmul.mubr.f32.gmra.mrb[0].mxu0 %v187
  %v486 = vpop.f32.mrb[0].mxu0
  %v487 = vadd.f32 %v399, %v486
  %v488 = vpop.f32.mrb[0].mxu0
  %489 = vmatprep.mubr.f32.mxu0 0.0
  %490 = vmatmul.mubr.f32.gmra.mrb[0].mxu0 %v190
  %v491 = vpop.f32.mrb[0].mxu0
  %v492 = vadd.f32 %v399, %v491
  %v493 = vpop.f32.mrb[0].mxu0
  %494 = vdwg.mxu0
  %v495 = vmul.f32 %v259, %v363
  %v496 = vmul.f32 %v264, %v368
  %v497 = vmul.f32 %v269, %v373
  %v499 = vsel %vm25, %v495, 0
  %v502 = vsel %vm25, %v496, 0
  %v505 = vsel %vm25, %v497, 0
  %507 = vmatprep.subr.mxu0 0.0
  %508 = vmatpush1.msra.mxu0 %v17
  %509 = vmatprep.subr.mxu0 0.0
  %510 = vmatpush1.msra.mxu0 %v18
  %511 = vmatprep.subr.mxu0 0.0
  %512 = vmatpush1.msra.mxu0 %v19
  %513 = vmatprep.subr.mxu0 0.0
  %514 = vmatpush1.msra.mxu0 %v20
  %515 = vmatprep.subr.mxu0 0.0
  %516 = vmatpush1.msra.mxu0 0.0
  %517 = vmatprep.subr.mxu0 0.0
  %518 = vmatpush1.msra.mxu0 0.0
  %519 = vmatprep.subr.mxu0 0.0
  %520 = vmatpush1.msra.mxu0 0.0
  %521 = vmatprep.subr.mxu0 0.0
  %522 = vmatpush1.msra.mxu0 0.0
  %523 = vmatprep.subr.mxu0 0.0
  %524 = vmatpush1.msra.mxu0 0.0
  %525 = vmatprep.subr.mxu0 0.0
  %526 = vmatpush1.msra.mxu0 0.0
  %527 = vmatprep.subr.mxu0 0.0
  %528 = vmatpush1.msra.mxu0 0.0
  %529 = vmatprep.subr.mxu0 0.0
  %530 = vmatpush1.msra.mxu0 0.0
  %531 = vmatprep.subr.mxu0 0.0
  %532 = vmatpush1.msra.mxu0 0.0
  %533 = vmatprep.subr.mxu0 0.0
  %534 = vmatpush1.msra.mxu0 0.0
  %535 = vmatprep.subr.mxu0 0.0
  %536 = vmatpush1.msra.mxu0 0.0
  %537 = vmatprep.subr.mxu0 0.0
  %538 = vmatpush1.msra.mxu0 0.0
  %539 = vmatprep.subr.mxu0 0.0
  %540 = vmatpush1.msra.mxu0 0.0
  %541 = vmatprep.subr.mxu0 0.0
  %542 = vmatpush1.msra.mxu0 0.0
  %543 = vmatprep.subr.mxu0 0.0
  %544 = vmatpush1.msra.mxu0 0.0
  %545 = vmatprep.subr.mxu0 0.0
  %546 = vmatpush1.msra.mxu0 0.0
  %547 = vmatprep.subr.mxu0 0.0
  %548 = vmatpush1.msra.mxu0 0.0
  %549 = vmatprep.subr.mxu0 0.0
  %550 = vmatpush1.msra.mxu0 0.0
  %551 = vmatprep.subr.mxu0 0.0
  %552 = vmatpush1.msra.mxu0 0.0
  %553 = vmatprep.subr.mxu0 0.0
  %554 = vmatpush1.msra.mxu0 0.0
  %555 = vmatprep.subr.mxu0 0.0
  %556 = vmatpush1.msra.mxu0 0.0
  %557 = vmatprep.subr.mxu0 0.0
  %558 = vmatpush1.msra.mxu0 0.0
  %559 = vmatprep.subr.mxu0 0.0
  %560 = vmatpush1.msra.mxu0 0.0
  %561 = vmatprep.subr.mxu0 0.0
  %562 = vmatpush1.msra.mxu0 0.0
  %563 = vmatprep.subr.mxu0 0.0
  %564 = vmatpush1.msra.mxu0 0.0
  %565 = vmatprep.subr.mxu0 0.0
  %566 = vmatpush1.msra.mxu0 0.0
  %567 = vmatprep.subr.mxu0 0.0
  %568 = vmatpush1.msra.mxu0 0.0
  %569 = vmatprep.subr.mxu0 0.0
  %570 = vmatpush1.msra.mxu0 0.0
  %571 = vmatprep.mubr.f32.mxu0 0.0
  %572 = vmatmul.mubr.f32.gmra.mrb[0].mxu0 %v499
  %v573 = vpop.f32.mrb[0].mxu0
  %v574 = vadd.f32 0.0, %v573
  %v575 = vpop.f32.mrb[0].mxu0
  %576 = vmatprep.mubr.f32.mxu0 0.0
  %577 = vmatmul.mubr.f32.gmra.mrb[0].mxu0 %v502
  %v578 = vpop.f32.mrb[0].mxu0
  %v579 = vadd.f32 0.0, %v578
  %v580 = vpop.f32.mrb[0].mxu0
  %581 = vmatprep.mubr.f32.mxu0 0.0
  %582 = vmatmul.mubr.f32.gmra.mrb[0].mxu0 %v505
  %v583 = vpop.f32.mrb[0].mxu0
  %v584 = vadd.f32 0.0, %v583
  %v585 = vpop.f32.mrb[0].mxu0
  %586 = vdwg.mxu0
  %v587 = vmul.f32 %v259, %v378
  %v588 = vmul.f32 %v264, %v383
  %v589 = vmul.f32 %v269, %v388
  %v591 = vsel %vm25, %v587, 0
  %v594 = vsel %vm25, %v588, 0
  %v597 = vsel %vm25, %v589, 0
  %599 = vmatprep.subr.mxu0 0.0
  %600 = vmatpush1.msra.mxu0 %v17
  %601 = vmatprep.subr.mxu0 0.0
  %602 = vmatpush1.msra.mxu0 %v18
  %603 = vmatprep.subr.mxu0 0.0
  %604 = vmatpush1.msra.mxu0 %v19
  %605 = vmatprep.subr.mxu0 0.0
  %606 = vmatpush1.msra.mxu0 %v20
  %607 = vmatprep.subr.mxu0 0.0
  %608 = vmatpush1.msra.mxu0 0.0
  %609 = vmatprep.subr.mxu0 0.0
  %610 = vmatpush1.msra.mxu0 0.0
  %611 = vmatprep.subr.mxu0 0.0
  %612 = vmatpush1.msra.mxu0 0.0
  %613 = vmatprep.subr.mxu0 0.0
  %614 = vmatpush1.msra.mxu0 0.0
  %615 = vmatprep.subr.mxu0 0.0
  %616 = vmatpush1.msra.mxu0 0.0
  %617 = vmatprep.subr.mxu0 0.0
  %618 = vmatpush1.msra.mxu0 0.0
  %619 = vmatprep.subr.mxu0 0.0
  %620 = vmatpush1.msra.mxu0 0.0
  %621 = vmatprep.subr.mxu0 0.0
  %622 = vmatpush1.msra.mxu0 0.0
  %623 = vmatprep.subr.mxu0 0.0
  %624 = vmatpush1.msra.mxu0 0.0
  %625 = vmatprep.subr.mxu0 0.0
  %626 = vmatpush1.msra.mxu0 0.0
  %627 = vmatprep.subr.mxu0 0.0
  %628 = vmatpush1.msra.mxu0 0.0
  %629 = vmatprep.subr.mxu0 0.0
  %630 = vmatpush1.msra.mxu0 0.0
  %631 = vmatprep.subr.mxu0 0.0
  %632 = vmatpush1.msra.mxu0 0.0
  %633 = vmatprep.subr.mxu0 0.0
  %634 = vmatpush1.msra.mxu0 0.0
  %635 = vmatprep.subr.mxu0 0.0
  %636 = vmatpush1.msra.mxu0 0.0
  %637 = vmatprep.subr.mxu0 0.0
  %638 = vmatpush1.msra.mxu0 0.0
  %639 = vmatprep.subr.mxu0 0.0
  %640 = vmatpush1.msra.mxu0 0.0
  %641 = vmatprep.subr.mxu0 0.0
  %642 = vmatpush1.msra.mxu0 0.0
  %643 = vmatprep.subr.mxu0 0.0
  %644 = vmatpush1.msra.mxu0 0.0
  %645 = vmatprep.subr.mxu0 0.0
  %646 = vmatpush1.msra.mxu0 0.0
  %647 = vmatprep.subr.mxu0 0.0
  %648 = vmatpush1.msra.mxu0 0.0
  %649 = vmatprep.subr.mxu0 0.0
  %650 = vmatpush1.msra.mxu0 0.0
  %651 = vmatprep.subr.mxu0 0.0
  %652 = vmatpush1.msra.mxu0 0.0
  %653 = vmatprep.subr.mxu0 0.0
  %654 = vmatpush1.msra.mxu0 0.0
  %655 = vmatprep.subr.mxu0 0.0
  %656 = vmatpush1.msra.mxu0 0.0
  %657 = vmatprep.subr.mxu0 0.0
  %658 = vmatpush1.msra.mxu0 0.0
  %659 = vmatprep.subr.mxu0 0.0
  %660 = vmatpush1.msra.mxu0 0.0
  %661 = vmatprep.subr.mxu0 0.0
  %662 = vmatpush1.msra.mxu0 0.0
  %663 = vmatprep.mubr.f32.mxu0 0.0
  %664 = vmatmul.mubr.f32.gmra.mrb[0].mxu0 %v591
  %v665 = vpop.f32.mrb[0].mxu0
  %v666 = vadd.f32 0.0, %v665
  %v667 = vpop.f32.mrb[0].mxu0
  %668 = vmatprep.mubr.f32.mxu0 0.0
  %669 = vmatmul.mubr.f32.gmra.mrb[0].mxu0 %v594
  %v670 = vpop.f32.mrb[0].mxu0
  %v671 = vadd.f32 0.0, %v670
  %v672 = vpop.f32.mrb[0].mxu0
  %673 = vmatprep.mubr.f32.mxu0 0.0
  %674 = vmatmul.mubr.f32.gmra.mrb[0].mxu0 %v597
  %v675 = vpop.f32.mrb[0].mxu0
  %v676 = vadd.f32 0.0, %v675
  %v677 = vpop.f32.mrb[0].mxu0
  %678 = vdwg.mxu0
  %v679 = vmax.f32 %v574, %v666
  %v680 = vmax.f32 %v579, %v671
  %v681 = vmax.f32 %v584, %v676
  %v682 = vsub.f32 %v574, %v679
  %v683 = vsub.f32 %v579, %v680
  %v684 = vsub.f32 %v584, %v681
  %v685 = vmul.f32 %v682, 1.442695
  %v686 = vpow.pop %v685
  %v687 = vmul.f32 %v683, 1.442695
  %v688 = vpow.pop %v687
  %v689 = vmul.f32 %v684, 1.442695
  %v690 = vpow.pop %v689
  %v691 = vsub.f32 %v666, %v679
  %v692 = vsub.f32 %v671, %v680
  %v693 = vsub.f32 %v676, %v681
  %v694 = vmul.f32 %v691, 1.442695
  %v695 = vpow.pop %v694
  %v696 = vmul.f32 %v692, 1.442695
  %v697 = vpow.pop %v696
  %v698 = vmul.f32 %v693, 1.442695
  %v699 = vpow.pop %v698
  %v700 = vadd.f32 %v686, %v695
  %v701 = vadd.f32 %v688, %v697
  %v702 = vadd.f32 %v690, %v699
  %v703 = vrcp.pop %v700
  %v704 = vrcp.pop %v701
  %v705 = vrcp.pop %v702
  %v706 = vmul.f32 %v686, %v703
  %v707 = vmul.f32 %v688, %v704
  %v708 = vmul.f32 %v690, %v705
  %v710 = vsel %vm25, %v706, 0
  %v713 = vsel %vm25, %v707, 0
  %v716 = vsel %vm25, %v708, 0
  %718 = vmatprep.subr.mxu0 0.0
  %719 = vmatpush1.msra.mxu0 %v21
  %720 = vmatprep.subr.mxu0 0.0
  %721 = vmatpush1.msra.mxu0 %v22
  %722 = vmatprep.subr.mxu0 0.0
  %723 = vmatpush1.msra.mxu0 %v23
  %724 = vmatprep.subr.mxu0 0.0
  %725 = vmatpush1.msra.mxu0 %v24
  %726 = vmatprep.subr.mxu0 0.0
  %727 = vmatpush1.msra.mxu0 0.0
  %728 = vmatprep.subr.mxu0 0.0
  %729 = vmatpush1.msra.mxu0 0.0
  %730 = vmatprep.subr.mxu0 0.0
  %731 = vmatpush1.msra.mxu0 0.0
  %732 = vmatprep.subr.mxu0 0.0
  %733 = vmatpush1.msra.mxu0 0.0
  %734 = vmatprep.subr.mxu0 0.0
  %735 = vmatpush1.msra.mxu0 0.0
  %736 = vmatprep.subr.mxu0 0.0
  %737 = vmatpush1.msra.mxu0 0.0
  %738 = vmatprep.subr.mxu0 0.0
  %739 = vmatpush1.msra.mxu0 0.0
  %740 = vmatprep.subr.mxu0 0.0
  %741 = vmatpush1.msra.mxu0 0.0
  %742 = vmatprep.subr.mxu0 0.0
  %743 = vmatpush1.msra.mxu0 0.0
  %744 = vmatprep.subr.mxu0 0.0
  %745 = vmatpush1.msra.mxu0 0.0
  %746 = vmatprep.subr.mxu0 0.0
  %747 = vmatpush1.msra.mxu0 0.0
  %748 = vmatprep.subr.mxu0 0.0
  %749 = vmatpush1.msra.mxu0 0.0
  %750 = vmatprep.subr.mxu0 0.0
  %751 = vmatpush1.msra.mxu0 0.0
  %752 = vmatprep.subr.mxu0 0.0
  %753 = vmatpush1.msra.mxu0 0.0
  %754 = vmatprep.subr.mxu0 0.0
  %755 = vmatpush1.msra.mxu0 0.0
  %756 = vmatprep.subr.mxu0 0.0
  %757 = vmatpush1.msra.mxu0 0.0
  %758 = vmatprep.subr.mxu0 0.0
  %759 = vmatpush1.msra.mxu0 0.0
  %760 = vmatprep.subr.mxu0 0.0
  %761 = vmatpush1.msra.mxu0 0.0
  %762 = vmatprep.subr.mxu0 0.0
  %763 = vmatpush1.msra.mxu0 0.0
  %764 = vmatprep.subr.mxu0 0.0
  %765 = vmatpush1.msra.mxu0 0.0
  %766 = vmatprep.subr.mxu0 0.0
  %767 = vmatpush1.msra.mxu0 0.0
  %768 = vmatprep.subr.mxu0 0.0
  %769 = vmatpush1.msra.mxu0 0.0
  %770 = vmatprep.subr.mxu0 0.0
  %771 = vmatpush1.msra.mxu0 0.0
  %772 = vmatprep.subr.mxu0 0.0
  %773 = vmatpush1.msra.mxu0 0.0
  %774 = vmatprep.subr.mxu0 0.0
  %775 = vmatpush1.msra.mxu0 0.0
  %776 = vmatprep.subr.mxu0 0.0
  %777 = vmatpush1.msra.mxu0 0.0
  %778 = vmatprep.subr.mxu0 0.0
  %779 = vmatpush1.msra.mxu0 0.0
  %780 = vmatprep.subr.mxu0 0.0
  %781 = vmatpush1.msra.mxu0 0.0
  %782 = vmatprep.mubr.f32.mxu0 0.0
  %783 = vmatmul.mubr.f32.gmra.mrb[0].mxu0 %v710
  %v784 = vpop.f32.mrb[0].mxu0
  %v785 = vadd.f32 0.0, %v784
  %v786 = vpop.f32.mrb[0].mxu0
  %787 = vmatprep.mubr.f32.mxu0 0.0
  %788 = vmatmul.mubr.f32.gmra.mrb[0].mxu0 %v713
  %v789 = vpop.f32.mrb[0].mxu0
  %v790 = vadd.f32 0.0, %v789
  %v791 = vpop.f32.mrb[0].mxu0
  %792 = vmatprep.mubr.f32.mxu0 0.0
  %793 = vmatmul.mubr.f32.gmra.mrb[0].mxu0 %v716
  %v794 = vpop.f32.mrb[0].mxu0
  %v795 = vadd.f32 0.0, %v794
  %v796 = vpop.f32.mrb[0].mxu0
  %797 = vdwg.mxu0
  %v798 = vmul.f32 %v785, %v467
  %v799 = vmul.f32 %v790, %v472
  %v800 = vmul.f32 %v795, %v477
  %v801 = vmul.f32 %v695, %v703
  %v802 = vmul.f32 %v697, %v704
  %v803 = vmul.f32 %v699, %v705
  %v805 = vsel %vm25, %v801, 0
  %v808 = vsel %vm25, %v802, 0
  %v811 = vsel %vm25, %v803, 0
  %813 = vmatprep.subr.mxu0 0.0
  %814 = vmatpush1.msra.mxu0 %v21
  %815 = vmatprep.subr.mxu0 0.0
  %816 = vmatpush1.msra.mxu0 %v22
  %817 = vmatprep.subr.mxu0 0.0
  %818 = vmatpush1.msra.mxu0 %v23
  %819 = vmatprep.subr.mxu0 0.0
  %820 = vmatpush1.msra.mxu0 %v24
  %821 = vmatprep.subr.mxu0 0.0
  %822 = vmatpush1.msra.mxu0 0.0
  %823 = vmatprep.subr.mxu0 0.0
  %824 = vmatpush1.msra.mxu0 0.0
  %825 = vmatprep.subr.mxu0 0.0
  %826 = vmatpush1.msra.mxu0 0.0
  %827 = vmatprep.subr.mxu0 0.0
  %828 = vmatpush1.msra.mxu0 0.0
  %829 = vmatprep.subr.mxu0 0.0
  %830 = vmatpush1.msra.mxu0 0.0
  %831 = vmatprep.subr.mxu0 0.0
  %832 = vmatpush1.msra.mxu0 0.0
  %833 = vmatprep.subr.mxu0 0.0
  %834 = vmatpush1.msra.mxu0 0.0
  %835 = vmatprep.subr.mxu0 0.0
  %836 = vmatpush1.msra.mxu0 0.0
  %837 = vmatprep.subr.mxu0 0.0
  %838 = vmatpush1.msra.mxu0 0.0
  %839 = vmatprep.subr.mxu0 0.0
  %840 = vmatpush1.msra.mxu0 0.0
  %841 = vmatprep.subr.mxu0 0.0
  %842 = vmatpush1.msra.mxu0 0.0
  %843 = vmatprep.subr.mxu0 0.0
  %844 = vmatpush1.msra.mxu0 0.0
  %845 = vmatprep.subr.mxu0 0.0
  %846 = vmatpush1.msra.mxu0 0.0
  %847 = vmatprep.subr.mxu0 0.0
  %848 = vmatpush1.msra.mxu0 0.0
  %849 = vmatprep.subr.mxu0 0.0
  %850 = vmatpush1.msra.mxu0 0.0
  %851 = vmatprep.subr.mxu0 0.0
  %852 = vmatpush1.msra.mxu0 0.0
  %853 = vmatprep.subr.mxu0 0.0
  %854 = vmatpush1.msra.mxu0 0.0
  %855 = vmatprep.subr.mxu0 0.0
  %856 = vmatpush1.msra.mxu0 0.0
  %857 = vmatprep.subr.mxu0 0.0
  %858 = vmatpush1.msra.mxu0 0.0
  %859 = vmatprep.subr.mxu0 0.0
  %860 = vmatpush1.msra.mxu0 0.0
  %861 = vmatprep.subr.mxu0 0.0
  %862 = vmatpush1.msra.mxu0 0.0
  %863 = vmatprep.subr.mxu0 0.0
  %864 = vmatpush1.msra.mxu0 0.0
  %865 = vmatprep.subr.mxu0 0.0
  %866 = vmatpush1.msra.mxu0 0.0
  %867 = vmatprep.subr.mxu0 0.0
  %868 = vmatpush1.msra.mxu0 0.0
  %869 = vmatprep.subr.mxu0 0.0
  %870 = vmatpush1.msra.mxu0 0.0
  %871 = vmatprep.subr.mxu0 0.0
  %872 = vmatpush1.msra.mxu0 0.0
  %873 = vmatprep.subr.mxu0 0.0
  %874 = vmatpush1.msra.mxu0 0.0
  %875 = vmatprep.subr.mxu0 0.0
  %876 = vmatpush1.msra.mxu0 0.0
  %877 = vmatprep.mubr.f32.mxu0 0.0
  %878 = vmatmul.mubr.f32.gmra.mrb[0].mxu0 %v805
  %v879 = vpop.f32.mrb[0].mxu0
  %v880 = vadd.f32 0.0, %v879
  %v881 = vpop.f32.mrb[0].mxu0
  %882 = vmatprep.mubr.f32.mxu0 0.0
  %883 = vmatmul.mubr.f32.gmra.mrb[0].mxu0 %v808
  %v884 = vpop.f32.mrb[0].mxu0
  %v885 = vadd.f32 0.0, %v884
  %v886 = vpop.f32.mrb[0].mxu0
  %887 = vmatprep.mubr.f32.mxu0 0.0
  %888 = vmatmul.mubr.f32.gmra.mrb[0].mxu0 %v811
  %v889 = vpop.f32.mrb[0].mxu0
  %v890 = vadd.f32 0.0, %v889
  %v891 = vpop.f32.mrb[0].mxu0
  %892 = vdwg.mxu0
  %v893 = vmul.f32 %v880, %v482
  %v894 = vmul.f32 %v885, %v487
  %v895 = vmul.f32 %v890, %v492
  %v896 = vadd.f32 %v798, %v893
  %v897 = vadd.f32 %v799, %v894
  %v898 = vadd.f32 %v800, %v895
  %v899 = vmul.f32 %v274, %v363
  %v900 = vmul.f32 %v279, %v368
  %v901 = vmul.f32 %v284, %v373
  %v903 = vsel %vm25, %v899, 0
  %v906 = vsel %vm25, %v900, 0
  %v909 = vsel %vm25, %v901, 0
  %911 = vmatprep.subr.mxu0 0.0
  %912 = vmatpush1.msra.mxu0 %v17
  %913 = vmatprep.subr.mxu0 0.0
  %914 = vmatpush1.msra.mxu0 %v18
  %915 = vmatprep.subr.mxu0 0.0
  %916 = vmatpush1.msra.mxu0 %v19
  %917 = vmatprep.subr.mxu0 0.0
  %918 = vmatpush1.msra.mxu0 %v20
  %919 = vmatprep.subr.mxu0 0.0
  %920 = vmatpush1.msra.mxu0 0.0
  %921 = vmatprep.subr.mxu0 0.0
  %922 = vmatpush1.msra.mxu0 0.0
  %923 = vmatprep.subr.mxu0 0.0
  %924 = vmatpush1.msra.mxu0 0.0
  %925 = vmatprep.subr.mxu0 0.0
  %926 = vmatpush1.msra.mxu0 0.0
  %927 = vmatprep.subr.mxu0 0.0
  %928 = vmatpush1.msra.mxu0 0.0
  %929 = vmatprep.subr.mxu0 0.0
  %930 = vmatpush1.msra.mxu0 0.0
  %931 = vmatprep.subr.mxu0 0.0
  %932 = vmatpush1.msra.mxu0 0.0
  %933 = vmatprep.subr.mxu0 0.0
  %934 = vmatpush1.msra.mxu0 0.0
  %935 = vmatprep.subr.mxu0 0.0
  %936 = vmatpush1.msra.mxu0 0.0
  %937 = vmatprep.subr.mxu0 0.0
  %938 = vmatpush1.msra.mxu0 0.0
  %939 = vmatprep.subr.mxu0 0.0
  %940 = vmatpush1.msra.mxu0 0.0
  %941 = vmatprep.subr.mxu0 0.0
  %942 = vmatpush1.msra.mxu0 0.0
  %943 = vmatprep.subr.mxu0 0.0
  %944 = vmatpush1.msra.mxu0 0.0
  %945 = vmatprep.subr.mxu0 0.0
  %946 = vmatpush1.msra.mxu0 0.0
  %947 = vmatprep.subr.mxu0 0.0
  %948 = vmatpush1.msra.mxu0 0.0
  %949 = vmatprep.subr.mxu0 0.0
  %950 = vmatpush1.msra.mxu0 0.0
  %951 = vmatprep.subr.mxu0 0.0
  %952 = vmatpush1.msra.mxu0 0.0
  %953 = vmatprep.subr.mxu0 0.0
  %954 = vmatpush1.msra.mxu0 0.0
  %955 = vmatprep.subr.mxu0 0.0
  %956 = vmatpush1.msra.mxu0 0.0
  %957 = vmatprep.subr.mxu0 0.0
  %958 = vmatpush1.msra.mxu0 0.0
  %959 = vmatprep.subr.mxu0 0.0
  %960 = vmatpush1.msra.mxu0 0.0
  %961 = vmatprep.subr.mxu0 0.0
  %962 = vmatpush1.msra.mxu0 0.0
  %963 = vmatprep.subr.mxu0 0.0
  %964 = vmatpush1.msra.mxu0 0.0
  %965 = vmatprep.subr.mxu0 0.0
  %966 = vmatpush1.msra.mxu0 0.0
  %967 = vmatprep.subr.mxu0 0.0
  %968 = vmatpush1.msra.mxu0 0.0
  %969 = vmatprep.subr.mxu0 0.0
  %970 = vmatpush1.msra.mxu0 0.0
  %971 = vmatprep.subr.mxu0 0.0
  %972 = vmatpush1.msra.mxu0 0.0
  %973 = vmatprep.subr.mxu0 0.0
  %974 = vmatpush1.msra.mxu0 0.0
  %975 = vmatprep.mubr.f32.mxu0 0.0
  %976 = vmatmul.mubr.f32.gmra.mrb[0].mxu0 %v903
  %v977 = vpop.f32.mrb[0].mxu0
  %v978 = vadd.f32 0.0, %v977
  %v979 = vpop.f32.mrb[0].mxu0
  %980 = vmatprep.mubr.f32.mxu0 0.0
  %981 = vmatmul.mubr.f32.gmra.mrb[0].mxu0 %v906
  %v982 = vpop.f32.mrb[0].mxu0
  %v983 = vadd.f32 0.0, %v982
  %v984 = vpop.f32.mrb[0].mxu0
  %985 = vmatprep.mubr.f32.mxu0 0.0
  %986 = vmatmul.mubr.f32.gmra.mrb[0].mxu0 %v909
  %v987 = vpop.f32.mrb[0].mxu0
  %v988 = vadd.f32 0.0, %v987
  %v989 = vpop.f32.mrb[0].mxu0
  %990 = vdwg.mxu0
  %v991 = vmul.f32 %v274, %v378
  %v992 = vmul.f32 %v279, %v383
  %v993 = vmul.f32 %v284, %v388
  %v995 = vsel %vm25, %v991, 0
  %v998 = vsel %vm25, %v992, 0
  %v1001 = vsel %vm25, %v993, 0
  %1003 = vmatprep.subr.mxu0 0.0
  %1004 = vmatpush1.msra.mxu0 %v17
  %1005 = vmatprep.subr.mxu0 0.0
  %1006 = vmatpush1.msra.mxu0 %v18
  %1007 = vmatprep.subr.mxu0 0.0
  %1008 = vmatpush1.msra.mxu0 %v19
  %1009 = vmatprep.subr.mxu0 0.0
  %1010 = vmatpush1.msra.mxu0 %v20
  %1011 = vmatprep.subr.mxu0 0.0
  %1012 = vmatpush1.msra.mxu0 0.0
  %1013 = vmatprep.subr.mxu0 0.0
  %1014 = vmatpush1.msra.mxu0 0.0
  %1015 = vmatprep.subr.mxu0 0.0
  %1016 = vmatpush1.msra.mxu0 0.0
  %1017 = vmatprep.subr.mxu0 0.0
  %1018 = vmatpush1.msra.mxu0 0.0
  %1019 = vmatprep.subr.mxu0 0.0
  %1020 = vmatpush1.msra.mxu0 0.0
  %1021 = vmatprep.subr.mxu0 0.0
  %1022 = vmatpush1.msra.mxu0 0.0
  %1023 = vmatprep.subr.mxu0 0.0
  %1024 = vmatpush1.msra.mxu0 0.0
  %1025 = vmatprep.subr.mxu0 0.0
  %1026 = vmatpush1.msra.mxu0 0.0
  %1027 = vmatprep.subr.mxu0 0.0
  %1028 = vmatpush1.msra.mxu0 0.0
  %1029 = vmatprep.subr.mxu0 0.0
  %1030 = vmatpush1.msra.mxu0 0.0
  %1031 = vmatprep.subr.mxu0 0.0
  %1032 = vmatpush1.msra.mxu0 0.0
  %1033 = vmatprep.subr.mxu0 0.0
  %1034 = vmatpush1.msra.mxu0 0.0
  %1035 = vmatprep.subr.mxu0 0.0
  %1036 = vmatpush1.msra.mxu0 0.0
  %1037 = vmatprep.subr.mxu0 0.0
  %1038 = vmatpush1.msra.mxu0 0.0
  %1039 = vmatprep.subr.mxu0 0.0
  %1040 = vmatpush1.msra.mxu0 0.0
  %1041 = vmatprep.subr.mxu0 0.0
  %1042 = vmatpush1.msra.mxu0 0.0
  %1043 = vmatprep.subr.mxu0 0.0
  %1044 = vmatpush1.msra.mxu0 0.0
  %1045 = vmatprep.subr.mxu0 0.0
  %1046 = vmatpush1.msra.mxu0 0.0
  %1047 = vmatprep.subr.mxu0 0.0
  %1048 = vmatpush1.msra.mxu0 0.0
  %1049 = vmatprep.subr.mxu0 0.0
  %1050 = vmatpush1.msra.mxu0 0.0
  %1051 = vmatprep.subr.mxu0 0.0
  %1052 = vmatpush1.msra.mxu0 0.0
  %1053 = vmatprep.subr.mxu0 0.0
  %1054 = vmatpush1.msra.mxu0 0.0
  %1055 = vmatprep.subr.mxu0 0.0
  %1056 = vmatpush1.msra.mxu0 0.0
  %1057 = vmatprep.subr.mxu0 0.0
  %1058 = vmatpush1.msra.mxu0 0.0
  %1059 = vmatprep.subr.mxu0 0.0
  %1060 = vmatpush1.msra.mxu0 0.0
  %1061 = vmatprep.subr.mxu0 0.0
  %1062 = vmatpush1.msra.mxu0 0.0
  %1063 = vmatprep.subr.mxu0 0.0
  %1064 = vmatpush1.msra.mxu0 0.0
  %1065 = vmatprep.subr.mxu0 0.0
  %1066 = vmatpush1.msra.mxu0 0.0
  %1067 = vmatprep.mubr.f32.mxu0 0.0
  %1068 = vmatmul.mubr.f32.gmra.mrb[0].mxu0 %v995
  %v1069 = vpop.f32.mrb[0].mxu0
  %v1070 = vadd.f32 0.0, %v1069
  %v1071 = vpop.f32.mrb[0].mxu0
  %1072 = vmatprep.mubr.f32.mxu0 0.0
  %1073 = vmatmul.mubr.f32.gmra.mrb[0].mxu0 %v998
  %v1074 = vpop.f32.mrb[0].mxu0
  %v1075 = vadd.f32 0.0, %v1074
  %v1076 = vpop.f32.mrb[0].mxu0
  %1077 = vmatprep.mubr.f32.mxu0 0.0
  %1078 = vmatmul.mubr.f32.gmra.mrb[0].mxu0 %v1001
  %v1079 = vpop.f32.mrb[0].mxu0
  %v1080 = vadd.f32 0.0, %v1079
  %v1081 = vpop.f32.mrb[0].mxu0
  %1082 = vdwg.mxu0
  %v1083 = vmax.f32 %v978, %v1070
  %v1084 = vmax.f32 %v983, %v1075
  %v1085 = vmax.f32 %v988, %v1080
  %v1086 = vsub.f32 %v978, %v1083
  %v1087 = vsub.f32 %v983, %v1084
  %v1088 = vsub.f32 %v988, %v1085
  %v1089 = vmul.f32 %v1086, 1.442695
  %v1090 = vpow.pop %v1089
  %v1091 = vmul.f32 %v1087, 1.442695
  %v1092 = vpow.pop %v1091
  %v1093 = vmul.f32 %v1088, 1.442695
  %v1094 = vpow.pop %v1093
  %v1095 = vsub.f32 %v1070, %v1083
  %v1096 = vsub.f32 %v1075, %v1084
  %v1097 = vsub.f32 %v1080, %v1085
  %v1098 = vmul.f32 %v1095, 1.442695
  %v1099 = vpow.pop %v1098
  %v1100 = vmul.f32 %v1096, 1.442695
  %v1101 = vpow.pop %v1100
  %v1102 = vmul.f32 %v1097, 1.442695
  %v1103 = vpow.pop %v1102
  %v1104 = vadd.f32 %v1090, %v1099
  %v1105 = vadd.f32 %v1092, %v1101
  %v1106 = vadd.f32 %v1094, %v1103
  %v1107 = vrcp.pop %v1104
  %v1108 = vrcp.pop %v1105
  %v1109 = vrcp.pop %v1106
  %v1110 = vmul.f32 %v1090, %v1107
  %v1111 = vmul.f32 %v1092, %v1108
  %v1112 = vmul.f32 %v1094, %v1109
  %v1114 = vsel %vm25, %v1110, 0
  %v1117 = vsel %vm25, %v1111, 0
  %v1120 = vsel %vm25, %v1112, 0
  %1122 = vmatprep.subr.mxu0 0.0
  %1123 = vmatpush1.msra.mxu0 %v21
  %1124 = vmatprep.subr.mxu0 0.0
  %1125 = vmatpush1.msra.mxu0 %v22
  %1126 = vmatprep.subr.mxu0 0.0
  %1127 = vmatpush1.msra.mxu0 %v23
  %1128 = vmatprep.subr.mxu0 0.0
  %1129 = vmatpush1.msra.mxu0 %v24
  %1130 = vmatprep.subr.mxu0 0.0
  %1131 = vmatpush1.msra.mxu0 0.0
  %1132 = vmatprep.subr.mxu0 0.0
  %1133 = vmatpush1.msra.mxu0 0.0
  %1134 = vmatprep.subr.mxu0 0.0
  %1135 = vmatpush1.msra.mxu0 0.0
  %1136 = vmatprep.subr.mxu0 0.0
  %1137 = vmatpush1.msra.mxu0 0.0
  %1138 = vmatprep.subr.mxu0 0.0
  %1139 = vmatpush1.msra.mxu0 0.0
  %1140 = vmatprep.subr.mxu0 0.0
  %1141 = vmatpush1.msra.mxu0 0.0
  %1142 = vmatprep.subr.mxu0 0.0
  %1143 = vmatpush1.msra.mxu0 0.0
  %1144 = vmatprep.subr.mxu0 0.0
  %1145 = vmatpush1.msra.mxu0 0.0
  %1146 = vmatprep.subr.mxu0 0.0
  %1147 = vmatpush1.msra.mxu0 0.0
  %1148 = vmatprep.subr.mxu0 0.0
  %1149 = vmatpush1.msra.mxu0 0.0
  %1150 = vmatprep.subr.mxu0 0.0
  %1151 = vmatpush1.msra.mxu0 0.0
  %1152 = vmatprep.subr.mxu0 0.0
  %1153 = vmatpush1.msra.mxu0 0.0
  %1154 = vmatprep.subr.mxu0 0.0
  %1155 = vmatpush1.msra.mxu0 0.0
  %1156 = vmatprep.subr.mxu0 0.0
  %1157 = vmatpush1.msra.mxu0 0.0
  %1158 = vmatprep.subr.mxu0 0.0
  %1159 = vmatpush1.msra.mxu0 0.0
  %1160 = vmatprep.subr.mxu0 0.0
  %1161 = vmatpush1.msra.mxu0 0.0
  %1162 = vmatprep.subr.mxu0 0.0
  %1163 = vmatpush1.msra.mxu0 0.0
  %1164 = vmatprep.subr.mxu0 0.0
  %1165 = vmatpush1.msra.mxu0 0.0
  %1166 = vmatprep.subr.mxu0 0.0
  %1167 = vmatpush1.msra.mxu0 0.0
  %1168 = vmatprep.subr.mxu0 0.0
  %1169 = vmatpush1.msra.mxu0 0.0
  %1170 = vmatprep.subr.mxu0 0.0
  %1171 = vmatpush1.msra.mxu0 0.0
  %1172 = vmatprep.subr.mxu0 0.0
  %1173 = vmatpush1.msra.mxu0 0.0
  %1174 = vmatprep.subr.mxu0 0.0
  %1175 = vmatpush1.msra.mxu0 0.0
  %1176 = vmatprep.subr.mxu0 0.0
  %1177 = vmatpush1.msra.mxu0 0.0
  %1178 = vmatprep.subr.mxu0 0.0
  %1179 = vmatpush1.msra.mxu0 0.0
  %1180 = vmatprep.subr.mxu0 0.0
  %1181 = vmatpush1.msra.mxu0 0.0
  %1182 = vmatprep.subr.mxu0 0.0
  %1183 = vmatpush1.msra.mxu0 0.0
  %1184 = vmatprep.subr.mxu0 0.0
  %1185 = vmatpush1.msra.mxu0 0.0
  %1186 = vmatprep.mubr.f32.mxu0 0.0
  %1187 = vmatmul.mubr.f32.gmra.mrb[0].mxu0 %v1114
  %v1188 = vpop.f32.mrb[0].mxu0
  %v1189 = vadd.f32 0.0, %v1188
  %v1190 = vpop.f32.mrb[0].mxu0
  %1191 = vmatprep.mubr.f32.mxu0 0.0
  %1192 = vmatmul.mubr.f32.gmra.mrb[0].mxu0 %v1117
  %v1193 = vpop.f32.mrb[0].mxu0
  %v1194 = vadd.f32 0.0, %v1193
  %v1195 = vpop.f32.mrb[0].mxu0
  %1196 = vmatprep.mubr.f32.mxu0 0.0
  %1197 = vmatmul.mubr.f32.gmra.mrb[0].mxu0 %v1120
  %v1198 = vpop.f32.mrb[0].mxu0
  %v1199 = vadd.f32 0.0, %v1198
  %v1200 = vpop.f32.mrb[0].mxu0
  %1201 = vdwg.mxu0
  %v1202 = vmul.f32 %v1189, %v467
  %v1203 = vmul.f32 %v1194, %v472
  %v1204 = vmul.f32 %v1199, %v477
  %v1205 = vmul.f32 %v1099, %v1107
  %v1206 = vmul.f32 %v1101, %v1108
  %v1207 = vmul.f32 %v1103, %v1109
  %v1209 = vsel %vm25, %v1205, 0
  %v1212 = vsel %vm25, %v1206, 0
  %v1215 = vsel %vm25, %v1207, 0
  %1217 = vmatprep.subr.mxu0 0.0
  %1218 = vmatpush1.msra.mxu0 %v21
  %1219 = vmatprep.subr.mxu0 0.0
  %1220 = vmatpush1.msra.mxu0 %v22
  %1221 = vmatprep.subr.mxu0 0.0
  %1222 = vmatpush1.msra.mxu0 %v23
  %1223 = vmatprep.subr.mxu0 0.0
  %1224 = vmatpush1.msra.mxu0 %v24
  %1225 = vmatprep.subr.mxu0 0.0
  %1226 = vmatpush1.msra.mxu0 0.0
  %1227 = vmatprep.subr.mxu0 0.0
  %1228 = vmatpush1.msra.mxu0 0.0
  %1229 = vmatprep.subr.mxu0 0.0
  %1230 = vmatpush1.msra.mxu0 0.0
  %1231 = vmatprep.subr.mxu0 0.0
  %1232 = vmatpush1.msra.mxu0 0.0
  %1233 = vmatprep.subr.mxu0 0.0
  %1234 = vmatpush1.msra.mxu0 0.0
  %1235 = vmatprep.subr.mxu0 0.0
  %1236 = vmatpush1.msra.mxu0 0.0
  %1237 = vmatprep.subr.mxu0 0.0
  %1238 = vmatpush1.msra.mxu0 0.0
  %1239 = vmatprep.subr.mxu0 0.0
  %1240 = vmatpush1.msra.mxu0 0.0
  %1241 = vmatprep.subr.mxu0 0.0
  %1242 = vmatpush1.msra.mxu0 0.0
  %1243 = vmatprep.subr.mxu0 0.0
  %1244 = vmatpush1.msra.mxu0 0.0
  %1245 = vmatprep.subr.mxu0 0.0
  %1246 = vmatpush1.msra.mxu0 0.0
  %1247 = vmatprep.subr.mxu0 0.0
  %1248 = vmatpush1.msra.mxu0 0.0
  %1249 = vmatprep.subr.mxu0 0.0
  %1250 = vmatpush1.msra.mxu0 0.0
  %1251 = vmatprep.subr.mxu0 0.0
  %1252 = vmatpush1.msra.mxu0 0.0
  %1253 = vmatprep.subr.mxu0 0.0
  %1254 = vmatpush1.msra.mxu0 0.0
  %1255 = vmatprep.subr.mxu0 0.0
  %1256 = vmatpush1.msra.mxu0 0.0
  %1257 = vmatprep.subr.mxu0 0.0
  %1258 = vmatpush1.msra.mxu0 0.0
  %1259 = vmatprep.subr.mxu0 0.0
  %1260 = vmatpush1.msra.mxu0 0.0
  %1261 = vmatprep.subr.mxu0 0.0
  %1262 = vmatpush1.msra.mxu0 0.0
  %1263 = vmatprep.subr.mxu0 0.0
  %1264 = vmatpush1.msra.mxu0 0.0
  %1265 = vmatprep.subr.mxu0 0.0
  %1266 = vmatpush1.msra.mxu0 0.0
  %1267 = vmatprep.subr.mxu0 0.0
  %1268 = vmatpush1.msra.mxu0 0.0
  %1269 = vmatprep.subr.mxu0 0.0
  %1270 = vmatpush1.msra.mxu0 0.0
  %1271 = vmatprep.subr.mxu0 0.0
  %1272 = vmatpush1.msra.mxu0 0.0
  %1273 = vmatprep.subr.mxu0 0.0
  %1274 = vmatpush1.msra.mxu0 0.0
  %1275 = vmatprep.subr.mxu0 0.0
  %1276 = vmatpush1.msra.mxu0 0.0
  %1277 = vmatprep.subr.mxu0 0.0
  %1278 = vmatpush1.msra.mxu0 0.0
  %1279 = vmatprep.subr.mxu0 0.0
  %1280 = vmatpush1.msra.mxu0 0.0
  %1281 = vmatprep.mubr.f32.mxu0 0.0
  %1282 = vmatmul.mubr.f32.gmra.mrb[0].mxu0 %v1209
  %v1283 = vpop.f32.mrb[0].mxu0
  %v1284 = vadd.f32 0.0, %v1283
  %v1285 = vpop.f32.mrb[0].mxu0
  %1286 = vmatprep.mubr.f32.mxu0 0.0
  %1287 = vmatmul.mubr.f32.gmra.mrb[0].mxu0 %v1212
  %v1288 = vpop.f32.mrb[0].mxu0
  %v1289 = vadd.f32 0.0, %v1288
  %v1290 = vpop.f32.mrb[0].mxu0
  %1291 = vmatprep.mubr.f32.mxu0 0.0
  %1292 = vmatmul.mubr.f32.gmra.mrb[0].mxu0 %v1215
  %v1293 = vpop.f32.mrb[0].mxu0
  %v1294 = vadd.f32 0.0, %v1293
  %v1295 = vpop.f32.mrb[0].mxu0
  %1296 = vdwg.mxu0
  %v1297 = vmul.f32 %v1284, %v482
  %v1298 = vmul.f32 %v1289, %v487
  %v1299 = vmul.f32 %v1294, %v492
  %v1300 = vadd.f32 %v1202, %v1297
  %v1301 = vadd.f32 %v1203, %v1298
  %v1302 = vadd.f32 %v1204, %v1299
  %v1303 = vld [vmem:[%s1 + $0xf0] sm:$0xff]
  %v1304 = vld [vmem:[%s1 + $0xf8] sm:$0xff]
  %v1305 = vld [vmem:[%s1 + $0x100] sm:$0xff]
  %v1306 = vld [vmem:[%s1 + $0x108] sm:$0xff]
  %v1307 = vld [vmem:[%s1 + $0x168] sm:$0x1]
  %v1308 = vlaneseq
  %v1309 = vshrl.u32 %v1308, 7
  %v1310 = vsub.s32 0, %v1309
  %v1311 = vrot.slane %v1307, %v1310
  %v1313 = vsel %vm25, %v896, 0
  %v1316 = vsel %vm25, %v897, 0
  %v1319 = vsel %vm25, %v898, 0
  %v1322 = vsel %vm25, %v1300, 0
  %v1325 = vsel %vm25, %v1301, 0
  %v1328 = vsel %vm25, %v1302, 0
  %1330 = vmatprep.subr.mxu0 0.0
  %1331 = vmatpush1.msra.mxu0 %v1303
  %1332 = vmatprep.subr.mxu0 0.0
  %1333 = vmatpush1.msra.mxu0 %v1304
  %1334 = vmatprep.subr.mxu0 0.0
  %1335 = vmatpush1.msra.mxu0 %v1305
  %1336 = vmatprep.subr.mxu0 0.0
  %1337 = vmatpush1.msra.mxu0 %v1306
  %1338 = vmatprep.subr.mxu0 0.0
  %1339 = vmatpush1.msra.mxu0 0.0
  %1340 = vmatprep.subr.mxu0 0.0
  %1341 = vmatpush1.msra.mxu0 0.0
  %1342 = vmatprep.subr.mxu0 0.0
  %1343 = vmatpush1.msra.mxu0 0.0
  %1344 = vmatprep.subr.mxu0 0.0
  %1345 = vmatpush1.msra.mxu0 0.0
  %1346 = vmatprep.subr.mxu0 0.0
  %1347 = vmatpush1.msra.mxu0 0.0
  %1348 = vmatprep.subr.mxu0 0.0
  %1349 = vmatpush1.msra.mxu0 0.0
  %1350 = vmatprep.subr.mxu0 0.0
  %1351 = vmatpush1.msra.mxu0 0.0
  %1352 = vmatprep.subr.mxu0 0.0
  %1353 = vmatpush1.msra.mxu0 0.0
  %1354 = vmatprep.subr.mxu0 0.0
  %1355 = vmatpush1.msra.mxu0 0.0
  %1356 = vmatprep.subr.mxu0 0.0
  %1357 = vmatpush1.msra.mxu0 0.0
  %1358 = vmatprep.subr.mxu0 0.0
  %1359 = vmatpush1.msra.mxu0 0.0
  %1360 = vmatprep.subr.mxu0 0.0
  %1361 = vmatpush1.msra.mxu0 0.0
  %1362 = vmatprep.subr.mxu0 0.0
  %1363 = vmatpush1.msra.mxu0 0.0
  %1364 = vmatprep.subr.mxu0 0.0
  %1365 = vmatpush1.msra.mxu0 0.0
  %1366 = vmatprep.subr.mxu0 0.0
  %1367 = vmatpush1.msra.mxu0 0.0
  %1368 = vmatprep.subr.mxu0 0.0
  %1369 = vmatpush1.msra.mxu0 0.0
  %1370 = vmatprep.subr.mxu0 0.0
  %1371 = vmatpush1.msra.mxu0 0.0
  %1372 = vmatprep.subr.mxu0 0.0
  %1373 = vmatpush1.msra.mxu0 0.0
  %1374 = vmatprep.subr.mxu0 0.0
  %1375 = vmatpush1.msra.mxu0 0.0
  %1376 = vmatprep.subr.mxu0 0.0
  %1377 = vmatpush1.msra.mxu0 0.0
  %1378 = vmatprep.subr.mxu0 0.0
  %1379 = vmatpush1.msra.mxu0 0.0
  %1380 = vmatprep.subr.mxu0 0.0
  %1381 = vmatpush1.msra.mxu0 0.0
  %1382 = vmatprep.subr.mxu0 0.0
  %1383 = vmatpush1.msra.mxu0 0.0
  %1384 = vmatprep.subr.mxu0 0.0
  %1385 = vmatpush1.msra.mxu0 0.0
  %1386 = vmatprep.subr.mxu0 0.0
  %1387 = vmatpush1.msra.mxu0 0.0
  %1388 = vmatprep.subr.mxu0 0.0
  %1389 = vmatpush1.msra.mxu0 0.0
  %1390 = vmatprep.subr.mxu0 0.0
  %1391 = vmatpush1.msra.mxu0 0.0
  %1392 = vmatprep.subr.mxu0 0.0
  %1393 = vmatpush1.msra.mxu0 0.0
  %1394 = vmatprep.mubr.f32.mxu0 0.0
  %1395 = vmatmul.mubr.f32.gmra.mrb[0].mxu0 %v1313
  %v1396 = vpop.f32.mrb[0].mxu0
  %v1397 = vadd.f32 %v1311, %v1396
  %v1398 = vpop.f32.mrb[0].mxu0
  %1399 = vmatprep.mubr.f32.mxu0 0.0
  %1400 = vmatmul.mubr.f32.gmra.mrb[0].mxu0 %v1316
  %v1401 = vpop.f32.mrb[0].mxu0
  %v1402 = vadd.f32 %v1311, %v1401
  %v1403 = vpop.f32.mrb[0].mxu0
  %1404 = vmatprep.mubr.f32.mxu0 0.0
  %1405 = vmatmul.mubr.f32.gmra.mrb[0].mxu0 %v1319
  %v1406 = vpop.f32.mrb[0].mxu0
  %v1407 = vadd.f32 %v1311, %v1406
  %v1408 = vpop.f32.mrb[0].mxu0
  %1409 = vmatprep.mubr.f32.mxu0 0.0
  %1410 = vmatmul.mubr.f32.gmra.mrb[0].mxu0 %v1322
  %v1411 = vpop.f32.mrb[0].mxu0
  %v1412 = vadd.f32 %v1311, %v1411
  %v1413 = vpop.f32.mrb[0].mxu0
  %1414 = vmatprep.mubr.f32.mxu0 0.0
  %1415 = vmatmul.mubr.f32.gmra.mrb[0].mxu0 %v1325
  %v1416 = vpop.f32.mrb[0].mxu0
  %v1417 = vadd.f32 %v1311, %v1416
  %v1418 = vpop.f32.mrb[0].mxu0
  %1419 = vmatprep.mubr.f32.mxu0 0.0
  %1420 = vmatmul.mubr.f32.gmra.mrb[0].mxu0 %v1328
  %v1421 = vpop.f32.mrb[0].mxu0
  %v1422 = vadd.f32 %v1311, %v1421
  %v1423 = vpop.f32.mrb[0].mxu0
  %1424 = vdwg.mxu0
  %v1425 = vadd.f32 %v159, %v1397
  %v1426 = vadd.f32 %v160, %v1402
  %v1427 = vadd.f32 %v161, %v1407
  %v1428 = vadd.f32 %v162, %v1412
  %v1429 = vadd.f32 %v163, %v1417
  %v1430 = vadd.f32 %v164, %v1422
  %v1431 = vld [vmem:[%s1 + $0x178] sm:$0x1]
  %v1432 = vld [vmem:[%s1 + $0x180] sm:$0x1]
  %v1433 = vsel %vm25, %v1425, 0.0
  %1434 = vadd.xlane.f32.xlu0 %v1433
  %v1435 = vpop.xlane.xlu0 %1434
  %v1436 = vsel %vm25, %v1426, 0.0
  %1437 = vadd.xlane.f32.xlu0 %v1436
  %v1438 = vpop.xlane.xlu0 %1437
  %v1439 = vsel %vm25, %v1427, 0.0
  %1440 = vadd.xlane.f32.xlu0 %v1439
  %v1441 = vpop.xlane.xlu0 %1440
  %v1442 = vsel %vm25, %v1428, 0.0
  %1443 = vadd.xlane.f32.xlu0 %v1442
  %v1444 = vpop.xlane.xlu0 %1443
  %v1445 = vsel %vm25, %v1429, 0.0
  %1446 = vadd.xlane.f32.xlu0 %v1445
  %v1447 = vpop.xlane.xlu0 %1446
  %v1448 = vsel %vm25, %v1430, 0.0
  %1449 = vadd.xlane.f32.xlu0 %v1448
  %v1450 = vpop.xlane.xlu0 %1449
  %v1451 = vrcp.pop 32.0
  %v1452 = vmul.f32 %v1435, %v1451
  %v1453 = vmul.f32 %v1438, %v1451
  %v1454 = vmul.f32 %v1441, %v1451
  %v1455 = vmul.f32 %v1444, %v1451
  %v1456 = vmul.f32 %v1447, %v1451
  %v1457 = vmul.f32 %v1450, %v1451
  %v1458 = vsub.f32 %v1425, %v1452
  %v1459 = vsub.f32 %v1426, %v1453
  %v1460 = vsub.f32 %v1427, %v1454
  %v1461 = vsub.f32 %v1428, %v1455
  %v1462 = vsub.f32 %v1429, %v1456
  %v1463 = vsub.f32 %v1430, %v1457
  %v1464 = vmul.f32 %v1458, %v1458
  %v1465 = vmul.f32 %v1459, %v1459
  %v1466 = vmul.f32 %v1460, %v1460
  %v1467 = vmul.f32 %v1461, %v1461
  %v1468 = vmul.f32 %v1462, %v1462
  %v1469 = vmul.f32 %v1463, %v1463
  %v1470 = vsel %vm25, %v1464, 0.0
  %1471 = vadd.xlane.f32.xlu0 %v1470
  %v1472 = vpop.xlane.xlu0 %1471
  %v1473 = vsel %vm25, %v1465, 0.0
  %1474 = vadd.xlane.f32.xlu0 %v1473
  %v1475 = vpop.xlane.xlu0 %1474
  %v1476 = vsel %vm25, %v1466, 0.0
  %1477 = vadd.xlane.f32.xlu0 %v1476
  %v1478 = vpop.xlane.xlu0 %1477
  %v1479 = vsel %vm25, %v1467, 0.0
  %1480 = vadd.xlane.f32.xlu0 %v1479
  %v1481 = vpop.xlane.xlu0 %1480
  %v1482 = vsel %vm25, %v1468, 0.0
  %1483 = vadd.xlane.f32.xlu0 %v1482
  %v1484 = vpop.xlane.xlu0 %1483
  %v1485 = vsel %vm25, %v1469, 0.0
  %1486 = vadd.xlane.f32.xlu0 %v1485
  %v1487 = vpop.xlane.xlu0 %1486
  %v1488 = vmul.f32 %v1472, %v1451
  %v1489 = vmul.f32 %v1475, %v1451
  %v1490 = vmul.f32 %v1478, %v1451
  %v1491 = vmul.f32 %v1481, %v1451
  %v1492 = vmul.f32 %v1484, %v1451
  %v1493 = vmul.f32 %v1487, %v1451
  %v1494 = vadd.f32 %v1488, 1e-05
  %v1495 = vadd.f32 %v1489, 1e-05
  %v1496 = vadd.f32 %v1490, 1e-05
  %v1497 = vadd.f32 %v1491, 1e-05
  %v1498 = vadd.f32 %v1492, 1e-05
  %v1499 = vadd.f32 %v1493, 1e-05
  %v1500 = vrsqrt.pop %v1494
  %v1501 = vrsqrt.pop %v1495
  %v1502 = vrsqrt.pop %v1496
  %v1503 = vrsqrt.pop %v1497
  %v1504 = vrsqrt.pop %v1498
  %v1505 = vrsqrt.pop %v1499
  %v1506 = vmul.f32 %v1458, %v1500
  %v1507 = vmul.f32 %v1459, %v1501
  %v1508 = vmul.f32 %v1460, %v1502
  %v1509 = vmul.f32 %v1461, %v1503
  %v1510 = vmul.f32 %v1462, %v1504
  %v1511 = vmul.f32 %v1463, %v1505
  %v1512 = vlaneseq
  %v1513 = vshrl.u32 %v1512, 7
  %v1514 = vsub.s32 0, %v1513
  %v1515 = vrot.slane %v1431, %v1514
  %v1516 = vmul.f32 %v1506, %v1515
  %v1517 = vmul.f32 %v1507, %v1515
  %v1518 = vmul.f32 %v1508, %v1515
  %v1519 = vmul.f32 %v1509, %v1515
  %v1520 = vmul.f32 %v1510, %v1515
  %v1521 = vmul.f32 %v1511, %v1515
  %v1522 = vlaneseq
  %v1523 = vshrl.u32 %v1522, 7
  %v1524 = vsub.s32 0, %v1523
  %v1525 = vrot.slane %v1432, %v1524
  %v1526 = vadd.f32 %v1516, %v1525
  %v1527 = vadd.f32 %v1517, %v1525
  %v1528 = vadd.f32 %v1518, %v1525
  %v1529 = vadd.f32 %v1519, %v1525
  %v1530 = vadd.f32 %v1520, %v1525
  %v1531 = vadd.f32 %v1521, %v1525
  %v1532 = vld [vmem:[%s2] sm:$0xff]
  %v1533 = vld [vmem:[%s2 + $0x8] sm:$0xff]
  %v1534 = vld [vmem:[%s2 + $0x10] sm:$0xff]
  %v1535 = vld [vmem:[%s2 + $0x18] sm:$0xff]
  %v1536 = vld [vmem:[%s2 + $0x20] sm:$0x1]
  %v1537 = vlaneseq
  %v1538 = vshrl.u32 %v1537, 7
  %v1539 = vsub.s32 0, %v1538
  %v1540 = vrot.slane %v1536, %v1539
  %v1542 = vsel %vm25, %v1526, 0
  %v1545 = vsel %vm25, %v1527, 0
  %v1548 = vsel %vm25, %v1528, 0
  %v1551 = vsel %vm25, %v1529, 0
  %v1554 = vsel %vm25, %v1530, 0
  %v1557 = vsel %vm25, %v1531, 0
  %1559 = vmatprep.subr.mxu0 0.0
  %1560 = vmatpush1.msra.mxu0 %v1532
  %1561 = vmatprep.subr.mxu0 0.0
  %1562 = vmatpush1.msra.mxu0 %v1533
  %1563 = vmatprep.subr.mxu0 0.0
  %1564 = vmatpush1.msra.mxu0 %v1534
  %1565 = vmatprep.subr.mxu0 0.0
  %1566 = vmatpush1.msra.mxu0 %v1535
  %1567 = vmatprep.subr.mxu0 0.0
  %1568 = vmatpush1.msra.mxu0 0.0
  %1569 = vmatprep.subr.mxu0 0.0
  %1570 = vmatpush1.msra.mxu0 0.0
  %1571 = vmatprep.subr.mxu0 0.0
  %1572 = vmatpush1.msra.mxu0 0.0
  %1573 = vmatprep.subr.mxu0 0.0
  %1574 = vmatpush1.msra.mxu0 0.0
  %1575 = vmatprep.subr.mxu0 0.0
  %1576 = vmatpush1.msra.mxu0 0.0
  %1577 = vmatprep.subr.mxu0 0.0
  %1578 = vmatpush1.msra.mxu0 0.0
  %1579 = vmatprep.subr.mxu0 0.0
  %1580 = vmatpush1.msra.mxu0 0.0
  %1581 = vmatprep.subr.mxu0 0.0
  %1582 = vmatpush1.msra.mxu0 0.0
  %1583 = vmatprep.subr.mxu0 0.0
  %1584 = vmatpush1.msra.mxu0 0.0
  %1585 = vmatprep.subr.mxu0 0.0
  %1586 = vmatpush1.msra.mxu0 0.0
  %1587 = vmatprep.subr.mxu0 0.0
  %1588 = vmatpush1.msra.mxu0 0.0
  %1589 = vmatprep.subr.mxu0 0.0
  %1590 = vmatpush1.msra.mxu0 0.0
  %1591 = vmatprep.subr.mxu0 0.0
  %1592 = vmatpush1.msra.mxu0 0.0
  %1593 = vmatprep.subr.mxu0 0.0
  %1594 = vmatpush1.msra.mxu0 0.0
  %1595 = vmatprep.subr.mxu0 0.0
  %1596 = vmatpush1.msra.mxu0 0.0
  %1597 = vmatprep.subr.mxu0 0.0
  %1598 = vmatpush1.msra.mxu0 0.0
  %1599 = vmatprep.subr.mxu0 0.0
  %1600 = vmatpush1.msra.mxu0 0.0
  %1601 = vmatprep.subr.mxu0 0.0
  %1602 = vmatpush1.msra.mxu0 0.0
  %1603 = vmatprep.subr.mxu0 0.0
  %1604 = vmatpush1.msra.mxu0 0.0
  %1605 = vmatprep.subr.mxu0 0.0
  %1606 = vmatpush1.msra.mxu0 0.0
  %1607 = vmatprep.subr.mxu0 0.0
  %1608 = vmatpush1.msra.mxu0 0.0
  %1609 = vmatprep.subr.mxu0 0.0
  %1610 = vmatpush1.msra.mxu0 0.0
  %1611 = vmatprep.subr.mxu0 0.0
  %1612 = vmatpush1.msra.mxu0 0.0
  %1613 = vmatprep.subr.mxu0 0.0
  %1614 = vmatpush1.msra.mxu0 0.0
  %1615 = vmatprep.subr.mxu0 0.0
  %1616 = vmatpush1.msra.mxu0 0.0
  %1617 = vmatprep.subr.mxu0 0.0
  %1618 = vmatpush1.msra.mxu0 0.0
  %1619 = vmatprep.subr.mxu0 0.0
  %1620 = vmatpush1.msra.mxu0 0.0
  %1621 = vmatprep.subr.mxu0 0.0
  %1622 = vmatpush1.msra.mxu0 0.0
  %1623 = vmatprep.mubr.f32.mxu0 0.0
  %1624 = vmatmul.mubr.f32.gmra.mrb[0].mxu0 %v1542
  %v1625 = vpop.f32.mrb[0].mxu0
  %v1626 = vadd.f32 %v1540, %v1625
  %v1627 = vpop.f32.mrb[0].mxu0
  %1628 = vmatprep.mubr.f32.mxu0 0.0
  %1629 = vmatmul.mubr.f32.gmra.mrb[0].mxu0 %v1545
  %v1630 = vpop.f32.mrb[0].mxu0
  %v1631 = vadd.f32 %v1540, %v1630
  %v1632 = vpop.f32.mrb[0].mxu0
  %1633 = vmatprep.mubr.f32.mxu0 0.0
  %1634 = vmatmul.mubr.f32.gmra.mrb[0].mxu0 %v1548
  %v1635 = vpop.f32.mrb[0].mxu0
  %v1636 = vadd.f32 %v1540, %v1635
  %v1637 = vpop.f32.mrb[0].mxu0
  %1638 = vmatprep.mubr.f32.mxu0 0.0
  %1639 = vmatmul.mubr.f32.gmra.mrb[0].mxu0 %v1551
  %v1640 = vpop.f32.mrb[0].mxu0
  %v1641 = vadd.f32 %v1540, %v1640
  %v1642 = vpop.f32.mrb[0].mxu0
  %1643 = vmatprep.mubr.f32.mxu0 0.0
  %1644 = vmatmul.mubr.f32.gmra.mrb[0].mxu0 %v1554
  %v1645 = vpop.f32.mrb[0].mxu0
  %v1646 = vadd.f32 %v1540, %v1645
  %v1647 = vpop.f32.mrb[0].mxu0
  %1648 = vmatprep.mubr.f32.mxu0 0.0
  %1649 = vmatmul.mubr.f32.gmra.mrb[0].mxu0 %v1557
  %v1650 = vpop.f32.mrb[0].mxu0
  %v1651 = vadd.f32 %v1540, %v1650
  %v1652 = vpop.f32.mrb[0].mxu0
  %1653 = vdwg.mxu0
  %v1654 = vmax.f32 %v1626, 0.0
  %v1655 = vmax.f32 %v1631, 0.0
  %v1656 = vmax.f32 %v1636, 0.0
  %v1657 = vmax.f32 %v1641, 0.0
  %v1658 = vmax.f32 %v1646, 0.0
  %v1659 = vmax.f32 %v1651, 0.0
  %v1660 = vld [vmem:[%s1 + $0x110] sm:$0xff]
  %v1661 = vld [vmem:[%s1 + $0x118] sm:$0xff]
  %v1662 = vld [vmem:[%s1 + $0x120] sm:$0xff]
  %v1663 = vld [vmem:[%s1 + $0x128] sm:$0xff]
  %v1664 = vld [vmem:[%s1 + $0x130] sm:$0xff]
  %v1665 = vld [vmem:[%s1 + $0x138] sm:$0xff]
  %v1666 = vld [vmem:[%s1 + $0x140] sm:$0xff]
  %v1667 = vld [vmem:[%s1 + $0x148] sm:$0xff]
  %v1668 = vld [vmem:[%s1 + $0x170] sm:$0x1]
  %v1669 = vlaneseq
  %v1670 = vshrl.u32 %v1669, 7
  %v1671 = vsub.s32 0, %v1670
  %v1672 = vrot.slane %v1668, %v1671
  %vm1673 = vcmask 523264
  %v1675 = vsel %vm1673, %v1654, 0
  %v1678 = vsel %vm1673, %v1655, 0
  %v1681 = vsel %vm1673, %v1656, 0
  %v1684 = vsel %vm1673, %v1657, 0
  %v1687 = vsel %vm1673, %v1658, 0
  %v1690 = vsel %vm1673, %v1659, 0
  %1692 = vmatprep.subr.mxu0 0.0
  %1693 = vmatpush1.msra.mxu0 %v1660
  %1694 = vmatprep.subr.mxu0 0.0
  %1695 = vmatpush1.msra.mxu0 %v1661
  %1696 = vmatprep.subr.mxu0 0.0
  %1697 = vmatpush1.msra.mxu0 %v1662
  %1698 = vmatprep.subr.mxu0 0.0
  %1699 = vmatpush1.msra.mxu0 %v1663
  %1700 = vmatprep.subr.mxu0 0.0
  %1701 = vmatpush1.msra.mxu0 %v1664
  %1702 = vmatprep.subr.mxu0 0.0
  %1703 = vmatpush1.msra.mxu0 %v1665
  %1704 = vmatprep.subr.mxu0 0.0
  %1705 = vmatpush1.msra.mxu0 %v1666
  %1706 = vmatprep.subr.mxu0 0.0
  %1707 = vmatpush1.msra.mxu0 %v1667
  %1708 = vmatprep.subr.mxu0 0.0
  %1709 = vmatpush1.msra.mxu0 0.0
  %1710 = vmatprep.subr.mxu0 0.0
  %1711 = vmatpush1.msra.mxu0 0.0
  %1712 = vmatprep.subr.mxu0 0.0
  %1713 = vmatpush1.msra.mxu0 0.0
  %1714 = vmatprep.subr.mxu0 0.0
  %1715 = vmatpush1.msra.mxu0 0.0
  %1716 = vmatprep.subr.mxu0 0.0
  %1717 = vmatpush1.msra.mxu0 0.0
  %1718 = vmatprep.subr.mxu0 0.0
  %1719 = vmatpush1.msra.mxu0 0.0
  %1720 = vmatprep.subr.mxu0 0.0
  %1721 = vmatpush1.msra.mxu0 0.0
  %1722 = vmatprep.subr.mxu0 0.0
  %1723 = vmatpush1.msra.mxu0 0.0
  %1724 = vmatprep.subr.mxu0 0.0
  %1725 = vmatpush1.msra.mxu0 0.0
  %1726 = vmatprep.subr.mxu0 0.0
  %1727 = vmatpush1.msra.mxu0 0.0
  %1728 = vmatprep.subr.mxu0 0.0
  %1729 = vmatpush1.msra.mxu0 0.0
  %1730 = vmatprep.subr.mxu0 0.0
  %1731 = vmatpush1.msra.mxu0 0.0
  %1732 = vmatprep.subr.mxu0 0.0
  %1733 = vmatpush1.msra.mxu0 0.0
  %1734 = vmatprep.subr.mxu0 0.0
  %1735 = vmatpush1.msra.mxu0 0.0
  %1736 = vmatprep.subr.mxu0 0.0
  %1737 = vmatpush1.msra.mxu0 0.0
  %1738 = vmatprep.subr.mxu0 0.0
  %1739 = vmatpush1.msra.mxu0 0.0
  %1740 = vmatprep.subr.mxu0 0.0
  %1741 = vmatpush1.msra.mxu0 0.0
  %1742 = vmatprep.subr.mxu0 0.0
  %1743 = vmatpush1.msra.mxu0 0.0
  %1744 = vmatprep.subr.mxu0 0.0
  %1745 = vmatpush1.msra.mxu0 0.0
  %1746 = vmatprep.subr.mxu0 0.0
  %1747 = vmatpush1.msra.mxu0 0.0
  %1748 = vmatprep.subr.mxu0 0.0
  %1749 = vmatpush1.msra.mxu0 0.0
  %1750 = vmatprep.subr.mxu0 0.0
  %1751 = vmatpush1.msra.mxu0 0.0
  %1752 = vmatprep.subr.mxu0 0.0
  %1753 = vmatpush1.msra.mxu0 0.0
  %1754 = vmatprep.subr.mxu0 0.0
  %1755 = vmatpush1.msra.mxu0 0.0
  %1756 = vmatprep.mubr.f32.mxu0 0.0
  %1757 = vmatmul.mubr.f32.gmra.mrb[0].mxu0 %v1675
  %v1758 = vpop.f32.mrb[0].mxu0
  %v1759 = vadd.f32 %v1672, %v1758
  %v1760 = vpop.f32.mrb[0].mxu0
  %1761 = vmatprep.mubr.f32.mxu0 0.0
  %1762 = vmatmul.mubr.f32.gmra.mrb[0].mxu0 %v1678
  %v1763 = vpop.f32.mrb[0].mxu0
  %v1764 = vadd.f32 %v1672, %v1763
  %v1765 = vpop.f32.mrb[0].mxu0
  %1766 = vmatprep.mubr.f32.mxu0 0.0
  %1767 = vmatmul.mubr.f32.gmra.mrb[0].mxu0 %v1681
  %v1768 = vpop.f32.mrb[0].mxu0
  %v1769 = vadd.f32 %v1672, %v1768
  %v1770 = vpop.f32.mrb[0].mxu0
  %1771 = vmatprep.mubr.f32.mxu0 0.0
  %1772 = vmatmul.mubr.f32.gmra.mrb[0].mxu0 %v1684
  %v1773 = vpop.f32.mrb[0].mxu0
  %v1774 = vadd.f32 %v1672, %v1773
  %v1775 = vpop.f32.mrb[0].mxu0
  %1776 = vmatprep.mubr.f32.mxu0 0.0
  %1777 = vmatmul.mubr.f32.gmra.mrb[0].mxu0 %v1687
  %v1778 = vpop.f32.mrb[0].mxu0
  %v1779 = vadd.f32 %v1672, %v1778
  %v1780 = vpop.f32.mrb[0].mxu0
  %1781 = vmatprep.mubr.f32.mxu0 0.0
  %1782 = vmatmul.mubr.f32.gmra.mrb[0].mxu0 %v1690
  %v1783 = vpop.f32.mrb[0].mxu0
  %v1784 = vadd.f32 %v1672, %v1783
  %v1785 = vpop.f32.mrb[0].mxu0
  %1786 = vdwg.mxu0
  %v1787 = vadd.f32 %v1526, %v1759
  %v1788 = vadd.f32 %v1527, %v1764
  %v1789 = vadd.f32 %v1528, %v1769
  %v1790 = vadd.f32 %v1529, %v1774
  %v1791 = vadd.f32 %v1530, %v1779
  %v1792 = vadd.f32 %v1531, %v1784
  %v1793 = vld [vmem:[%s1 + $0x188] sm:$0x1]
  %v1794 = vld [vmem:[%s1 + $0x190] sm:$0x1]
  %v1795 = vsel %vm25, %v1787, 0.0
  %1796 = vadd.xlane.f32.xlu0 %v1795
  %v1797 = vpop.xlane.xlu0 %1796
  %v1798 = vsel %vm25, %v1788, 0.0
  %1799 = vadd.xlane.f32.xlu0 %v1798
  %v1800 = vpop.xlane.xlu0 %1799
  %v1801 = vsel %vm25, %v1789, 0.0
  %1802 = vadd.xlane.f32.xlu0 %v1801
  %v1803 = vpop.xlane.xlu0 %1802
  %v1804 = vsel %vm25, %v1790, 0.0
  %1805 = vadd.xlane.f32.xlu0 %v1804
  %v1806 = vpop.xlane.xlu0 %1805
  %v1807 = vsel %vm25, %v1791, 0.0
  %1808 = vadd.xlane.f32.xlu0 %v1807
  %v1809 = vpop.xlane.xlu0 %1808
  %v1810 = vsel %vm25, %v1792, 0.0
  %1811 = vadd.xlane.f32.xlu0 %v1810
  %v1812 = vpop.xlane.xlu0 %1811
  %v1813 = vmul.f32 %v1797, %v1451
  %v1814 = vmul.f32 %v1800, %v1451
  %v1815 = vmul.f32 %v1803, %v1451
  %v1816 = vmul.f32 %v1806, %v1451
  %v1817 = vmul.f32 %v1809, %v1451
  %v1818 = vmul.f32 %v1812, %v1451
  %v1819 = vsub.f32 %v1787, %v1813
  %v1820 = vsub.f32 %v1788, %v1814
  %v1821 = vsub.f32 %v1789, %v1815
  %v1822 = vsub.f32 %v1790, %v1816
  %v1823 = vsub.f32 %v1791, %v1817
  %v1824 = vsub.f32 %v1792, %v1818
  %v1825 = vmul.f32 %v1819, %v1819
  %v1826 = vmul.f32 %v1820, %v1820
  %v1827 = vmul.f32 %v1821, %v1821
  %v1828 = vmul.f32 %v1822, %v1822
  %v1829 = vmul.f32 %v1823, %v1823
  %v1830 = vmul.f32 %v1824, %v1824
  %v1831 = vsel %vm25, %v1825, 0.0
  %1832 = vadd.xlane.f32.xlu0 %v1831
  %v1833 = vpop.xlane.xlu0 %1832
  %v1834 = vsel %vm25, %v1826, 0.0
  %1835 = vadd.xlane.f32.xlu0 %v1834
  %v1836 = vpop.xlane.xlu0 %1835
  %v1837 = vsel %vm25, %v1827, 0.0
  %1838 = vadd.xlane.f32.xlu0 %v1837
  %v1839 = vpop.xlane.xlu0 %1838
  %v1840 = vsel %vm25, %v1828, 0.0
  %1841 = vadd.xlane.f32.xlu0 %v1840
  %v1842 = vpop.xlane.xlu0 %1841
  %v1843 = vsel %vm25, %v1829, 0.0
  %1844 = vadd.xlane.f32.xlu0 %v1843
  %v1845 = vpop.xlane.xlu0 %1844
  %v1846 = vsel %vm25, %v1830, 0.0
  %1847 = vadd.xlane.f32.xlu0 %v1846
  %v1848 = vpop.xlane.xlu0 %1847
  %v1849 = vmul.f32 %v1833, %v1451
  %v1850 = vmul.f32 %v1836, %v1451
  %v1851 = vmul.f32 %v1839, %v1451
  %v1852 = vmul.f32 %v1842, %v1451
  %v1853 = vmul.f32 %v1845, %v1451
  %v1854 = vmul.f32 %v1848, %v1451
  %v1855 = vadd.f32 %v1849, 1e-05
  %v1856 = vadd.f32 %v1850, 1e-05
  %v1857 = vadd.f32 %v1851, 1e-05
  %v1858 = vadd.f32 %v1852, 1e-05
  %v1859 = vadd.f32 %v1853, 1e-05
  %v1860 = vadd.f32 %v1854, 1e-05
  %v1861 = vrsqrt.pop %v1855
  %v1862 = vrsqrt.pop %v1856
  %v1863 = vrsqrt.pop %v1857
  %v1864 = vrsqrt.pop %v1858
  %v1865 = vrsqrt.pop %v1859
  %v1866 = vrsqrt.pop %v1860
  %v1867 = vmul.f32 %v1819, %v1861
  %v1868 = vmul.f32 %v1820, %v1862
  %v1869 = vmul.f32 %v1821, %v1863
  %v1870 = vmul.f32 %v1822, %v1864
  %v1871 = vmul.f32 %v1823, %v1865
  %v1872 = vmul.f32 %v1824, %v1866
  %v1873 = vlaneseq
  %v1874 = vshrl.u32 %v1873, 7
  %v1875 = vsub.s32 0, %v1874
  %v1876 = vrot.slane %v1793, %v1875
  %v1877 = vmul.f32 %v1867, %v1876
  %v1878 = vmul.f32 %v1868, %v1876
  %v1879 = vmul.f32 %v1869, %v1876
  %v1880 = vmul.f32 %v1870, %v1876
  %v1881 = vmul.f32 %v1871, %v1876
  %v1882 = vmul.f32 %v1872, %v1876
  %v1883 = vlaneseq
  %v1884 = vshrl.u32 %v1883, 7
  %v1885 = vsub.s32 0, %v1884
  %v1886 = vrot.slane %v1794, %v1885
  %v1887 = vadd.f32 %v1877, %v1886
  %v1888 = vadd.f32 %v1878, %v1886
  %v1889 = vadd.f32 %v1879, %v1886
  %v1890 = vadd.f32 %v1880, %v1886
  %v1891 = vadd.f32 %v1881, %v1886
  %v1892 = vadd.f32 %v1882, %v1886
  %v1893 = vld [vmem:[%s1 + $0x198] sm:$0xff]
  %v1894 = vld [vmem:[%s1 + $0x1a0] sm:$0xff]
  %v1895 = vld [vmem:[%s1 + $0x1a8] sm:$0xff]
  %v1896 = vld [vmem:[%s1 + $0x1b0] sm:$0xff]
  %v1897 = vld [vmem:[%s1 + $0x258] sm:$0x1]
  %v1898 = vlaneseq
  %v1899 = vshrl.u32 %v1898, 7
  %v1900 = vsub.s32 0, %v1899
  %v1901 = vrot.slane %v1897, %v1900
  %v1903 = vsel %vm25, %v1887, 0
  %v1906 = vsel %vm25, %v1888, 0
  %v1909 = vsel %vm25, %v1889, 0
  %v1912 = vsel %vm25, %v1890, 0
  %v1915 = vsel %vm25, %v1891, 0
  %v1918 = vsel %vm25, %v1892, 0
  %1920 = vmatprep.subr.mxu0 0.0
  %1921 = vmatpush1.msra.mxu0 %v1893
  %1922 = vmatprep.subr.mxu0 0.0
  %1923 = vmatpush1.msra.mxu0 %v1894
  %1924 = vmatprep.subr.mxu0 0.0
  %1925 = vmatpush1.msra.mxu0 %v1895
  %1926 = vmatprep.subr.mxu0 0.0
  %1927 = vmatpush1.msra.mxu0 %v1896
  %1928 = vmatprep.subr.mxu0 0.0
  %1929 = vmatpush1.msra.mxu0 0.0
  %1930 = vmatprep.subr.mxu0 0.0
  %1931 = vmatpush1.msra.mxu0 0.0
  %1932 = vmatprep.subr.mxu0 0.0
  %1933 = vmatpush1.msra.mxu0 0.0
  %1934 = vmatprep.subr.mxu0 0.0
  %1935 = vmatpush1.msra.mxu0 0.0
  %1936 = vmatprep.subr.mxu0 0.0
  %1937 = vmatpush1.msra.mxu0 0.0
  %1938 = vmatprep.subr.mxu0 0.0
  %1939 = vmatpush1.msra.mxu0 0.0
  %1940 = vmatprep.subr.mxu0 0.0
  %1941 = vmatpush1.msra.mxu0 0.0
  %1942 = vmatprep.subr.mxu0 0.0
  %1943 = vmatpush1.msra.mxu0 0.0
  %1944 = vmatprep.subr.mxu0 0.0
  %1945 = vmatpush1.msra.mxu0 0.0
  %1946 = vmatprep.subr.mxu0 0.0
  %1947 = vmatpush1.msra.mxu0 0.0
  %1948 = vmatprep.subr.mxu0 0.0
  %1949 = vmatpush1.msra.mxu0 0.0
  %1950 = vmatprep.subr.mxu0 0.0
  %1951 = vmatpush1.msra.mxu0 0.0
  %1952 = vmatprep.subr.mxu0 0.0
  %1953 = vmatpush1.msra.mxu0 0.0
  %1954 = vmatprep.subr.mxu0 0.0
  %1955 = vmatpush1.msra.mxu0 0.0
  %1956 = vmatprep.subr.mxu0 0.0
  %1957 = vmatpush1.msra.mxu0 0.0
  %1958 = vmatprep.subr.mxu0 0.0
  %1959 = vmatpush1.msra.mxu0 0.0
  %1960 = vmatprep.subr.mxu0 0.0
  %1961 = vmatpush1.msra.mxu0 0.0
  %1962 = vmatprep.subr.mxu0 0.0
  %1963 = vmatpush1.msra.mxu0 0.0
  %1964 = vmatprep.subr.mxu0 0.0
  %1965 = vmatpush1.msra.mxu0 0.0
  %1966 = vmatprep.subr.mxu0 0.0
  %1967 = vmatpush1.msra.mxu0 0.0
  %1968 = vmatprep.subr.mxu0 0.0
  %1969 = vmatpush1.msra.mxu0 0.0
  %1970 = vmatprep.subr.mxu0 0.0
  %1971 = vmatpush1.msra.mxu0 0.0
  %1972 = vmatprep.subr.mxu0 0.0
  %1973 = vmatpush1.msra.mxu0 0.0
  %1974 = vmatprep.subr.mxu0 0.0
  %1975 = vmatpush1.msra.mxu0 0.0
  %1976 = vmatprep.subr.mxu0 0.0
  %1977 = vmatpush1.msra.mxu0 0.0
  %1978 = vmatprep.subr.mxu0 0.0
  %1979 = vmatpush1.msra.mxu0 0.0
  %1980 = vmatprep.subr.mxu0 0.0
  %1981 = vmatpush1.msra.mxu0 0.0
  %1982 = vmatprep.subr.mxu0 0.0
  %1983 = vmatpush1.msra.mxu0 0.0
  %1984 = vmatprep.mubr.f32.mxu0 0.0
  %1985 = vmatmul.mubr.f32.gmra.mrb[0].mxu0 %v1903
  %v1986 = vpop.f32.mrb[0].mxu0
  %v1987 = vadd.f32 %v1901, %v1986
  %v1988 = vpop.f32.mrb[0].mxu0
  %1989 = vmatprep.mubr.f32.mxu0 0.0
  %1990 = vmatmul.mubr.f32.gmra.mrb[0].mxu0 %v1906
  %v1991 = vpop.f32.mrb[0].mxu0
  %v1992 = vadd.f32 %v1901, %v1991
  %v1993 = vpop.f32.mrb[0].mxu0
  %1994 = vmatprep.mubr.f32.mxu0 0.0
  %1995 = vmatmul.mubr.f32.gmra.mrb[0].mxu0 %v1909
  %v1996 = vpop.f32.mrb[0].mxu0
  %v1997 = vadd.f32 %v1901, %v1996
  %v1998 = vpop.f32.mrb[0].mxu0
  %1999 = vmatprep.mubr.f32.mxu0 0.0
  %2000 = vmatmul.mubr.f32.gmra.mrb[0].mxu0 %v1912
  %v2001 = vpop.f32.mrb[0].mxu0
  %v2002 = vadd.f32 %v1901, %v2001
  %v2003 = vpop.f32.mrb[0].mxu0
  %2004 = vmatprep.mubr.f32.mxu0 0.0
  %2005 = vmatmul.mubr.f32.gmra.mrb[0].mxu0 %v1915
  %v2006 = vpop.f32.mrb[0].mxu0
  %v2007 = vadd.f32 %v1901, %v2006
  %v2008 = vpop.f32.mrb[0].mxu0
  %2009 = vmatprep.mubr.f32.mxu0 0.0
  %2010 = vmatmul.mubr.f32.gmra.mrb[0].mxu0 %v1918
  %v2011 = vpop.f32.mrb[0].mxu0
  %v2012 = vadd.f32 %v1901, %v2011
  %v2013 = vpop.f32.mrb[0].mxu0
  %2014 = vdwg.mxu0
  %v2015 = vld [vmem:[%s1 + $0x1b8] sm:$0xff]
  %v2016 = vld [vmem:[%s1 + $0x1c0] sm:$0xff]
  %v2017 = vld [vmem:[%s1 + $0x1c8] sm:$0xff]
  %v2018 = vld [vmem:[%s1 + $0x1d0] sm:$0xff]
  %v2019 = vld [vmem:[%s1 + $0x260] sm:$0x1]
  %v2020 = vlaneseq
  %v2021 = vshrl.u32 %v2020, 7
  %v2022 = vsub.s32 0, %v2021
  %v2023 = vrot.slane %v2019, %v2022
  %2024 = vmatprep.subr.mxu0 0.0
  %2025 = vmatpush1.msra.mxu0 %v2015
  %2026 = vmatprep.subr.mxu0 0.0
  %2027 = vmatpush1.msra.mxu0 %v2016
  %2028 = vmatprep.subr.mxu0 0.0
  %2029 = vmatpush1.msra.mxu0 %v2017
  %2030 = vmatprep.subr.mxu0 0.0
  %2031 = vmatpush1.msra.mxu0 %v2018
  %2032 = vmatprep.subr.mxu0 0.0
  %2033 = vmatpush1.msra.mxu0 0.0
  %2034 = vmatprep.subr.mxu0 0.0
  %2035 = vmatpush1.msra.mxu0 0.0
  %2036 = vmatprep.subr.mxu0 0.0
  %2037 = vmatpush1.msra.mxu0 0.0
  %2038 = vmatprep.subr.mxu0 0.0
  %2039 = vmatpush1.msra.mxu0 0.0
  %2040 = vmatprep.subr.mxu0 0.0
  %2041 = vmatpush1.msra.mxu0 0.0
  %2042 = vmatprep.subr.mxu0 0.0
  %2043 = vmatpush1.msra.mxu0 0.0
  %2044 = vmatprep.subr.mxu0 0.0
  %2045 = vmatpush1.msra.mxu0 0.0
  %2046 = vmatprep.subr.mxu0 0.0
  %2047 = vmatpush1.msra.mxu0 0.0
  %2048 = vmatprep.subr.mxu0 0.0
  %2049 = vmatpush1.msra.mxu0 0.0
  %2050 = vmatprep.subr.mxu0 0.0
  %2051 = vmatpush1.msra.mxu0 0.0
  %2052 = vmatprep.subr.mxu0 0.0
  %2053 = vmatpush1.msra.mxu0 0.0
  %2054 = vmatprep.subr.mxu0 0.0
  %2055 = vmatpush1.msra.mxu0 0.0
  %2056 = vmatprep.subr.mxu0 0.0
  %2057 = vmatpush1.msra.mxu0 0.0
  %2058 = vmatprep.subr.mxu0 0.0
  %2059 = vmatpush1.msra.mxu0 0.0
  %2060 = vmatprep.subr.mxu0 0.0
  %2061 = vmatpush1.msra.mxu0 0.0
  %2062 = vmatprep.subr.mxu0 0.0
  %2063 = vmatpush1.msra.mxu0 0.0
  %2064 = vmatprep.subr.mxu0 0.0
  %2065 = vmatpush1.msra.mxu0 0.0
  %2066 = vmatprep.subr.mxu0 0.0
  %2067 = vmatpush1.msra.mxu0 0.0
  %2068 = vmatprep.subr.mxu0 0.0
  %2069 = vmatpush1.msra.mxu0 0.0
  %2070 = vmatprep.subr.mxu0 0.0
  %2071 = vmatpush1.msra.mxu0 0.0
  %2072 = vmatprep.subr.mxu0 0.0
  %2073 = vmatpush1.msra.mxu0 0.0
  %2074 = vmatprep.subr.mxu0 0.0
  %2075 = vmatpush1.msra.mxu0 0.0
  %2076 = vmatprep.subr.mxu0 0.0
  %2077 = vmatpush1.msra.mxu0 0.0
  %2078 = vmatprep.subr.mxu0 0.0
  %2079 = vmatpush1.msra.mxu0 0.0
  %2080 = vmatprep.subr.mxu0 0.0
  %2081 = vmatpush1.msra.mxu0 0.0
  %2082 = vmatprep.subr.mxu0 0.0
  %2083 = vmatpush1.msra.mxu0 0.0
  %2084 = vmatprep.subr.mxu0 0.0
  %2085 = vmatpush1.msra.mxu0 0.0
  %2086 = vmatprep.subr.mxu0 0.0
  %2087 = vmatpush1.msra.mxu0 0.0
  %2088 = vmatprep.mubr.f32.mxu0 0.0
  %2089 = vmatmul.mubr.f32.gmra.mrb[0].mxu0 %v1903
  %v2090 = vpop.f32.mrb[0].mxu0
  %v2091 = vadd.f32 %v2023, %v2090
  %v2092 = vpop.f32.mrb[0].mxu0
  %2093 = vmatprep.mubr.f32.mxu0 0.0
  %2094 = vmatmul.mubr.f32.gmra.mrb[0].mxu0 %v1906
  %v2095 = vpop.f32.mrb[0].mxu0
  %v2096 = vadd.f32 %v2023, %v2095
  %v2097 = vpop.f32.mrb[0].mxu0
  %2098 = vmatprep.mubr.f32.mxu0 0.0
  %2099 = vmatmul.mubr.f32.gmra.mrb[0].mxu0 %v1909
  %v2100 = vpop.f32.mrb[0].mxu0
  %v2101 = vadd.f32 %v2023, %v2100
  %v2102 = vpop.f32.mrb[0].mxu0
  %2103 = vmatprep.mubr.f32.mxu0 0.0
  %2104 = vmatmul.mubr.f32.gmra.mrb[0].mxu0 %v1912
  %v2105 = vpop.f32.mrb[0].mxu0
  %v2106 = vadd.f32 %v2023, %v2105
  %v2107 = vpop.f32.mrb[0].mxu0
  %2108 = vmatprep.mubr.f32.mxu0 0.0
  %2109 = vmatmul.mubr.f32.gmra.mrb[0].mxu0 %v1915
  %v2110 = vpop.f32.mrb[0].mxu0
  %v2111 = vadd.f32 %v2023, %v2110
  %v2112 = vpop.f32.mrb[0].mxu0
  %2113 = vmatprep.mubr.f32.mxu0 0.0
  %2114 = vmatmul.mubr.f32.gmra.mrb[0].mxu0 %v1918
  %v2115 = vpop.f32.mrb[0].mxu0
  %v2116 = vadd.f32 %v2023, %v2115
  %v2117 = vpop.f32.mrb[0].mxu0
  %2118 = vdwg.mxu0
  %v2119 = vld [vmem:[%s1 + $0x1d8] sm:$0xff]
  %v2120 = vld [vmem:[%s1 + $0x1e0] sm:$0xff]
  %v2121 = vld [vmem:[%s1 + $0x1e8] sm:$0xff]
  %v2122 = vld [vmem:[%s1 + $0x1f0] sm:$0xff]
  %v2123 = vld [vmem:[%s1 + $0x268] sm:$0x1]
  %v2124 = vlaneseq
  %v2125 = vshrl.u32 %v2124, 7
  %v2126 = vsub.s32 0, %v2125
  %v2127 = vrot.slane %v2123, %v2126
  %2128 = vmatprep.subr.mxu0 0.0
  %2129 = vmatpush1.msra.mxu0 %v2119
  %2130 = vmatprep.subr.mxu0 0.0
  %2131 = vmatpush1.msra.mxu0 %v2120
  %2132 = vmatprep.subr.mxu0 0.0
  %2133 = vmatpush1.msra.mxu0 %v2121
  %2134 = vmatprep.subr.mxu0 0.0
  %2135 = vmatpush1.msra.mxu0 %v2122
  %2136 = vmatprep.subr.mxu0 0.0
  %2137 = vmatpush1.msra.mxu0 0.0
  %2138 = vmatprep.subr.mxu0 0.0
  %2139 = vmatpush1.msra.mxu0 0.0
  %2140 = vmatprep.subr.mxu0 0.0
  %2141 = vmatpush1.msra.mxu0 0.0
  %2142 = vmatprep.subr.mxu0 0.0
  %2143 = vmatpush1.msra.mxu0 0.0
  %2144 = vmatprep.subr.mxu0 0.0
  %2145 = vmatpush1.msra.mxu0 0.0
  %2146 = vmatprep.subr.mxu0 0.0
  %2147 = vmatpush1.msra.mxu0 0.0
  %2148 = vmatprep.subr.mxu0 0.0
  %2149 = vmatpush1.msra.mxu0 0.0
  %2150 = vmatprep.subr.mxu0 0.0
  %2151 = vmatpush1.msra.mxu0 0.0
  %2152 = vmatprep.subr.mxu0 0.0
  %2153 = vmatpush1.msra.mxu0 0.0
  %2154 = vmatprep.subr.mxu0 0.0
  %2155 = vmatpush1.msra.mxu0 0.0
  %2156 = vmatprep.subr.mxu0 0.0
  %2157 = vmatpush1.msra.mxu0 0.0
  %2158 = vmatprep.subr.mxu0 0.0
  %2159 = vmatpush1.msra.mxu0 0.0
  %2160 = vmatprep.subr.mxu0 0.0
  %2161 = vmatpush1.msra.mxu0 0.0
  %2162 = vmatprep.subr.mxu0 0.0
  %2163 = vmatpush1.msra.mxu0 0.0
  %2164 = vmatprep.subr.mxu0 0.0
  %2165 = vmatpush1.msra.mxu0 0.0
  %2166 = vmatprep.subr.mxu0 0.0
  %2167 = vmatpush1.msra.mxu0 0.0
  %2168 = vmatprep.subr.mxu0 0.0
  %2169 = vmatpush1.msra.mxu0 0.0
  %2170 = vmatprep.subr.mxu0 0.0
  %2171 = vmatpush1.msra.mxu0 0.0
  %2172 = vmatprep.subr.mxu0 0.0
  %2173 = vmatpush1.msra.mxu0 0.0
  %2174 = vmatprep.subr.mxu0 0.0
  %2175 = vmatpush1.msra.mxu0 0.0
  %2176 = vmatprep.subr.mxu0 0.0
  %2177 = vmatpush1.msra.mxu0 0.0
  %2178 = vmatprep.subr.mxu0 0.0
  %2179 = vmatpush1.msra.mxu0 0.0
  %2180 = vmatprep.subr.mxu0 0.0
  %2181 = vmatpush1.msra.mxu0 0.0
  %2182 = vmatprep.subr.mxu0 0.0
  %2183 = vmatpush1.msra.mxu0 0.0
  %2184 = vmatprep.subr.mxu0 0.0
  %2185 = vmatpush1.msra.mxu0 0.0
  %2186 = vmatprep.subr.mxu0 0.0
  %2187 = vmatpush1.msra.mxu0 0.0
  %2188 = vmatprep.subr.mxu0 0.0
  %2189 = vmatpush1.msra.mxu0 0.0
  %2190 = vmatprep.subr.mxu0 0.0
  %2191 = vmatpush1.msra.mxu0 0.0
  %2192 = vmatprep.mubr.f32.mxu0 0.0
  %2193 = vmatmul.mubr.f32.gmra.mrb[0].mxu0 %v1903
  %v2194 = vpop.f32.mrb[0].mxu0
  %v2195 = vadd.f32 %v2127, %v2194
  %v2196 = vpop.f32.mrb[0].mxu0
  %2197 = vmatprep.mubr.f32.mxu0 0.0
  %2198 = vmatmul.mubr.f32.gmra.mrb[0].mxu0 %v1906
  %v2199 = vpop.f32.mrb[0].mxu0
  %v2200 = vadd.f32 %v2127, %v2199
  %v2201 = vpop.f32.mrb[0].mxu0
  %2202 = vmatprep.mubr.f32.mxu0 0.0
  %2203 = vmatmul.mubr.f32.gmra.mrb[0].mxu0 %v1909
  %v2204 = vpop.f32.mrb[0].mxu0
  %v2205 = vadd.f32 %v2127, %v2204
  %v2206 = vpop.f32.mrb[0].mxu0
  %2207 = vmatprep.mubr.f32.mxu0 0.0
  %2208 = vmatmul.mubr.f32.gmra.mrb[0].mxu0 %v1912
  %v2209 = vpop.f32.mrb[0].mxu0
  %v2210 = vadd.f32 %v2127, %v2209
  %v2211 = vpop.f32.mrb[0].mxu0
  %2212 = vmatprep.mubr.f32.mxu0 0.0
  %2213 = vmatmul.mubr.f32.gmra.mrb[0].mxu0 %v1915
  %v2214 = vpop.f32.mrb[0].mxu0
  %v2215 = vadd.f32 %v2127, %v2214
  %v2216 = vpop.f32.mrb[0].mxu0
  %2217 = vmatprep.mubr.f32.mxu0 0.0
  %2218 = vmatmul.mubr.f32.gmra.mrb[0].mxu0 %v1918
  %v2219 = vpop.f32.mrb[0].mxu0
  %v2220 = vadd.f32 %v2127, %v2219
  %v2221 = vpop.f32.mrb[0].mxu0
  %2222 = vdwg.mxu0
  %v2223 = vmul.f32 %v1987, %v2091
  %v2224 = vmul.f32 %v1992, %v2096
  %v2225 = vmul.f32 %v1997, %v2101
  %v2227 = vsel %vm25, %v2223, 0
  %v2230 = vsel %vm25, %v2224, 0
  %v2233 = vsel %vm25, %v2225, 0
  %2235 = vmatprep.subr.mxu0 0.0
  %2236 = vmatpush1.msra.mxu0 %v17
  %2237 = vmatprep.subr.mxu0 0.0
  %2238 = vmatpush1.msra.mxu0 %v18
  %2239 = vmatprep.subr.mxu0 0.0
  %2240 = vmatpush1.msra.mxu0 %v19
  %2241 = vmatprep.subr.mxu0 0.0
  %2242 = vmatpush1.msra.mxu0 %v20
  %2243 = vmatprep.subr.mxu0 0.0
  %2244 = vmatpush1.msra.mxu0 0.0
  %2245 = vmatprep.subr.mxu0 0.0
  %2246 = vmatpush1.msra.mxu0 0.0
  %2247 = vmatprep.subr.mxu0 0.0
  %2248 = vmatpush1.msra.mxu0 0.0
  %2249 = vmatprep.subr.mxu0 0.0
  %2250 = vmatpush1.msra.mxu0 0.0
  %2251 = vmatprep.subr.mxu0 0.0
  %2252 = vmatpush1.msra.mxu0 0.0
  %2253 = vmatprep.subr.mxu0 0.0
  %2254 = vmatpush1.msra.mxu0 0.0
  %2255 = vmatprep.subr.mxu0 0.0
  %2256 = vmatpush1.msra.mxu0 0.0
  %2257 = vmatprep.subr.mxu0 0.0
  %2258 = vmatpush1.msra.mxu0 0.0
  %2259 = vmatprep.subr.mxu0 0.0
  %2260 = vmatpush1.msra.mxu0 0.0
  %2261 = vmatprep.subr.mxu0 0.0
  %2262 = vmatpush1.msra.mxu0 0.0
  %2263 = vmatprep.subr.mxu0 0.0
  %2264 = vmatpush1.msra.mxu0 0.0
  %2265 = vmatprep.subr.mxu0 0.0
  %2266 = vmatpush1.msra.mxu0 0.0
  %2267 = vmatprep.subr.mxu0 0.0
  %2268 = vmatpush1.msra.mxu0 0.0
  %2269 = vmatprep.subr.mxu0 0.0
  %2270 = vmatpush1.msra.mxu0 0.0
  %2271 = vmatprep.subr.mxu0 0.0
  %2272 = vmatpush1.msra.mxu0 0.0
  %2273 = vmatprep.subr.mxu0 0.0
  %2274 = vmatpush1.msra.mxu0 0.0
  %2275 = vmatprep.subr.mxu0 0.0
  %2276 = vmatpush1.msra.mxu0 0.0
  %2277 = vmatprep.subr.mxu0 0.0
  %2278 = vmatpush1.msra.mxu0 0.0
  %2279 = vmatprep.subr.mxu0 0.0
  %2280 = vmatpush1.msra.mxu0 0.0
  %2281 = vmatprep.subr.mxu0 0.0
  %2282 = vmatpush1.msra.mxu0 0.0
  %2283 = vmatprep.subr.mxu0 0.0
  %2284 = vmatpush1.msra.mxu0 0.0
  %2285 = vmatprep.subr.mxu0 0.0
  %2286 = vmatpush1.msra.mxu0 0.0
  %2287 = vmatprep.subr.mxu0 0.0
  %2288 = vmatpush1.msra.mxu0 0.0
  %2289 = vmatprep.subr.mxu0 0.0
  %2290 = vmatpush1.msra.mxu0 0.0
  %2291 = vmatprep.subr.mxu0 0.0
  %2292 = vmatpush1.msra.mxu0 0.0
  %2293 = vmatprep.subr.mxu0 0.0
  %2294 = vmatpush1.msra.mxu0 0.0
  %2295 = vmatprep.subr.mxu0 0.0
  %2296 = vmatpush1.msra.mxu0 0.0
  %2297 = vmatprep.subr.mxu0 0.0
  %2298 = vmatpush1.msra.mxu0 0.0
  %2299 = vmatprep.mubr.f32.mxu0 0.0
  %2300 = vmatmul.mubr.f32.gmra.mrb[0].mxu0 %v2227
  %v2301 = vpop.f32.mrb[0].mxu0
  %v2302 = vadd.f32 0.0, %v2301
  %v2303 = vpop.f32.mrb[0].mxu0
  %2304 = vmatprep.mubr.f32.mxu0 0.0
  %2305 = vmatmul.mubr.f32.gmra.mrb[0].mxu0 %v2230
  %v2306 = vpop.f32.mrb[0].mxu0
  %v2307 = vadd.f32 0.0, %v2306
  %v2308 = vpop.f32.mrb[0].mxu0
  %2309 = vmatprep.mubr.f32.mxu0 0.0
  %2310 = vmatmul.mubr.f32.gmra.mrb[0].mxu0 %v2233
  %v2311 = vpop.f32.mrb[0].mxu0
  %v2312 = vadd.f32 0.0, %v2311
  %v2313 = vpop.f32.mrb[0].mxu0
  %2314 = vdwg.mxu0
  %v2315 = vmul.f32 %v1987, %v2106
  %v2316 = vmul.f32 %v1992, %v2111
  %v2317 = vmul.f32 %v1997, %v2116
  %v2319 = vsel %vm25, %v2315, 0
  %v2322 = vsel %vm25, %v2316, 0
  %v2325 = vsel %vm25, %v2317, 0
  %2327 = vmatprep.subr.mxu0 0.0
  %2328 = vmatpush1.msra.mxu0 %v17
  %2329 = vmatprep.subr.mxu0 0.0
  %2330 = vmatpush1.msra.mxu0 %v18
  %2331 = vmatprep.subr.mxu0 0.0
  %2332 = vmatpush1.msra.mxu0 %v19
  %2333 = vmatprep.subr.mxu0 0.0
  %2334 = vmatpush1.msra.mxu0 %v20
  %2335 = vmatprep.subr.mxu0 0.0
  %2336 = vmatpush1.msra.mxu0 0.0
  %2337 = vmatprep.subr.mxu0 0.0
  %2338 = vmatpush1.msra.mxu0 0.0
  %2339 = vmatprep.subr.mxu0 0.0
  %2340 = vmatpush1.msra.mxu0 0.0
  %2341 = vmatprep.subr.mxu0 0.0
  %2342 = vmatpush1.msra.mxu0 0.0
  %2343 = vmatprep.subr.mxu0 0.0
  %2344 = vmatpush1.msra.mxu0 0.0
  %2345 = vmatprep.subr.mxu0 0.0
  %2346 = vmatpush1.msra.mxu0 0.0
  %2347 = vmatprep.subr.mxu0 0.0
  %2348 = vmatpush1.msra.mxu0 0.0
  %2349 = vmatprep.subr.mxu0 0.0
  %2350 = vmatpush1.msra.mxu0 0.0
  %2351 = vmatprep.subr.mxu0 0.0
  %2352 = vmatpush1.msra.mxu0 0.0
  %2353 = vmatprep.subr.mxu0 0.0
  %2354 = vmatpush1.msra.mxu0 0.0
  %2355 = vmatprep.subr.mxu0 0.0
  %2356 = vmatpush1.msra.mxu0 0.0
  %2357 = vmatprep.subr.mxu0 0.0
  %2358 = vmatpush1.msra.mxu0 0.0
  %2359 = vmatprep.subr.mxu0 0.0
  %2360 = vmatpush1.msra.mxu0 0.0
  %2361 = vmatprep.subr.mxu0 0.0
  %2362 = vmatpush1.msra.mxu0 0.0
  %2363 = vmatprep.subr.mxu0 0.0
  %2364 = vmatpush1.msra.mxu0 0.0
  %2365 = vmatprep.subr.mxu0 0.0
  %2366 = vmatpush1.msra.mxu0 0.0
  %2367 = vmatprep.subr.mxu0 0.0
  %2368 = vmatpush1.msra.mxu0 0.0
  %2369 = vmatprep.subr.mxu0 0.0
  %2370 = vmatpush1.msra.mxu0 0.0
  %2371 = vmatprep.subr.mxu0 0.0
  %2372 = vmatpush1.msra.mxu0 0.0
  %2373 = vmatprep.subr.mxu0 0.0
  %2374 = vmatpush1.msra.mxu0 0.0
  %2375 = vmatprep.subr.mxu0 0.0
  %2376 = vmatpush1.msra.mxu0 0.0
  %2377 = vmatprep.subr.mxu0 0.0
  %2378 = vmatpush1.msra.mxu0 0.0
  %2379 = vmatprep.subr.mxu0 0.0
  %2380 = vmatpush1.msra.mxu0 0.0
  %2381 = vmatprep.subr.mxu0 0.0
  %2382 = vmatpush1.msra.mxu0 0.0
  %2383 = vmatprep.subr.mxu0 0.0
  %2384 = vmatpush1.msra.mxu0 0.0
  %2385 = vmatprep.subr.mxu0 0.0
  %2386 = vmatpush1.msra.mxu0 0.0
  %2387 = vmatprep.subr.mxu0 0.0
  %2388 = vmatpush1.msra.mxu0 0.0
  %2389 = vmatprep.subr.mxu0 0.0
  %2390 = vmatpush1.msra.mxu0 0.0
  %2391 = vmatprep.mubr.f32.mxu0 0.0
  %2392 = vmatmul.mubr.f32.gmra.mrb[0].mxu0 %v2319
  %v2393 = vpop.f32.mrb[0].mxu0
  %v2394 = vadd.f32 0.0, %v2393
  %v2395 = vpop.f32.mrb[0].mxu0
  %2396 = vmatprep.mubr.f32.mxu0 0.0
  %2397 = vmatmul.mubr.f32.gmra.mrb[0].mxu0 %v2322
  %v2398 = vpop.f32.mrb[0].mxu0
  %v2399 = vadd.f32 0.0, %v2398
  %v2400 = vpop.f32.mrb[0].mxu0
  %2401 = vmatprep.mubr.f32.mxu0 0.0
  %2402 = vmatmul.mubr.f32.gmra.mrb[0].mxu0 %v2325
  %v2403 = vpop.f32.mrb[0].mxu0
  %v2404 = vadd.f32 0.0, %v2403
  %v2405 = vpop.f32.mrb[0].mxu0
  %2406 = vdwg.mxu0
  %v2407 = vmax.f32 %v2302, %v2394
  %v2408 = vmax.f32 %v2307, %v2399
  %v2409 = vmax.f32 %v2312, %v2404
  %v2410 = vsub.f32 %v2302, %v2407
  %v2411 = vsub.f32 %v2307, %v2408
  %v2412 = vsub.f32 %v2312, %v2409
  %v2413 = vmul.f32 %v2410, 1.442695
  %v2414 = vpow.pop %v2413
  %v2415 = vmul.f32 %v2411, 1.442695
  %v2416 = vpow.pop %v2415
  %v2417 = vmul.f32 %v2412, 1.442695
  %v2418 = vpow.pop %v2417
  %v2419 = vsub.f32 %v2394, %v2407
  %v2420 = vsub.f32 %v2399, %v2408
  %v2421 = vsub.f32 %v2404, %v2409
  %v2422 = vmul.f32 %v2419, 1.442695
  %v2423 = vpow.pop %v2422
  %v2424 = vmul.f32 %v2420, 1.442695
  %v2425 = vpow.pop %v2424
  %v2426 = vmul.f32 %v2421, 1.442695
  %v2427 = vpow.pop %v2426
  %v2428 = vadd.f32 %v2414, %v2423
  %v2429 = vadd.f32 %v2416, %v2425
  %v2430 = vadd.f32 %v2418, %v2427
  %v2431 = vrcp.pop %v2428
  %v2432 = vrcp.pop %v2429
  %v2433 = vrcp.pop %v2430
  %v2434 = vmul.f32 %v2414, %v2431
  %v2435 = vmul.f32 %v2416, %v2432
  %v2436 = vmul.f32 %v2418, %v2433
  %v2438 = vsel %vm25, %v2434, 0
  %v2441 = vsel %vm25, %v2435, 0
  %v2444 = vsel %vm25, %v2436, 0
  %2446 = vmatprep.subr.mxu0 0.0
  %2447 = vmatpush1.msra.mxu0 %v21
  %2448 = vmatprep.subr.mxu0 0.0
  %2449 = vmatpush1.msra.mxu0 %v22
  %2450 = vmatprep.subr.mxu0 0.0
  %2451 = vmatpush1.msra.mxu0 %v23
  %2452 = vmatprep.subr.mxu0 0.0
  %2453 = vmatpush1.msra.mxu0 %v24
  %2454 = vmatprep.subr.mxu0 0.0
  %2455 = vmatpush1.msra.mxu0 0.0
  %2456 = vmatprep.subr.mxu0 0.0
  %2457 = vmatpush1.msra.mxu0 0.0
  %2458 = vmatprep.subr.mxu0 0.0
  %2459 = vmatpush1.msra.mxu0 0.0
  %2460 = vmatprep.subr.mxu0 0.0
  %2461 = vmatpush1.msra.mxu0 0.0
  %2462 = vmatprep.subr.mxu0 0.0
  %2463 = vmatpush1.msra.mxu0 0.0
  %2464 = vmatprep.subr.mxu0 0.0
  %2465 = vmatpush1.msra.mxu0 0.0
  %2466 = vmatprep.subr.mxu0 0.0
  %2467 = vmatpush1.msra.mxu0 0.0
  %2468 = vmatprep.subr.mxu0 0.0
  %2469 = vmatpush1.msra.mxu0 0.0
  %2470 = vmatprep.subr.mxu0 0.0
  %2471 = vmatpush1.msra.mxu0 0.0
  %2472 = vmatprep.subr.mxu0 0.0
  %2473 = vmatpush1.msra.mxu0 0.0
  %2474 = vmatprep.subr.mxu0 0.0
  %2475 = vmatpush1.msra.mxu0 0.0
  %2476 = vmatprep.subr.mxu0 0.0
  %2477 = vmatpush1.msra.mxu0 0.0
  %2478 = vmatprep.subr.mxu0 0.0
  %2479 = vmatpush1.msra.mxu0 0.0
  %2480 = vmatprep.subr.mxu0 0.0
  %2481 = vmatpush1.msra.mxu0 0.0
  %2482 = vmatprep.subr.mxu0 0.0
  %2483 = vmatpush1.msra.mxu0 0.0
  %2484 = vmatprep.subr.mxu0 0.0
  %2485 = vmatpush1.msra.mxu0 0.0
  %2486 = vmatprep.subr.mxu0 0.0
  %2487 = vmatpush1.msra.mxu0 0.0
  %2488 = vmatprep.subr.mxu0 0.0
  %2489 = vmatpush1.msra.mxu0 0.0
  %2490 = vmatprep.subr.mxu0 0.0
  %2491 = vmatpush1.msra.mxu0 0.0
  %2492 = vmatprep.subr.mxu0 0.0
  %2493 = vmatpush1.msra.mxu0 0.0
  %2494 = vmatprep.subr.mxu0 0.0
  %2495 = vmatpush1.msra.mxu0 0.0
  %2496 = vmatprep.subr.mxu0 0.0
  %2497 = vmatpush1.msra.mxu0 0.0
  %2498 = vmatprep.subr.mxu0 0.0
  %2499 = vmatpush1.msra.mxu0 0.0
  %2500 = vmatprep.subr.mxu0 0.0
  %2501 = vmatpush1.msra.mxu0 0.0
  %2502 = vmatprep.subr.mxu0 0.0
  %2503 = vmatpush1.msra.mxu0 0.0
  %2504 = vmatprep.subr.mxu0 0.0
  %2505 = vmatpush1.msra.mxu0 0.0
  %2506 = vmatprep.subr.mxu0 0.0
  %2507 = vmatpush1.msra.mxu0 0.0
  %2508 = vmatprep.subr.mxu0 0.0
  %2509 = vmatpush1.msra.mxu0 0.0
  %2510 = vmatprep.mubr.f32.mxu0 0.0
  %2511 = vmatmul.mubr.f32.gmra.mrb[0].mxu0 %v2438
  %v2512 = vpop.f32.mrb[0].mxu0
  %v2513 = vadd.f32 0.0, %v2512
  %v2514 = vpop.f32.mrb[0].mxu0
  %2515 = vmatprep.mubr.f32.mxu0 0.0
  %2516 = vmatmul.mubr.f32.gmra.mrb[0].mxu0 %v2441
  %v2517 = vpop.f32.mrb[0].mxu0
  %v2518 = vadd.f32 0.0, %v2517
  %v2519 = vpop.f32.mrb[0].mxu0
  %2520 = vmatprep.mubr.f32.mxu0 0.0
  %2521 = vmatmul.mubr.f32.gmra.mrb[0].mxu0 %v2444
  %v2522 = vpop.f32.mrb[0].mxu0
  %v2523 = vadd.f32 0.0, %v2522
  %v2524 = vpop.f32.mrb[0].mxu0
  %2525 = vdwg.mxu0
  %v2526 = vmul.f32 %v2513, %v2195
  %v2527 = vmul.f32 %v2518, %v2200
  %v2528 = vmul.f32 %v2523, %v2205
  %v2529 = vmul.f32 %v2423, %v2431
  %v2530 = vmul.f32 %v2425, %v2432
  %v2531 = vmul.f32 %v2427, %v2433
  %v2533 = vsel %vm25, %v2529, 0
  %v2536 = vsel %vm25, %v2530, 0
  %v2539 = vsel %vm25, %v2531, 0
  %2541 = vmatprep.subr.mxu0 0.0
  %2542 = vmatpush1.msra.mxu0 %v21
  %2543 = vmatprep.subr.mxu0 0.0
  %2544 = vmatpush1.msra.mxu0 %v22
  %2545 = vmatprep.subr.mxu0 0.0
  %2546 = vmatpush1.msra.mxu0 %v23
  %2547 = vmatprep.subr.mxu0 0.0
  %2548 = vmatpush1.msra.mxu0 %v24
  %2549 = vmatprep.subr.mxu0 0.0
  %2550 = vmatpush1.msra.mxu0 0.0
  %2551 = vmatprep.subr.mxu0 0.0
  %2552 = vmatpush1.msra.mxu0 0.0
  %2553 = vmatprep.subr.mxu0 0.0
  %2554 = vmatpush1.msra.mxu0 0.0
  %2555 = vmatprep.subr.mxu0 0.0
  %2556 = vmatpush1.msra.mxu0 0.0
  %2557 = vmatprep.subr.mxu0 0.0
  %2558 = vmatpush1.msra.mxu0 0.0
  %2559 = vmatprep.subr.mxu0 0.0
  %2560 = vmatpush1.msra.mxu0 0.0
  %2561 = vmatprep.subr.mxu0 0.0
  %2562 = vmatpush1.msra.mxu0 0.0
  %2563 = vmatprep.subr.mxu0 0.0
  %2564 = vmatpush1.msra.mxu0 0.0
  %2565 = vmatprep.subr.mxu0 0.0
  %2566 = vmatpush1.msra.mxu0 0.0
  %2567 = vmatprep.subr.mxu0 0.0
  %2568 = vmatpush1.msra.mxu0 0.0
  %2569 = vmatprep.subr.mxu0 0.0
  %2570 = vmatpush1.msra.mxu0 0.0
  %2571 = vmatprep.subr.mxu0 0.0
  %2572 = vmatpush1.msra.mxu0 0.0
  %2573 = vmatprep.subr.mxu0 0.0
  %2574 = vmatpush1.msra.mxu0 0.0
  %2575 = vmatprep.subr.mxu0 0.0
  %2576 = vmatpush1.msra.mxu0 0.0
  %2577 = vmatprep.subr.mxu0 0.0
  %2578 = vmatpush1.msra.mxu0 0.0
  %2579 = vmatprep.subr.mxu0 0.0
  %2580 = vmatpush1.msra.mxu0 0.0
  %2581 = vmatprep.subr.mxu0 0.0
  %2582 = vmatpush1.msra.mxu0 0.0
  %2583 = vmatprep.subr.mxu0 0.0
  %2584 = vmatpush1.msra.mxu0 0.0
  %2585 = vmatprep.subr.mxu0 0.0
  %2586 = vmatpush1.msra.mxu0 0.0
  %2587 = vmatprep.subr.mxu0 0.0
  %2588 = vmatpush1.msra.mxu0 0.0
  %2589 = vmatprep.subr.mxu0 0.0
  %2590 = vmatpush1.msra.mxu0 0.0
  %2591 = vmatprep.subr.mxu0 0.0
  %2592 = vmatpush1.msra.mxu0 0.0
  %2593 = vmatprep.subr.mxu0 0.0
  %2594 = vmatpush1.msra.mxu0 0.0
  %2595 = vmatprep.subr.mxu0 0.0
  %2596 = vmatpush1.msra.mxu0 0.0
  %2597 = vmatprep.subr.mxu0 0.0
  %2598 = vmatpush1.msra.mxu0 0.0
  %2599 = vmatprep.subr.mxu0 0.0
  %2600 = vmatpush1.msra.mxu0 0.0
  %2601 = vmatprep.subr.mxu0 0.0
  %2602 = vmatpush1.msra.mxu0 0.0
  %2603 = vmatprep.subr.mxu0 0.0
  %2604 = vmatpush1.msra.mxu0 0.0
  %2605 = vmatprep.mubr.f32.mxu0 0.0
  %2606 = vmatmul.mubr.f32.gmra.mrb[0].mxu0 %v2533
  %v2607 = vpop.f32.mrb[0].mxu0
  %v2608 = vadd.f32 0.0, %v2607
  %v2609 = vpop.f32.mrb[0].mxu0
  %2610 = vmatprep.mubr.f32.mxu0 0.0
  %2611 = vmatmul.mubr.f32.gmra.mrb[0].mxu0 %v2536
  %v2612 = vpop.f32.mrb[0].mxu0
  %v2613 = vadd.f32 0.0, %v2612
  %v2614 = vpop.f32.mrb[0].mxu0
  %2615 = vmatprep.mubr.f32.mxu0 0.0
  %2616 = vmatmul.mubr.f32.gmra.mrb[0].mxu0 %v2539
  %v2617 = vpop.f32.mrb[0].mxu0
  %v2618 = vadd.f32 0.0, %v2617
  %v2619 = vpop.f32.mrb[0].mxu0
  %2620 = vdwg.mxu0
  %v2621 = vmul.f32 %v2608, %v2210
  %v2622 = vmul.f32 %v2613, %v2215
  %v2623 = vmul.f32 %v2618, %v2220
  %v2624 = vadd.f32 %v2526, %v2621
  %v2625 = vadd.f32 %v2527, %v2622
  %v2626 = vadd.f32 %v2528, %v2623
  %v2627 = vmul.f32 %v2002, %v2091
  %v2628 = vmul.f32 %v2007, %v2096
  %v2629 = vmul.f32 %v2012, %v2101
  %v2631 = vsel %vm25, %v2627, 0
  %v2634 = vsel %vm25, %v2628, 0
  %v2637 = vsel %vm25, %v2629, 0
  %2639 = vmatprep.subr.mxu0 0.0
  %2640 = vmatpush1.msra.mxu0 %v17
  %2641 = vmatprep.subr.mxu0 0.0
  %2642 = vmatpush1.msra.mxu0 %v18
  %2643 = vmatprep.subr.mxu0 0.0
  %2644 = vmatpush1.msra.mxu0 %v19
  %2645 = vmatprep.subr.mxu0 0.0
  %2646 = vmatpush1.msra.mxu0 %v20
  %2647 = vmatprep.subr.mxu0 0.0
  %2648 = vmatpush1.msra.mxu0 0.0
  %2649 = vmatprep.subr.mxu0 0.0
  %2650 = vmatpush1.msra.mxu0 0.0
  %2651 = vmatprep.subr.mxu0 0.0
  %2652 = vmatpush1.msra.mxu0 0.0
  %2653 = vmatprep.subr.mxu0 0.0
  %2654 = vmatpush1.msra.mxu0 0.0
  %2655 = vmatprep.subr.mxu0 0.0
  %2656 = vmatpush1.msra.mxu0 0.0
  %2657 = vmatprep.subr.mxu0 0.0
  %2658 = vmatpush1.msra.mxu0 0.0
  %2659 = vmatprep.subr.mxu0 0.0
  %2660 = vmatpush1.msra.mxu0 0.0
  %2661 = vmatprep.subr.mxu0 0.0
  %2662 = vmatpush1.msra.mxu0 0.0
  %2663 = vmatprep.subr.mxu0 0.0
  %2664 = vmatpush1.msra.mxu0 0.0
  %2665 = vmatprep.subr.mxu0 0.0
  %2666 = vmatpush1.msra.mxu0 0.0
  %2667 = vmatprep.subr.mxu0 0.0
  %2668 = vmatpush1.msra.mxu0 0.0
  %2669 = vmatprep.subr.mxu0 0.0
  %2670 = vmatpush1.msra.mxu0 0.0
  %2671 = vmatprep.subr.mxu0 0.0
  %2672 = vmatpush1.msra.mxu0 0.0
  %2673 = vmatprep.subr.mxu0 0.0
  %2674 = vmatpush1.msra.mxu0 0.0
  %2675 = vmatprep.subr.mxu0 0.0
  %2676 = vmatpush1.msra.mxu0 0.0
  %2677 = vmatprep.subr.mxu0 0.0
  %2678 = vmatpush1.msra.mxu0 0.0
  %2679 = vmatprep.subr.mxu0 0.0
  %2680 = vmatpush1.msra.mxu0 0.0
  %2681 = vmatprep.subr.mxu0 0.0
  %2682 = vmatpush1.msra.mxu0 0.0
  %2683 = vmatprep.subr.mxu0 0.0
  %2684 = vmatpush1.msra.mxu0 0.0
  %2685 = vmatprep.subr.mxu0 0.0
  %2686 = vmatpush1.msra.mxu0 0.0
  %2687 = vmatprep.subr.mxu0 0.0
  %2688 = vmatpush1.msra.mxu0 0.0
  %2689 = vmatprep.subr.mxu0 0.0
  %2690 = vmatpush1.msra.mxu0 0.0
  %2691 = vmatprep.subr.mxu0 0.0
  %2692 = vmatpush1.msra.mxu0 0.0
  %2693 = vmatprep.subr.mxu0 0.0
  %2694 = vmatpush1.msra.mxu0 0.0
  %2695 = vmatprep.subr.mxu0 0.0
  %2696 = vmatpush1.msra.mxu0 0.0
  %2697 = vmatprep.subr.mxu0 0.0
  %2698 = vmatpush1.msra.mxu0 0.0
  %2699 = vmatprep.subr.mxu0 0.0
  %2700 = vmatpush1.msra.mxu0 0.0
  %2701 = vmatprep.subr.mxu0 0.0
  %2702 = vmatpush1.msra.mxu0 0.0
  %2703 = vmatprep.mubr.f32.mxu0 0.0
  %2704 = vmatmul.mubr.f32.gmra.mrb[0].mxu0 %v2631
  %v2705 = vpop.f32.mrb[0].mxu0
  %v2706 = vadd.f32 0.0, %v2705
  %v2707 = vpop.f32.mrb[0].mxu0
  %2708 = vmatprep.mubr.f32.mxu0 0.0
  %2709 = vmatmul.mubr.f32.gmra.mrb[0].mxu0 %v2634
  %v2710 = vpop.f32.mrb[0].mxu0
  %v2711 = vadd.f32 0.0, %v2710
  %v2712 = vpop.f32.mrb[0].mxu0
  %2713 = vmatprep.mubr.f32.mxu0 0.0
  %2714 = vmatmul.mubr.f32.gmra.mrb[0].mxu0 %v2637
  %v2715 = vpop.f32.mrb[0].mxu0
  %v2716 = vadd.f32 0.0, %v2715
  %v2717 = vpop.f32.mrb[0].mxu0
  %2718 = vdwg.mxu0
  %v2719 = vmul.f32 %v2002, %v2106
  %v2720 = vmul.f32 %v2007, %v2111
  %v2721 = vmul.f32 %v2012, %v2116
  %v2723 = vsel %vm25, %v2719, 0
  %v2726 = vsel %vm25, %v2720, 0
  %v2729 = vsel %vm25, %v2721, 0
  %2731 = vmatprep.subr.mxu0 0.0
  %2732 = vmatpush1.msra.mxu0 %v17
  %2733 = vmatprep.subr.mxu0 0.0
  %2734 = vmatpush1.msra.mxu0 %v18
  %2735 = vmatprep.subr.mxu0 0.0
  %2736 = vmatpush1.msra.mxu0 %v19
  %2737 = vmatprep.subr.mxu0 0.0
  %2738 = vmatpush1.msra.mxu0 %v20
  %2739 = vmatprep.subr.mxu0 0.0
  %2740 = vmatpush1.msra.mxu0 0.0
  %2741 = vmatprep.subr.mxu0 0.0
  %2742 = vmatpush1.msra.mxu0 0.0
  %2743 = vmatprep.subr.mxu0 0.0
  %2744 = vmatpush1.msra.mxu0 0.0
  %2745 = vmatprep.subr.mxu0 0.0
  %2746 = vmatpush1.msra.mxu0 0.0
  %2747 = vmatprep.subr.mxu0 0.0
  %2748 = vmatpush1.msra.mxu0 0.0
  %2749 = vmatprep.subr.mxu0 0.0
  %2750 = vmatpush1.msra.mxu0 0.0
  %2751 = vmatprep.subr.mxu0 0.0
  %2752 = vmatpush1.msra.mxu0 0.0
  %2753 = vmatprep.subr.mxu0 0.0
  %2754 = vmatpush1.msra.mxu0 0.0
  %2755 = vmatprep.subr.mxu0 0.0
  %2756 = vmatpush1.msra.mxu0 0.0
  %2757 = vmatprep.subr.mxu0 0.0
  %2758 = vmatpush1.msra.mxu0 0.0
  %2759 = vmatprep.subr.mxu0 0.0
  %2760 = vmatpush1.msra.mxu0 0.0
  %2761 = vmatprep.subr.mxu0 0.0
  %2762 = vmatpush1.msra.mxu0 0.0
  %2763 = vmatprep.subr.mxu0 0.0
  %2764 = vmatpush1.msra.mxu0 0.0
  %2765 = vmatprep.subr.mxu0 0.0
  %2766 = vmatpush1.msra.mxu0 0.0
  %2767 = vmatprep.subr.mxu0 0.0
  %2768 = vmatpush1.msra.mxu0 0.0
  %2769 = vmatprep.subr.mxu0 0.0
  %2770 = vmatpush1.msra.mxu0 0.0
  %2771 = vmatprep.subr.mxu0 0.0
  %2772 = vmatpush1.msra.mxu0 0.0
  %2773 = vmatprep.subr.mxu0 0.0
  %2774 = vmatpush1.msra.mxu0 0.0
  %2775 = vmatprep.subr.mxu0 0.0
  %2776 = vmatpush1.msra.mxu0 0.0
  %2777 = vmatprep.subr.mxu0 0.0
  %2778 = vmatpush1.msra.mxu0 0.0
  %2779 = vmatprep.subr.mxu0 0.0
  %2780 = vmatpush1.msra.mxu0 0.0
  %2781 = vmatprep.subr.mxu0 0.0
  %2782 = vmatpush1.msra.mxu0 0.0
  %2783 = vmatprep.subr.mxu0 0.0
  %2784 = vmatpush1.msra.mxu0 0.0
  %2785 = vmatprep.subr.mxu0 0.0
  %2786 = vmatpush1.msra.mxu0 0.0
  %2787 = vmatprep.subr.mxu0 0.0
  %2788 = vmatpush1.msra.mxu0 0.0
  %2789 = vmatprep.subr.mxu0 0.0
  %2790 = vmatpush1.msra.mxu0 0.0
  %2791 = vmatprep.subr.mxu0 0.0
  %2792 = vmatpush1.msra.mxu0 0.0
  %2793 = vmatprep.subr.mxu0 0.0
  %2794 = vmatpush1.msra.mxu0 0.0
  %2795 = vmatprep.mubr.f32.mxu0 0.0
  %2796 = vmatmul.mubr.f32.gmra.mrb[0].mxu0 %v2723
  %v2797 = vpop.f32.mrb[0].mxu0
  %v2798 = vadd.f32 0.0, %v2797
  %v2799 = vpop.f32.mrb[0].mxu0
  %2800 = vmatprep.mubr.f32.mxu0 0.0
  %2801 = vmatmul.mubr.f32.gmra.mrb[0].mxu0 %v2726
  %v2802 = vpop.f32.mrb[0].mxu0
  %v2803 = vadd.f32 0.0, %v2802
  %v2804 = vpop.f32.mrb[0].mxu0
  %2805 = vmatprep.mubr.f32.mxu0 0.0
  %2806 = vmatmul.mubr.f32.gmra.mrb[0].mxu0 %v2729
  %v2807 = vpop.f32.mrb[0].mxu0
  %v2808 = vadd.f32 0.0, %v2807
  %v2809 = vpop.f32.mrb[0].mxu0
  %2810 = vdwg.mxu0
  %v2811 = vmax.f32 %v2706, %v2798
  %v2812 = vmax.f32 %v2711, %v2803
  %v2813 = vmax.f32 %v2716, %v2808
  %v2814 = vsub.f32 %v2706, %v2811
  %v2815 = vsub.f32 %v2711, %v2812
  %v2816 = vsub.f32 %v2716, %v2813
  %v2817 = vmul.f32 %v2814, 1.442695
  %v2818 = vpow.pop %v2817
  %v2819 = vmul.f32 %v2815, 1.442695
  %v2820 = vpow.pop %v2819
  %v2821 = vmul.f32 %v2816, 1.442695
  %v2822 = vpow.pop %v2821
  %v2823 = vsub.f32 %v2798, %v2811
  %v2824 = vsub.f32 %v2803, %v2812
  %v2825 = vsub.f32 %v2808, %v2813
  %v2826 = vmul.f32 %v2823, 1.442695
  %v2827 = vpow.pop %v2826
  %v2828 = vmul.f32 %v2824, 1.442695
  %v2829 = vpow.pop %v2828
  %v2830 = vmul.f32 %v2825, 1.442695
  %v2831 = vpow.pop %v2830
  %v2832 = vadd.f32 %v2818, %v2827
  %v2833 = vadd.f32 %v2820, %v2829
  %v2834 = vadd.f32 %v2822, %v2831
  %v2835 = vrcp.pop %v2832
  %v2836 = vrcp.pop %v2833
  %v2837 = vrcp.pop %v2834
  %v2838 = vmul.f32 %v2818, %v2835
  %v2839 = vmul.f32 %v2820, %v2836
  %v2840 = vmul.f32 %v2822, %v2837
  %v2842 = vsel %vm25, %v2838, 0
  %v2845 = vsel %vm25, %v2839, 0
  %v2848 = vsel %vm25, %v2840, 0
  %2850 = vmatprep.subr.mxu0 0.0
  %2851 = vmatpush1.msra.mxu0 %v21
  %2852 = vmatprep.subr.mxu0 0.0
  %2853 = vmatpush1.msra.mxu0 %v22
  %2854 = vmatprep.subr.mxu0 0.0
  %2855 = vmatpush1.msra.mxu0 %v23
  %2856 = vmatprep.subr.mxu0 0.0
  %2857 = vmatpush1.msra.mxu0 %v24
  %2858 = vmatprep.subr.mxu0 0.0
  %2859 = vmatpush1.msra.mxu0 0.0
  %2860 = vmatprep.subr.mxu0 0.0
  %2861 = vmatpush1.msra.mxu0 0.0
  %2862 = vmatprep.subr.mxu0 0.0
  %2863 = vmatpush1.msra.mxu0 0.0
  %2864 = vmatprep.subr.mxu0 0.0
  %2865 = vmatpush1.msra.mxu0 0.0
  %2866 = vmatprep.subr.mxu0 0.0
  %2867 = vmatpush1.msra.mxu0 0.0
  %2868 = vmatprep.subr.mxu0 0.0
  %2869 = vmatpush1.msra.mxu0 0.0
  %2870 = vmatprep.subr.mxu0 0.0
  %2871 = vmatpush1.msra.mxu0 0.0
  %2872 = vmatprep.subr.mxu0 0.0
  %2873 = vmatpush1.msra.mxu0 0.0
  %2874 = vmatprep.subr.mxu0 0.0
  %2875 = vmatpush1.msra.mxu0 0.0
  %2876 = vmatprep.subr.mxu0 0.0
  %2877 = vmatpush1.msra.mxu0 0.0
  %2878 = vmatprep.subr.mxu0 0.0
  %2879 = vmatpush1.msra.mxu0 0.0
  %2880 = vmatprep.subr.mxu0 0.0
  %2881 = vmatpush1.msra.mxu0 0.0
  %2882 = vmatprep.subr.mxu0 0.0
  %2883 = vmatpush1.msra.mxu0 0.0
  %2884 = vmatprep.subr.mxu0 0.0
  %2885 = vmatpush1.msra.mxu0 0.0
  %2886 = vmatprep.subr.mxu0 0.0
  %2887 = vmatpush1.msra.mxu0 0.0
  %2888 = vmatprep.subr.mxu0 0.0
  %2889 = vmatpush1.msra.mxu0 0.0
  %2890 = vmatprep.subr.mxu0 0.0
  %2891 = vmatpush1.msra.mxu0 0.0
  %2892 = vmatprep.subr.mxu0 0.0
  %2893 = vmatpush1.msra.mxu0 0.0
  %2894 = vmatprep.subr.mxu0 0.0
  %2895 = vmatpush1.msra.mxu0 0.0
  %2896 = vmatprep.subr.mxu0 0.0
  %2897 = vmatpush1.msra.mxu0 0.0
  %2898 = vmatprep.subr.mxu0 0.0
  %2899 = vmatpush1.msra.mxu0 0.0
  %2900 = vmatprep.subr.mxu0 0.0
  %2901 = vmatpush1.msra.mxu0 0.0
  %2902 = vmatprep.subr.mxu0 0.0
  %2903 = vmatpush1.msra.mxu0 0.0
  %2904 = vmatprep.subr.mxu0 0.0
  %2905 = vmatpush1.msra.mxu0 0.0
  %2906 = vmatprep.subr.mxu0 0.0
  %2907 = vmatpush1.msra.mxu0 0.0
  %2908 = vmatprep.subr.mxu0 0.0
  %2909 = vmatpush1.msra.mxu0 0.0
  %2910 = vmatprep.subr.mxu0 0.0
  %2911 = vmatpush1.msra.mxu0 0.0
  %2912 = vmatprep.subr.mxu0 0.0
  %2913 = vmatpush1.msra.mxu0 0.0
  %2914 = vmatprep.mubr.f32.mxu0 0.0
  %2915 = vmatmul.mubr.f32.gmra.mrb[0].mxu0 %v2842
  %v2916 = vpop.f32.mrb[0].mxu0
  %v2917 = vadd.f32 0.0, %v2916
  %v2918 = vpop.f32.mrb[0].mxu0
  %2919 = vmatprep.mubr.f32.mxu0 0.0
  %2920 = vmatmul.mubr.f32.gmra.mrb[0].mxu0 %v2845
  %v2921 = vpop.f32.mrb[0].mxu0
  %v2922 = vadd.f32 0.0, %v2921
  %v2923 = vpop.f32.mrb[0].mxu0
  %2924 = vmatprep.mubr.f32.mxu0 0.0
  %2925 = vmatmul.mubr.f32.gmra.mrb[0].mxu0 %v2848
  %v2926 = vpop.f32.mrb[0].mxu0
  %v2927 = vadd.f32 0.0, %v2926
  %v2928 = vpop.f32.mrb[0].mxu0
  %2929 = vdwg.mxu0
  %v2930 = vmul.f32 %v2917, %v2195
  %v2931 = vmul.f32 %v2922, %v2200
  %v2932 = vmul.f32 %v2927, %v2205
  %v2933 = vmul.f32 %v2827, %v2835
  %v2934 = vmul.f32 %v2829, %v2836
  %v2935 = vmul.f32 %v2831, %v2837
  %v2937 = vsel %vm25, %v2933, 0
  %v2940 = vsel %vm25, %v2934, 0
  %v2943 = vsel %vm25, %v2935, 0
  %2945 = vmatprep.subr.mxu0 0.0
  %2946 = vmatpush1.msra.mxu0 %v21
  %2947 = vmatprep.subr.mxu0 0.0
  %2948 = vmatpush1.msra.mxu0 %v22
  %2949 = vmatprep.subr.mxu0 0.0
  %2950 = vmatpush1.msra.mxu0 %v23
  %2951 = vmatprep.subr.mxu0 0.0
  %2952 = vmatpush1.msra.mxu0 %v24
  %2953 = vmatprep.subr.mxu0 0.0
  %2954 = vmatpush1.msra.mxu0 0.0
  %2955 = vmatprep.subr.mxu0 0.0
  %2956 = vmatpush1.msra.mxu0 0.0
  %2957 = vmatprep.subr.mxu0 0.0
  %2958 = vmatpush1.msra.mxu0 0.0
  %2959 = vmatprep.subr.mxu0 0.0
  %2960 = vmatpush1.msra.mxu0 0.0
  %2961 = vmatprep.subr.mxu0 0.0
  %2962 = vmatpush1.msra.mxu0 0.0
  %2963 = vmatprep.subr.mxu0 0.0
  %2964 = vmatpush1.msra.mxu0 0.0
  %2965 = vmatprep.subr.mxu0 0.0
  %2966 = vmatpush1.msra.mxu0 0.0
  %2967 = vmatprep.subr.mxu0 0.0
  %2968 = vmatpush1.msra.mxu0 0.0
  %2969 = vmatprep.subr.mxu0 0.0
  %2970 = vmatpush1.msra.mxu0 0.0
  %2971 = vmatprep.subr.mxu0 0.0
  %2972 = vmatpush1.msra.mxu0 0.0
  %2973 = vmatprep.subr.mxu0 0.0
  %2974 = vmatpush1.msra.mxu0 0.0
  %2975 = vmatprep.subr.mxu0 0.0
  %2976 = vmatpush1.msra.mxu0 0.0
  %2977 = vmatprep.subr.mxu0 0.0
  %2978 = vmatpush1.msra.mxu0 0.0
  %2979 = vmatprep.subr.mxu0 0.0
  %2980 = vmatpush1.msra.mxu0 0.0
  %2981 = vmatprep.subr.mxu0 0.0
  %2982 = vmatpush1.msra.mxu0 0.0
  %2983 = vmatprep.subr.mxu0 0.0
  %2984 = vmatpush1.msra.mxu0 0.0
  %2985 = vmatprep.subr.mxu0 0.0
  %2986 = vmatpush1.msra.mxu0 0.0
  %2987 = vmatprep.subr.mxu0 0.0
  %2988 = vmatpush1.msra.mxu0 0.0
  %2989 = vmatprep.subr.mxu0 0.0
  %2990 = vmatpush1.msra.mxu0 0.0
  %2991 = vmatprep.subr.mxu0 0.0
  %2992 = vmatpush1.msra.mxu0 0.0
  %2993 = vmatprep.subr.mxu0 0.0
  %2994 = vmatpush1.msra.mxu0 0.0
  %2995 = vmatprep.subr.mxu0 0.0
  %2996 = vmatpush1.msra.mxu0 0.0
  %2997 = vmatprep.subr.mxu0 0.0
  %2998 = vmatpush1.msra.mxu0 0.0
  %2999 = vmatprep.subr.mxu0 0.0
  %3000 = vmatpush1.msra.mxu0 0.0
  %3001 = vmatprep.subr.mxu0 0.0
  %3002 = vmatpush1.msra.mxu0 0.0
  %3003 = vmatprep.subr.mxu0 0.0
  %3004 = vmatpush1.msra.mxu0 0.0
  %3005 = vmatprep.subr.mxu0 0.0
  %3006 = vmatpush1.msra.mxu0 0.0
  %3007 = vmatprep.subr.mxu0 0.0
  %3008 = vmatpush1.msra.mxu0 0.0
  %3009 = vmatprep.mubr.f32.mxu0 0.0
  %3010 = vmatmul.mubr.f32.gmra.mrb[0].mxu0 %v2937
  %v3011 = vpop.f32.mrb[0].mxu0
  %v3012 = vadd.f32 0.0, %v3011
  %v3013 = vpop.f32.mrb[0].mxu0
  %3014 = vmatprep.mubr.f32.mxu0 0.0
  %3015 = vmatmul.mubr.f32.gmra.mrb[0].mxu0 %v2940
  %v3016 = vpop.f32.mrb[0].mxu0
  %v3017 = vadd.f32 0.0, %v3016
  %v3018 = vpop.f32.mrb[0].mxu0
  %3019 = vmatprep.mubr.f32.mxu0 0.0
  %3020 = vmatmul.mubr.f32.gmra.mrb[0].mxu0 %v2943
  %v3021 = vpop.f32.mrb[0].mxu0
  %v3022 = vadd.f32 0.0, %v3021
  %v3023 = vpop.f32.mrb[0].mxu0
  %3024 = vdwg.mxu0
  %v3025 = vmul.f32 %v3012, %v2210
  %v3026 = vmul.f32 %v3017, %v2215
  %v3027 = vmul.f32 %v3022, %v2220
  %v3028 = vadd.f32 %v2930, %v3025
  %v3029 = vadd.f32 %v2931, %v3026
  %v3030 = vadd.f32 %v2932, %v3027
  %v3031 = vld [vmem:[%s1 + $0x1f8] sm:$0xff]
  %v3032 = vld [vmem:[%s1 + $0x200] sm:$0xff]
  %v3033 = vld [vmem:[%s1 + $0x208] sm:$0xff]
  %v3034 = vld [vmem:[%s1 + $0x210] sm:$0xff]
  %v3035 = vld [vmem:[%s1 + $0x270] sm:$0x1]
  %v3036 = vlaneseq
  %v3037 = vshrl.u32 %v3036, 7
  %v3038 = vsub.s32 0, %v3037
  %v3039 = vrot.slane %v3035, %v3038
  %v3041 = vsel %vm25, %v2624, 0
  %v3044 = vsel %vm25, %v2625, 0
  %v3047 = vsel %vm25, %v2626, 0
  %v3050 = vsel %vm25, %v3028, 0
  %v3053 = vsel %vm25, %v3029, 0
  %v3056 = vsel %vm25, %v3030, 0
  %3058 = vmatprep.subr.mxu0 0.0
  %3059 = vmatpush1.msra.mxu0 %v3031
  %3060 = vmatprep.subr.mxu0 0.0
  %3061 = vmatpush1.msra.mxu0 %v3032
  %3062 = vmatprep.subr.mxu0 0.0
  %3063 = vmatpush1.msra.mxu0 %v3033
  %3064 = vmatprep.subr.mxu0 0.0
  %3065 = vmatpush1.msra.mxu0 %v3034
  %3066 = vmatprep.subr.mxu0 0.0
  %3067 = vmatpush1.msra.mxu0 0.0
  %3068 = vmatprep.subr.mxu0 0.0
  %3069 = vmatpush1.msra.mxu0 0.0
  %3070 = vmatprep.subr.mxu0 0.0
  %3071 = vmatpush1.msra.mxu0 0.0
  %3072 = vmatprep.subr.mxu0 0.0
  %3073 = vmatpush1.msra.mxu0 0.0
  %3074 = vmatprep.subr.mxu0 0.0
  %3075 = vmatpush1.msra.mxu0 0.0
  %3076 = vmatprep.subr.mxu0 0.0
  %3077 = vmatpush1.msra.mxu0 0.0
  %3078 = vmatprep.subr.mxu0 0.0
  %3079 = vmatpush1.msra.mxu0 0.0
  %3080 = vmatprep.subr.mxu0 0.0
  %3081 = vmatpush1.msra.mxu0 0.0
  %3082 = vmatprep.subr.mxu0 0.0
  %3083 = vmatpush1.msra.mxu0 0.0
  %3084 = vmatprep.subr.mxu0 0.0
  %3085 = vmatpush1.msra.mxu0 0.0
  %3086 = vmatprep.subr.mxu0 0.0
  %3087 = vmatpush1.msra.mxu0 0.0
  %3088 = vmatprep.subr.mxu0 0.0
  %3089 = vmatpush1.msra.mxu0 0.0
  %3090 = vmatprep.subr.mxu0 0.0
  %3091 = vmatpush1.msra.mxu0 0.0
  %3092 = vmatprep.subr.mxu0 0.0
  %3093 = vmatpush1.msra.mxu0 0.0
  %3094 = vmatprep.subr.mxu0 0.0
  %3095 = vmatpush1.msra.mxu0 0.0
  %3096 = vmatprep.subr.mxu0 0.0
  %3097 = vmatpush1.msra.mxu0 0.0
  %3098 = vmatprep.subr.mxu0 0.0
  %3099 = vmatpush1.msra.mxu0 0.0
  %3100 = vmatprep.subr.mxu0 0.0
  %3101 = vmatpush1.msra.mxu0 0.0
  %3102 = vmatprep.subr.mxu0 0.0
  %3103 = vmatpush1.msra.mxu0 0.0
  %3104 = vmatprep.subr.mxu0 0.0
  %3105 = vmatpush1.msra.mxu0 0.0
  %3106 = vmatprep.subr.mxu0 0.0
  %3107 = vmatpush1.msra.mxu0 0.0
  %3108 = vmatprep.subr.mxu0 0.0
  %3109 = vmatpush1.msra.mxu0 0.0
  %3110 = vmatprep.subr.mxu0 0.0
  %3111 = vmatpush1.msra.mxu0 0.0
  %3112 = vmatprep.subr.mxu0 0.0
  %3113 = vmatpush1.msra.mxu0 0.0
  %3114 = vmatprep.subr.mxu0 0.0
  %3115 = vmatpush1.msra.mxu0 0.0
  %3116 = vmatprep.subr.mxu0 0.0
  %3117 = vmatpush1.msra.mxu0 0.0
  %3118 = vmatprep.subr.mxu0 0.0
  %3119 = vmatpush1.msra.mxu0 0.0
  %3120 = vmatprep.subr.mxu0 0.0
  %3121 = vmatpush1.msra.mxu0 0.0
  %3122 = vmatprep.mubr.f32.mxu0 0.0
  %3123 = vmatmul.mubr.f32.gmra.mrb[0].mxu0 %v3041
  %v3124 = vpop.f32.mrb[0].mxu0
  %v3125 = vadd.f32 %v3039, %v3124
  %v3126 = vpop.f32.mrb[0].mxu0
  %3127 = vmatprep.mubr.f32.mxu0 0.0
  %3128 = vmatmul.mubr.f32.gmra.mrb[0].mxu0 %v3044
  %v3129 = vpop.f32.mrb[0].mxu0
  %v3130 = vadd.f32 %v3039, %v3129
  %v3131 = vpop.f32.mrb[0].mxu0
  %3132 = vmatprep.mubr.f32.mxu0 0.0
  %3133 = vmatmul.mubr.f32.gmra.mrb[0].mxu0 %v3047
  %v3134 = vpop.f32.mrb[0].mxu0
  %v3135 = vadd.f32 %v3039, %v3134
  %v3136 = vpop.f32.mrb[0].mxu0
  %3137 = vmatprep.mubr.f32.mxu0 0.0
  %3138 = vmatmul.mubr.f32.gmra.mrb[0].mxu0 %v3050
  %v3139 = vpop.f32.mrb[0].mxu0
  %v3140 = vadd.f32 %v3039, %v3139
  %v3141 = vpop.f32.mrb[0].mxu0
  %3142 = vmatprep.mubr.f32.mxu0 0.0
  %3143 = vmatmul.mubr.f32.gmra.mrb[0].mxu0 %v3053
  %v3144 = vpop.f32.mrb[0].mxu0
  %v3145 = vadd.f32 %v3039, %v3144
  %v3146 = vpop.f32.mrb[0].mxu0
  %3147 = vmatprep.mubr.f32.mxu0 0.0
  %3148 = vmatmul.mubr.f32.gmra.mrb[0].mxu0 %v3056
  %v3149 = vpop.f32.mrb[0].mxu0
  %v3150 = vadd.f32 %v3039, %v3149
  %v3151 = vpop.f32.mrb[0].mxu0
  %3152 = vdwg.mxu0
  %v3153 = vadd.f32 %v1887, %v3125
  %v3154 = vadd.f32 %v1888, %v3130
  %v3155 = vadd.f32 %v1889, %v3135
  %v3156 = vadd.f32 %v1890, %v3140
  %v3157 = vadd.f32 %v1891, %v3145
  %v3158 = vadd.f32 %v1892, %v3150
  %v3159 = vld [vmem:[%s1 + $0x280] sm:$0x1]
  %v3160 = vld [vmem:[%s1 + $0x288] sm:$0x1]
  %v3161 = vsel %vm25, %v3153, 0.0
  %3162 = vadd.xlane.f32.xlu0 %v3161
  %v3163 = vpop.xlane.xlu0 %3162
  %v3164 = vsel %vm25, %v3154, 0.0
  %3165 = vadd.xlane.f32.xlu0 %v3164
  %v3166 = vpop.xlane.xlu0 %3165
  %v3167 = vsel %vm25, %v3155, 0.0
  %3168 = vadd.xlane.f32.xlu0 %v3167
  %v3169 = vpop.xlane.xlu0 %3168
  %v3170 = vsel %vm25, %v3156, 0.0
  %3171 = vadd.xlane.f32.xlu0 %v3170
  %v3172 = vpop.xlane.xlu0 %3171
  %v3173 = vsel %vm25, %v3157, 0.0
  %3174 = vadd.xlane.f32.xlu0 %v3173
  %v3175 = vpop.xlane.xlu0 %3174
  %v3176 = vsel %vm25, %v3158, 0.0
  %3177 = vadd.xlane.f32.xlu0 %v3176
  %v3178 = vpop.xlane.xlu0 %3177
  %v3179 = vmul.f32 %v3163, %v1451
  %v3180 = vmul.f32 %v3166, %v1451
  %v3181 = vmul.f32 %v3169, %v1451
  %v3182 = vmul.f32 %v3172, %v1451
  %v3183 = vmul.f32 %v3175, %v1451
  %v3184 = vmul.f32 %v3178, %v1451
  %v3185 = vsub.f32 %v3153, %v3179
  %v3186 = vsub.f32 %v3154, %v3180
  %v3187 = vsub.f32 %v3155, %v3181
  %v3188 = vsub.f32 %v3156, %v3182
  %v3189 = vsub.f32 %v3157, %v3183
  %v3190 = vsub.f32 %v3158, %v3184
  %v3191 = vmul.f32 %v3185, %v3185
  %v3192 = vmul.f32 %v3186, %v3186
  %v3193 = vmul.f32 %v3187, %v3187
  %v3194 = vmul.f32 %v3188, %v3188
  %v3195 = vmul.f32 %v3189, %v3189
  %v3196 = vmul.f32 %v3190, %v3190
  %v3197 = vsel %vm25, %v3191, 0.0
  %3198 = vadd.xlane.f32.xlu0 %v3197
  %v3199 = vpop.xlane.xlu0 %3198
  %v3200 = vsel %vm25, %v3192, 0.0
  %3201 = vadd.xlane.f32.xlu0 %v3200
  %v3202 = vpop.xlane.xlu0 %3201
  %v3203 = vsel %vm25, %v3193, 0.0
  %3204 = vadd.xlane.f32.xlu0 %v3203
  %v3205 = vpop.xlane.xlu0 %3204
  %v3206 = vsel %vm25, %v3194, 0.0
  %3207 = vadd.xlane.f32.xlu0 %v3206
  %v3208 = vpop.xlane.xlu0 %3207
  %v3209 = vsel %vm25, %v3195, 0.0
  %3210 = vadd.xlane.f32.xlu0 %v3209
  %v3211 = vpop.xlane.xlu0 %3210
  %v3212 = vsel %vm25, %v3196, 0.0
  %3213 = vadd.xlane.f32.xlu0 %v3212
  %v3214 = vpop.xlane.xlu0 %3213
  %v3215 = vmul.f32 %v3199, %v1451
  %v3216 = vmul.f32 %v3202, %v1451
  %v3217 = vmul.f32 %v3205, %v1451
  %v3218 = vmul.f32 %v3208, %v1451
  %v3219 = vmul.f32 %v3211, %v1451
  %v3220 = vmul.f32 %v3214, %v1451
  %v3221 = vadd.f32 %v3215, 1e-05
  %v3222 = vadd.f32 %v3216, 1e-05
  %v3223 = vadd.f32 %v3217, 1e-05
  %v3224 = vadd.f32 %v3218, 1e-05
  %v3225 = vadd.f32 %v3219, 1e-05
  %v3226 = vadd.f32 %v3220, 1e-05
  %v3227 = vrsqrt.pop %v3221
  %v3228 = vrsqrt.pop %v3222
  %v3229 = vrsqrt.pop %v3223
  %v3230 = vrsqrt.pop %v3224
  %v3231 = vrsqrt.pop %v3225
  %v3232 = vrsqrt.pop %v3226
  %v3233 = vmul.f32 %v3185, %v3227
  %v3234 = vmul.f32 %v3186, %v3228
  %v3235 = vmul.f32 %v3187, %v3229
  %v3236 = vmul.f32 %v3188, %v3230
  %v3237 = vmul.f32 %v3189, %v3231
  %v3238 = vmul.f32 %v3190, %v3232
  %v3239 = vlaneseq
  %v3240 = vshrl.u32 %v3239, 7
  %v3241 = vsub.s32 0, %v3240
  %v3242 = vrot.slane %v3159, %v3241
  %v3243 = vmul.f32 %v3233, %v3242
  %v3244 = vmul.f32 %v3234, %v3242
  %v3245 = vmul.f32 %v3235, %v3242
  %v3246 = vmul.f32 %v3236, %v3242
  %v3247 = vmul.f32 %v3237, %v3242
  %v3248 = vmul.f32 %v3238, %v3242
  %v3249 = vlaneseq
  %v3250 = vshrl.u32 %v3249, 7
  %v3251 = vsub.s32 0, %v3250
  %v3252 = vrot.slane %v3160, %v3251
  %v3253 = vadd.f32 %v3243, %v3252
  %v3254 = vadd.f32 %v3244, %v3252
  %v3255 = vadd.f32 %v3245, %v3252
  %v3256 = vadd.f32 %v3246, %v3252
  %v3257 = vadd.f32 %v3247, %v3252
  %v3258 = vadd.f32 %v3248, %v3252
  %v3259 = vld [vmem:[%s2 + $0x28] sm:$0xff]
  %v3260 = vld [vmem:[%s2 + $0x30] sm:$0xff]
  %v3261 = vld [vmem:[%s2 + $0x38] sm:$0xff]
  %v3262 = vld [vmem:[%s2 + $0x40] sm:$0xff]
  %v3263 = vld [vmem:[%s2 + $0x48] sm:$0x1]
  %v3264 = vlaneseq
  %v3265 = vshrl.u32 %v3264, 7
  %v3266 = vsub.s32 0, %v3265
  %v3267 = vrot.slane %v3263, %v3266
  %v3269 = vsel %vm25, %v3253, 0
  %v3272 = vsel %vm25, %v3254, 0
  %v3275 = vsel %vm25, %v3255, 0
  %v3278 = vsel %vm25, %v3256, 0
  %v3281 = vsel %vm25, %v3257, 0
  %v3284 = vsel %vm25, %v3258, 0
  %3286 = vmatprep.subr.mxu0 0.0
  %3287 = vmatpush1.msra.mxu0 %v3259
  %3288 = vmatprep.subr.mxu0 0.0
  %3289 = vmatpush1.msra.mxu0 %v3260
  %3290 = vmatprep.subr.mxu0 0.0
  %3291 = vmatpush1.msra.mxu0 %v3261
  %3292 = vmatprep.subr.mxu0 0.0
  %3293 = vmatpush1.msra.mxu0 %v3262
  %3294 = vmatprep.subr.mxu0 0.0
  %3295 = vmatpush1.msra.mxu0 0.0
  %3296 = vmatprep.subr.mxu0 0.0
  %3297 = vmatpush1.msra.mxu0 0.0
  %3298 = vmatprep.subr.mxu0 0.0
  %3299 = vmatpush1.msra.mxu0 0.0
  %3300 = vmatprep.subr.mxu0 0.0
  %3301 = vmatpush1.msra.mxu0 0.0
  %3302 = vmatprep.subr.mxu0 0.0
  %3303 = vmatpush1.msra.mxu0 0.0
  %3304 = vmatprep.subr.mxu0 0.0
  %3305 = vmatpush1.msra.mxu0 0.0
  %3306 = vmatprep.subr.mxu0 0.0
  %3307 = vmatpush1.msra.mxu0 0.0
  %3308 = vmatprep.subr.mxu0 0.0
  %3309 = vmatpush1.msra.mxu0 0.0
  %3310 = vmatprep.subr.mxu0 0.0
  %3311 = vmatpush1.msra.mxu0 0.0
  %3312 = vmatprep.subr.mxu0 0.0
  %3313 = vmatpush1.msra.mxu0 0.0
  %3314 = vmatprep.subr.mxu0 0.0
  %3315 = vmatpush1.msra.mxu0 0.0
  %3316 = vmatprep.subr.mxu0 0.0
  %3317 = vmatpush1.msra.mxu0 0.0
  %3318 = vmatprep.subr.mxu0 0.0
  %3319 = vmatpush1.msra.mxu0 0.0
  %3320 = vmatprep.subr.mxu0 0.0
  %3321 = vmatpush1.msra.mxu0 0.0
  %3322 = vmatprep.subr.mxu0 0.0
  %3323 = vmatpush1.msra.mxu0 0.0
  %3324 = vmatprep.subr.mxu0 0.0
  %3325 = vmatpush1.msra.mxu0 0.0
  %3326 = vmatprep.subr.mxu0 0.0
  %3327 = vmatpush1.msra.mxu0 0.0
  %3328 = vmatprep.subr.mxu0 0.0
  %3329 = vmatpush1.msra.mxu0 0.0
  %3330 = vmatprep.subr.mxu0 0.0
  %3331 = vmatpush1.msra.mxu0 0.0
  %3332 = vmatprep.subr.mxu0 0.0
  %3333 = vmatpush1.msra.mxu0 0.0
  %3334 = vmatprep.subr.mxu0 0.0
  %3335 = vmatpush1.msra.mxu0 0.0
  %3336 = vmatprep.subr.mxu0 0.0
  %3337 = vmatpush1.msra.mxu0 0.0
  %3338 = vmatprep.subr.mxu0 0.0
  %3339 = vmatpush1.msra.mxu0 0.0
  %3340 = vmatprep.subr.mxu0 0.0
  %3341 = vmatpush1.msra.mxu0 0.0
  %3342 = vmatprep.subr.mxu0 0.0
  %3343 = vmatpush1.msra.mxu0 0.0
  %3344 = vmatprep.subr.mxu0 0.0
  %3345 = vmatpush1.msra.mxu0 0.0
  %3346 = vmatprep.subr.mxu0 0.0
  %3347 = vmatpush1.msra.mxu0 0.0
  %3348 = vmatprep.subr.mxu0 0.0
  %3349 = vmatpush1.msra.mxu0 0.0
  %3350 = vmatprep.mubr.f32.mxu0 0.0
  %3351 = vmatmul.mubr.f32.gmra.mrb[0].mxu0 %v3269
  %v3352 = vpop.f32.mrb[0].mxu0
  %v3353 = vadd.f32 %v3267, %v3352
  %v3354 = vpop.f32.mrb[0].mxu0
  %3355 = vmatprep.mubr.f32.mxu0 0.0
  %3356 = vmatmul.mubr.f32.gmra.mrb[0].mxu0 %v3272
  %v3357 = vpop.f32.mrb[0].mxu0
  %v3358 = vadd.f32 %v3267, %v3357
  %v3359 = vpop.f32.mrb[0].mxu0
  %3360 = vmatprep.mubr.f32.mxu0 0.0
  %3361 = vmatmul.mubr.f32.gmra.mrb[0].mxu0 %v3275
  %v3362 = vpop.f32.mrb[0].mxu0
  %v3363 = vadd.f32 %v3267, %v3362
  %v3364 = vpop.f32.mrb[0].mxu0
  %3365 = vmatprep.mubr.f32.mxu0 0.0
  %3366 = vmatmul.mubr.f32.gmra.mrb[0].mxu0 %v3278
  %v3367 = vpop.f32.mrb[0].mxu0
  %v3368 = vadd.f32 %v3267, %v3367
  %v3369 = vpop.f32.mrb[0].mxu0
  %3370 = vmatprep.mubr.f32.mxu0 0.0
  %3371 = vmatmul.mubr.f32.gmra.mrb[0].mxu0 %v3281
  %v3372 = vpop.f32.mrb[0].mxu0
  %v3373 = vadd.f32 %v3267, %v3372
  %v3374 = vpop.f32.mrb[0].mxu0
  %3375 = vmatprep.mubr.f32.mxu0 0.0
  %3376 = vmatmul.mubr.f32.gmra.mrb[0].mxu0 %v3284
  %v3377 = vpop.f32.mrb[0].mxu0
  %v3378 = vadd.f32 %v3267, %v3377
  %v3379 = vpop.f32.mrb[0].mxu0
  %3380 = vdwg.mxu0
  %v3381 = vmax.f32 %v3353, 0.0
  %v3382 = vmax.f32 %v3358, 0.0
  %v3383 = vmax.f32 %v3363, 0.0
  %v3384 = vmax.f32 %v3368, 0.0
  %v3385 = vmax.f32 %v3373, 0.0
  %v3386 = vmax.f32 %v3378, 0.0
  %v3387 = vld [vmem:[%s1 + $0x218] sm:$0xff]
  %v3388 = vld [vmem:[%s1 + $0x220] sm:$0xff]
  %v3389 = vld [vmem:[%s1 + $0x228] sm:$0xff]
  %v3390 = vld [vmem:[%s1 + $0x230] sm:$0xff]
  %v3391 = vld [vmem:[%s1 + $0x238] sm:$0xff]
  %v3392 = vld [vmem:[%s1 + $0x240] sm:$0xff]
  %v3393 = vld [vmem:[%s1 + $0x248] sm:$0xff]
  %v3394 = vld [vmem:[%s1 + $0x250] sm:$0xff]
  %v3395 = vld [vmem:[%s1 + $0x278] sm:$0x1]
  %v3396 = vlaneseq
  %v3397 = vshrl.u32 %v3396, 7
  %v3398 = vsub.s32 0, %v3397
  %v3399 = vrot.slane %v3395, %v3398
  %v3401 = vsel %vm1673, %v3381, 0
  %v3404 = vsel %vm1673, %v3382, 0
  %v3407 = vsel %vm1673, %v3383, 0
  %v3410 = vsel %vm1673, %v3384, 0
  %v3413 = vsel %vm1673, %v3385, 0
  %v3416 = vsel %vm1673, %v3386, 0
  %3418 = vmatprep.subr.mxu0 0.0
  %3419 = vmatpush1.msra.mxu0 %v3387
  %3420 = vmatprep.subr.mxu0 0.0
  %3421 = vmatpush1.msra.mxu0 %v3388
  %3422 = vmatprep.subr.mxu0 0.0
  %3423 = vmatpush1.msra.mxu0 %v3389
  %3424 = vmatprep.subr.mxu0 0.0
  %3425 = vmatpush1.msra.mxu0 %v3390
  %3426 = vmatprep.subr.mxu0 0.0
  %3427 = vmatpush1.msra.mxu0 %v3391
  %3428 = vmatprep.subr.mxu0 0.0
  %3429 = vmatpush1.msra.mxu0 %v3392
  %3430 = vmatprep.subr.mxu0 0.0
  %3431 = vmatpush1.msra.mxu0 %v3393
  %3432 = vmatprep.subr.mxu0 0.0
  %3433 = vmatpush1.msra.mxu0 %v3394
  %3434 = vmatprep.subr.mxu0 0.0
  %3435 = vmatpush1.msra.mxu0 0.0
  %3436 = vmatprep.subr.mxu0 0.0
  %3437 = vmatpush1.msra.mxu0 0.0
  %3438 = vmatprep.subr.mxu0 0.0
  %3439 = vmatpush1.msra.mxu0 0.0
  %3440 = vmatprep.subr.mxu0 0.0
  %3441 = vmatpush1.msra.mxu0 0.0
  %3442 = vmatprep.subr.mxu0 0.0
  %3443 = vmatpush1.msra.mxu0 0.0
  %3444 = vmatprep.subr.mxu0 0.0
  %3445 = vmatpush1.msra.mxu0 0.0
  %3446 = vmatprep.subr.mxu0 0.0
  %3447 = vmatpush1.msra.mxu0 0.0
  %3448 = vmatprep.subr.mxu0 0.0
  %3449 = vmatpush1.msra.mxu0 0.0
  %3450 = vmatprep.subr.mxu0 0.0
  %3451 = vmatpush1.msra.mxu0 0.0
  %3452 = vmatprep.subr.mxu0 0.0
  %3453 = vmatpush1.msra.mxu0 0.0
  %3454 = vmatprep.subr.mxu0 0.0
  %3455 = vmatpush1.msra.mxu0 0.0
  %3456 = vmatprep.subr.mxu0 0.0
  %3457 = vmatpush1.msra.mxu0 0.0
  %3458 = vmatprep.subr.mxu0 0.0
  %3459 = vmatpush1.msra.mxu0 0.0
  %3460 = vmatprep.subr.mxu0 0.0
  %3461 = vmatpush1.msra.mxu0 0.0
  %3462 = vmatprep.subr.mxu0 0.0
  %3463 = vmatpush1.msra.mxu0 0.0
  %3464 = vmatprep.subr.mxu0 0.0
  %3465 = vmatpush1.msra.mxu0 0.0
  %3466 = vmatprep.subr.mxu0 0.0
  %3467 = vmatpush1.msra.mxu0 0.0
  %3468 = vmatprep.subr.mxu0 0.0
  %3469 = vmatpush1.msra.mxu0 0.0
  %3470 = vmatprep.subr.mxu0 0.0
  %3471 = vmatpush1.msra.mxu0 0.0
  %3472 = vmatprep.subr.mxu0 0.0
  %3473 = vmatpush1.msra.mxu0 0.0
  %3474 = vmatprep.subr.mxu0 0.0
  %3475 = vmatpush1.msra.mxu0 0.0
  %3476 = vmatprep.subr.mxu0 0.0
  %3477 = vmatpush1.msra.mxu0 0.0
  %3478 = vmatprep.subr.mxu0 0.0
  %3479 = vmatpush1.msra.mxu0 0.0
  %3480 = vmatprep.subr.mxu0 0.0
  %3481 = vmatpush1.msra.mxu0 0.0
  %3482 = vmatprep.mubr.f32.mxu0 0.0
  %3483 = vmatmul.mubr.f32.gmra.mrb[0].mxu0 %v3401
  %v3484 = vpop.f32.mrb[0].mxu0
  %v3485 = vpop.f32.mrb[0].mxu0
  %3486 = vmatprep.mubr.f32.mxu0 0.0
  %3487 = vmatmul.mubr.f32.gmra.mrb[0].mxu0 %v3404
  %v3488 = vpop.f32.mrb[0].mxu0
  %v3489 = vpop.f32.mrb[0].mxu0
  %3490 = vmatprep.mubr.f32.mxu0 0.0
  %3491 = vmatmul.mubr.f32.gmra.mrb[0].mxu0 %v3407
  %v3492 = vpop.f32.mrb[0].mxu0
  %v3493 = vadd.f32 %v3399, %v3492
  %v3494 = vpop.f32.mrb[0].mxu0
  %3495 = vmatprep.mubr.f32.mxu0 0.0
  %3496 = vmatmul.mubr.f32.gmra.mrb[0].mxu0 %v3410
  %v3497 = vpop.f32.mrb[0].mxu0
  %v3498 = vpop.f32.mrb[0].mxu0
  %3499 = vmatprep.mubr.f32.mxu0 0.0
  %3500 = vmatmul.mubr.f32.gmra.mrb[0].mxu0 %v3413
  %v3501 = vpop.f32.mrb[0].mxu0
  %v3502 = vpop.f32.mrb[0].mxu0
  %3503 = vmatprep.mubr.f32.mxu0 0.0
  %3504 = vmatmul.mubr.f32.gmra.mrb[0].mxu0 %v3416
  %v3505 = vpop.f32.mrb[0].mxu0
  %v3506 = vadd.f32 %v3399, %v3505
  %v3507 = vpop.f32.mrb[0].mxu0
  %3508 = vdwg.mxu0
  %v3509 = vadd.f32 %v3255, %v3493
  %v3510 = vadd.f32 %v3258, %v3506
  %v3511 = vld [vmem:[%s1 + $0x290] sm:$0x1]
  %v3512 = vld [vmem:[%s1 + $0x298] sm:$0x1]
  %v3513 = vsel %vm25, %v3509, 0.0
  %3514 = vadd.xlane.f32.xlu0 %v3513
  %v3515 = vpop.xlane.xlu0 %3514
  %v3516 = vsel %vm25, %v3510, 0.0
  %3517 = vadd.xlane.f32.xlu0 %v3516
  %v3518 = vpop.xlane.xlu0 %3517
  %v3519 = vmul.f32 %v3515, %v1451
  %v3520 = vmul.f32 %v3518, %v1451
  %v3521 = vsub.f32 %v3509, %v3519
  %v3522 = vsub.f32 %v3510, %v3520
  %v3523 = vmul.f32 %v3521, %v3521
  %v3524 = vmul.f32 %v3522, %v3522
  %v3525 = vsel %vm25, %v3523, 0.0
  %3526 = vadd.xlane.f32.xlu0 %v3525
  %v3527 = vpop.xlane.xlu0 %3526
  %v3528 = vsel %vm25, %v3524, 0.0
  %3529 = vadd.xlane.f32.xlu0 %v3528
  %v3530 = vpop.xlane.xlu0 %3529
  %v3531 = vmul.f32 %v3527, %v1451
  %v3532 = vmul.f32 %v3530, %v1451
  %v3533 = vadd.f32 %v3531, 1e-05
  %v3534 = vadd.f32 %v3532, 1e-05
  %v3535 = vrsqrt.pop %v3533
  %v3536 = vrsqrt.pop %v3534
  %v3537 = vmul.f32 %v3521, %v3535
  %v3538 = vmul.f32 %v3522, %v3536
  %v3539 = vlaneseq
  %v3540 = vshrl.u32 %v3539, 7
  %v3541 = vsub.s32 0, %v3540
  %v3542 = vrot.slane %v3511, %v3541
  %v3543 = vmul.f32 %v3537, %v3542
  %v3544 = vmul.f32 %v3538, %v3542
  %v3545 = vlaneseq
  %v3546 = vshrl.u32 %v3545, 7
  %v3547 = vsub.s32 0, %v3546
  %v3548 = vrot.slane %v3512, %v3547
  %v3549 = vadd.f32 %v3543, %v3548
  %v3550 = vadd.f32 %v3544, %v3548
  %v3552 = vrot.slane %v3550, 7
  %vm3554 = vcmask 1040384
  %v3555 = vsel %vm3554, %v3549, %v3552
  %v3556 = vld [vmem:[%s3] sm:$0xff]
  %v3557 = vld [vmem:[%s3 + $0x8] sm:$0xff]
  %v3558 = vld [vmem:[%s3 + $0x10] sm:$0xff]
  %v3559 = vld [vmem:[%s3 + $0x18] sm:$0xff]
  %v3560 = vld [vmem:[%s3 + $0x20] sm:$0x1]
  %v3561 = vlaneseq
  %v3562 = vshrl.u32 %v3561, 7
  %v3563 = vsub.s32 0, %v3562
  %v3564 = vrot.slane %v3560, %v3563
  %v3566 = vsel %vm25, %v3555, 0
  %3568 = vmatprep.subr.mxu0 0.0
  %3569 = vmatpush1.msra.mxu0 %v3556
  %3570 = vmatprep.subr.mxu0 0.0
  %3571 = vmatpush1.msra.mxu0 %v3557
  %3572 = vmatprep.subr.mxu0 0.0
  %3573 = vmatpush1.msra.mxu0 %v3558
  %3574 = vmatprep.subr.mxu0 0.0
  %3575 = vmatpush1.msra.mxu0 %v3559
  %3576 = vmatprep.subr.mxu0 0.0
  %3577 = vmatpush1.msra.mxu0 0.0
  %3578 = vmatprep.subr.mxu0 0.0
  %3579 = vmatpush1.msra.mxu0 0.0
  %3580 = vmatprep.subr.mxu0 0.0
  %3581 = vmatpush1.msra.mxu0 0.0
  %3582 = vmatprep.subr.mxu0 0.0
  %3583 = vmatpush1.msra.mxu0 0.0
  %3584 = vmatprep.subr.mxu0 0.0
  %3585 = vmatpush1.msra.mxu0 0.0
  %3586 = vmatprep.subr.mxu0 0.0
  %3587 = vmatpush1.msra.mxu0 0.0
  %3588 = vmatprep.subr.mxu0 0.0
  %3589 = vmatpush1.msra.mxu0 0.0
  %3590 = vmatprep.subr.mxu0 0.0
  %3591 = vmatpush1.msra.mxu0 0.0
  %3592 = vmatprep.subr.mxu0 0.0
  %3593 = vmatpush1.msra.mxu0 0.0
  %3594 = vmatprep.subr.mxu0 0.0
  %3595 = vmatpush1.msra.mxu0 0.0
  %3596 = vmatprep.subr.mxu0 0.0
  %3597 = vmatpush1.msra.mxu0 0.0
  %3598 = vmatprep.subr.mxu0 0.0
  %3599 = vmatpush1.msra.mxu0 0.0
  %3600 = vmatprep.subr.mxu0 0.0
  %3601 = vmatpush1.msra.mxu0 0.0
  %3602 = vmatprep.subr.mxu0 0.0
  %3603 = vmatpush1.msra.mxu0 0.0
  %3604 = vmatprep.subr.mxu0 0.0
  %3605 = vmatpush1.msra.mxu0 0.0
  %3606 = vmatprep.subr.mxu0 0.0
  %3607 = vmatpush1.msra.mxu0 0.0
  %3608 = vmatprep.subr.mxu0 0.0
  %3609 = vmatpush1.msra.mxu0 0.0
  %3610 = vmatprep.subr.mxu0 0.0
  %3611 = vmatpush1.msra.mxu0 0.0
  %3612 = vmatprep.subr.mxu0 0.0
  %3613 = vmatpush1.msra.mxu0 0.0
  %3614 = vmatprep.subr.mxu0 0.0
  %3615 = vmatpush1.msra.mxu0 0.0
  %3616 = vmatprep.subr.mxu0 0.0
  %3617 = vmatpush1.msra.mxu0 0.0
  %3618 = vmatprep.subr.mxu0 0.0
  %3619 = vmatpush1.msra.mxu0 0.0
  %3620 = vmatprep.subr.mxu0 0.0
  %3621 = vmatpush1.msra.mxu0 0.0
  %3622 = vmatprep.subr.mxu0 0.0
  %3623 = vmatpush1.msra.mxu0 0.0
  %3624 = vmatprep.subr.mxu0 0.0
  %3625 = vmatpush1.msra.mxu0 0.0
  %3626 = vmatprep.subr.mxu0 0.0
  %3627 = vmatpush1.msra.mxu0 0.0
  %3628 = vmatprep.subr.mxu0 0.0
  %3629 = vmatpush1.msra.mxu0 0.0
  %3630 = vmatprep.subr.mxu0 0.0
  %3631 = vmatpush1.msra.mxu0 0.0
  %3632 = vmatprep.mubr.f32.mxu0 0.0
  %3633 = vmatmul.mubr.f32.gmra.mrb[0].mxu0 %v3566
  %v3634 = vpop.f32.mrb[0].mxu0
  %v3635 = vadd.f32 %v3564, %v3634
  %v3636 = vpop.f32.mrb[0].mxu0
  %3637 = vdwg.mxu0
  %3638 = vst [vmem:[%s4] sm:$0x3] %v3635
  // Predicated region
  $region18: #{vit_forward.1} parent=0 // pred_check
    _
  $region19: #{vit_forward.1} parent=0 // pred_check_branch
    %3640 = sbr.rel (0) target = $region21
  $region20: #{vit_forward.1} parent=0 // pred_region
    _
  $region21: #{vit_forward.1} parent=0 // pred_fallthru
    _
  // Predicated region
  $region22: #{vit_forward.1} parent=0 // pred_check
    _
  $region23: #{vit_forward.1} parent=0 // pred_check_branch
    %3642 = sbr.rel (0) target = $region25
  $region24: #{vit_forward.1} parent=0 // pred_region
    _
  $region25: #{vit_forward.1} parent=0 // pred_fallthru
    _

</llo_original>
